<compile_context>
chip_gen: v7x
topology: tpu7x:2x2x1
jax: 0.10.0
libtpu: 0.0.40
codegen_flags: <defaults>
</compile_context>

<pallas_src>
import jax
import jax.numpy as jnp
from jax.experimental import pallas as pl
from jax.experimental.pallas import tpu as pltpu

LEAKY_SLOPE = 0.01     # nn.LeakyReLU default negative_slope
OUT_LANES = 128        # lane-dense output tile; column 0 holds the real result
K_ALIGN = 256          # pad input feature dim to the v6e/v7x MXU width
H1, H2 = 1024, 512     # hidden sizes from the PyTorch module


def _round_up(x, m):
    return (x + m - 1) // m * m


def _leaky_relu(x):
    return jnp.where(x > 0, x, LEAKY_SLOPE * x)


def mlp_kernel(x_ref, w1_ref, b1_ref, w2_ref, b2_ref, w3_ref, b3_ref, o_ref):
    """Linear -> LeakyReLU -> Linear -> LeakyReLU -> Linear(512,1) -> Sigmoid.

    bf16 MXU matmuls with f32 accumulation; f32 element-wise math; final layer
    as a VPU multiply + cross-lane reduction instead of a padded MXU matmul.
    """
    x = x_ref[...]                                                   # (TM, Dp) bf16
    h1 = jnp.dot(x, w1_ref[...], preferred_element_type=jnp.float32) + b1_ref[...]
    h1 = _leaky_relu(h1)                                             # (TM, H1) f32
    h2 = jnp.dot(h1.astype(jnp.bfloat16), w2_ref[...],
                 preferred_element_type=jnp.float32) + b2_ref[...]
    h2 = _leaky_relu(h2)                                             # (TM, H2) f32
    logit = jnp.sum(h2 * w3_ref[...], axis=-1, keepdims=True)        # (TM, 1)
    o_ref[...] = jax.nn.sigmoid(logit + b3_ref[...])                 # (TM, OUT_LANES)


def mlp_pallas(x, w1, b1, w2, b2, w3, b3, *, tm=None):
    """x: (B, Dp) bf16 with the feature dim already zero-padded to w1.shape[0]."""
    B, Dp = x.shape
    h1 = w1.shape[1]
    h2 = w2.shape[1]
    if tm is None:
        tm = min(256, _round_up(max(B, 1), 8))
    b_pad = _round_up(B, tm)
    if b_pad != B:
        x = jnp.zeros((b_pad, Dp), x.dtype).at[:B].set(x)
    grid = (b_pad // tm,)

    cost = pl.CostEstimate(
        flops=2 * b_pad * (Dp * h1 + h1 * h2 + h2),
        transcendentals=b_pad * OUT_LANES,
        bytes_accessed=int(
            x.size * x.dtype.itemsize
            + w1.size * w1.dtype.itemsize
            + w2.size * w2.dtype.itemsize
            + (b1.size + b2.size + w3.size + b3.size) * 4
            + b_pad * OUT_LANES * 4
        ),
    )

    out = pl.pallas_call(
        mlp_kernel,
        out_shape=jax.ShapeDtypeStruct((b_pad, OUT_LANES), jnp.float32),
        grid=grid,
        in_specs=[
            pl.BlockSpec((tm, Dp), lambda i: (i, 0)),     # batch-tiled input
            pl.BlockSpec((Dp, h1), lambda i: (0, 0)),     # weights: VMEM-resident
            pl.BlockSpec((1, h1), lambda i: (0, 0)),
            pl.BlockSpec((h1, h2), lambda i: (0, 0)),
            pl.BlockSpec((1, h2), lambda i: (0, 0)),
            pl.BlockSpec((1, h2), lambda i: (0, 0)),      # w3 row (f32, VPU path)
            pl.BlockSpec((1, OUT_LANES), lambda i: (0, 0)),
        ],
        out_specs=pl.BlockSpec((tm, OUT_LANES), lambda i: (i, 0)),
        compiler_params=pltpu.CompilerParams(
            dimension_semantics=("parallel",),            # batch tiles independent
        ),
        cost_estimate=cost,
    )(x, w1, b1, w2, b2, w3, b3)
    return out[:B, 0]                                     # squeeze(-1) -> (B,)


def init_mlp_params(key, in_dim):
    """Synthetic params for Linear(in,1024)/Linear(1024,512)/Linear(512,1)."""
    k1, k2, k3, k4, k5, k6 = jax.random.split(key, 6)
    d_pad = _round_up(in_dim, K_ALIGN)
    s1 = 1.0 / jnp.sqrt(jnp.float32(in_dim))
    s2 = 1.0 / jnp.sqrt(jnp.float32(H1))
    s3 = 1.0 / jnp.sqrt(jnp.float32(H2))
    w1_real = jax.random.uniform(k1, (in_dim, H1), jnp.float32, -s1, s1)
    w1 = jnp.zeros((d_pad, H1), jnp.float32).at[:in_dim].set(w1_real)
    w1 = w1.astype(jnp.bfloat16)                          # bf16 weights, zero K-pad
    b1 = jax.random.uniform(k2, (1, H1), jnp.float32, -s1, s1)
    w2 = jax.random.uniform(k3, (H1, H2), jnp.float32, -s2, s2).astype(jnp.bfloat16)
    b2 = jax.random.uniform(k4, (1, H2), jnp.float32, -s2, s2)
    # Final Linear(512, 1): (1, 512) f32 row for the lane-reduction path, and
    # its scalar bias broadcast across the 128 output lanes.
    w3 = jax.random.uniform(k5, (1, H2), jnp.float32, -s3, s3)
    b3_scalar = jax.random.uniform(k6, (), jnp.float32, -s3, s3)
    b3 = jnp.full((1, OUT_LANES), b3_scalar, jnp.float32)
    return (w1, b1, w2, b2, w3, b3)


class DiscriminatorPallas:
    def __init__(self, pc_num_points_part, pc_num_points, key):
        self.pc_num_parts = pc_num_points_part
        self.pc_num_full = pc_num_points
        k_part, k_full = jax.random.split(key)
        self.params_part = init_mlp_params(k_part, self.pc_num_parts * 3)
        self.params_full = init_mlp_params(k_full, self.pc_num_full * 3)

    def __call__(self, x):
        B = x.shape[0]
        xf = x.reshape(B, -1)                             # x.view(x.size(0), -1)
        if xf.shape[-1] == self.pc_num_full * 3:
            params = self.params_full
        elif xf.shape[-1] == self.pc_num_parts * 3:
            params = self.params_part
        else:
            raise ValueError("input feature dim matches neither branch")
        d_pad = params[0].shape[0]
        # Single pad+cast pass: bf16 zeros, real features copied into the front.
        x_pad = jnp.zeros((B, d_pad), jnp.bfloat16).at[:, : xf.shape[-1]].set(
            xf.astype(jnp.bfloat16))
        return mlp_pallas(x_pad, *params)


def _reference_forward(xf, params):
    """Pure-JAX reference of the same math (bf16 at the dots, f32 elsewhere)."""
    w1, b1, w2, b2, w3, b3 = params
    d_pad = w1.shape[0]
    xp = jnp.zeros((xf.shape[0], d_pad), jnp.bfloat16).at[:, : xf.shape[1]].set(
        xf.astype(jnp.bfloat16))
    h1 = _leaky_relu(
        jnp.dot(xp, w1, preferred_element_type=jnp.float32) + b1)
    h2 = _leaky_relu(
        jnp.dot(h1.astype(jnp.bfloat16), w2, preferred_element_type=jnp.float32) + b2)
    logit = jnp.sum(h2 * w3, axis=-1, keepdims=True) + b3[:, :1]
    return jax.nn.sigmoid(logit)[:, 0]


if __name__ == "__main__":
    key = jax.random.PRNGKey(0)
    k_model, k_full, k_part = jax.random.split(key, 3)

    # Small config: pc_num_points_part=64, pc_num_points=256
    disc = DiscriminatorPallas(pc_num_points_part=64, pc_num_points=256, key=k_model)

    # Full point cloud: (B=2, 256, 3) -> flattened dim 768 -> disci_full branch
    x_full = jax.random.normal(k_full, (2, 256, 3), jnp.float32)
    out_full = disc(x_full)
    jax.block_until_ready(out_full)

    # Part point cloud: (B=2, 64, 3) -> flattened dim 192 -> disci_part branch
    x_part = jax.random.normal(k_part, (2, 64, 3), jnp.float32)
    out_part = disc(x_part)
    jax.block_until_ready(out_part)

    # Correctness check against a pure-JAX reference of the same math.
    ref_full = _reference_forward(x_full.reshape(2, -1), disc.params_full)
    ref_part = _reference_forward(x_part.reshape(2, -1), disc.params_part)
    assert out_full.shape == (2,) and out_part.shape == (2,)
    assert jnp.allclose(out_full, ref_full, atol=1e-4, rtol=1e-4), (
        float(jnp.max(jnp.abs(out_full - ref_full))))
    assert jnp.allclose(out_part, ref_part, atol=1e-4, rtol=1e-4), (
        float(jnp.max(jnp.abs(out_part - ref_part))))

    print("KERNEL_OK")
</pallas_src>

<mosaic_0001>
module attributes {stable_mosaic.version = 11 : i64} {
  func.func @mlp_kernel(%arg0: i32, %arg1: memref<8x768xbf16, #tpu.memory_space<vmem>>, %arg2: memref<768x1024xbf16, #tpu.memory_space<vmem>>, %arg3: memref<1x1024xf32, #tpu.memory_space<vmem>>, %arg4: memref<1024x512xbf16, #tpu.memory_space<vmem>>, %arg5: memref<1x512xf32, #tpu.memory_space<vmem>>, %arg6: memref<1x512xf32, #tpu.memory_space<vmem>>, %arg7: memref<1x128xf32, #tpu.memory_space<vmem>>, %arg8: memref<8x128xf32, #tpu.memory_space<vmem>>) attributes {dimension_semantics = [#tpu.dimension_semantics<parallel>], iteration_bounds = array<i64: 1>, scalar_prefetch = 0 : i64, scratch_operands = 0 : i64, tpu.core_type = #tpu.core_type<tc>, window_params = [{transform_indices = @transform_0, window_bounds = array<i64: 8, 768>}, {pipeline_mode = #tpu.pipeline_mode<synchronous>, transform_indices = @transform_1, window_bounds = array<i64: 768, 1024>}, {pipeline_mode = #tpu.pipeline_mode<synchronous>, transform_indices = @transform_2, window_bounds = array<i64: 1, 1024>}, {pipeline_mode = #tpu.pipeline_mode<synchronous>, transform_indices = @transform_3, window_bounds = array<i64: 1024, 512>}, {pipeline_mode = #tpu.pipeline_mode<synchronous>, transform_indices = @transform_4, window_bounds = array<i64: 1, 512>}, {pipeline_mode = #tpu.pipeline_mode<synchronous>, transform_indices = @transform_5, window_bounds = array<i64: 1, 512>}, {pipeline_mode = #tpu.pipeline_mode<synchronous>, transform_indices = @transform_6, window_bounds = array<i64: 1, 128>}, {transform_indices = @transform_7, window_bounds = array<i64: 8, 128>}]} {
    %c0 = arith.constant 0 : index
    %c0_0 = arith.constant 0 : index
    %0 = vector.load %arg1[%c0, %c0_0] : memref<8x768xbf16, #tpu.memory_space<vmem>>, vector<8x768xbf16>
    %c0_1 = arith.constant 0 : index
    %c0_2 = arith.constant 0 : index
    %1 = vector.load %arg2[%c0_1, %c0_2] : memref<768x1024xbf16, #tpu.memory_space<vmem>>, vector<768x1024xbf16>
    %cst = arith.constant dense<0.000000e+00> : vector<8x1024xf32>
    %2 = tpu.matmul %0, %1, %cst {dimension_numbers = #tpu.dot_dimension_numbers<[1], [0], [0], [1], [0, 0, 1, 1], [], []>} : vector<8x768xbf16>, vector<768x1024xbf16>, vector<8x1024xf32> -> vector<8x1024xf32>
    %c0_3 = arith.constant 0 : index
    %c0_4 = arith.constant 0 : index
    %3 = vector.load %arg3[%c0_3, %c0_4] : memref<1x1024xf32, #tpu.memory_space<vmem>>, vector<1x1024xf32>
    %4 = vector.broadcast %3 : vector<1x1024xf32> to vector<8x1024xf32>
    %5 = arith.addf %2, %4 : vector<8x1024xf32>
    %cst_5 = arith.constant 0.000000e+00 : f32
    %6 = vector.broadcast %cst_5 : f32 to vector<8x1024xf32>
    %7 = arith.cmpf ogt, %5, %6 : vector<8x1024xf32>
    %cst_6 = arith.constant 0.00999999977 : f32
    %8 = vector.broadcast %cst_6 : f32 to vector<8x1024xf32>
    %9 = arith.mulf %8, %5 : vector<8x1024xf32>
    %10 = arith.select %7, %5, %9 : vector<8x1024xi1>, vector<8x1024xf32>
    %11 = arith.truncf %10 : vector<8x1024xf32> to vector<8x1024xbf16>
    %c0_7 = arith.constant 0 : index
    %c0_8 = arith.constant 0 : index
    %12 = vector.load %arg4[%c0_7, %c0_8] : memref<1024x512xbf16, #tpu.memory_space<vmem>>, vector<1024x512xbf16>
    %cst_9 = arith.constant dense<0.000000e+00> : vector<8x512xf32>
    %13 = tpu.matmul %11, %12, %cst_9 {dimension_numbers = #tpu.dot_dimension_numbers<[1], [0], [0], [1], [0, 0, 1, 1], [], []>} : vector<8x1024xbf16>, vector<1024x512xbf16>, vector<8x512xf32> -> vector<8x512xf32>
    %c0_10 = arith.constant 0 : index
    %c0_11 = arith.constant 0 : index
    %14 = vector.load %arg5[%c0_10, %c0_11] : memref<1x512xf32, #tpu.memory_space<vmem>>, vector<1x512xf32>
    %15 = vector.broadcast %14 : vector<1x512xf32> to vector<8x512xf32>
    %16 = arith.addf %13, %15 : vector<8x512xf32>
    %cst_12 = arith.constant 0.000000e+00 : f32
    %17 = vector.broadcast %cst_12 : f32 to vector<8x512xf32>
    %18 = arith.cmpf ogt, %16, %17 : vector<8x512xf32>
    %cst_13 = arith.constant 0.00999999977 : f32
    %19 = vector.broadcast %cst_13 : f32 to vector<8x512xf32>
    %20 = arith.mulf %19, %16 : vector<8x512xf32>
    %21 = arith.select %18, %16, %20 : vector<8x512xi1>, vector<8x512xf32>
    %c0_14 = arith.constant 0 : index
    %c0_15 = arith.constant 0 : index
    %22 = vector.load %arg6[%c0_14, %c0_15] : memref<1x512xf32, #tpu.memory_space<vmem>>, vector<1x512xf32>
    %23 = vector.broadcast %22 : vector<1x512xf32> to vector<8x512xf32>
    %24 = arith.mulf %21, %23 : vector<8x512xf32>
    %cst_16 = arith.constant dense<0.000000e+00> : vector<8xf32>
    %25 = vector.multi_reduction <add>, %24, %cst_16 [1] : vector<8x512xf32> to vector<8xf32>
    %26 = vector.shape_cast %25 : vector<8xf32> to vector<8x1xf32>
    %c0_17 = arith.constant 0 : index
    %c0_18 = arith.constant 0 : index
    %27 = vector.load %arg7[%c0_17, %c0_18] : memref<1x128xf32, #tpu.memory_space<vmem>>, vector<1x128xf32>
    %28 = vector.broadcast %26 : vector<8x1xf32> to vector<8x128xf32>
    %29 = vector.broadcast %27 : vector<1x128xf32> to vector<8x128xf32>
    %30 = arith.addf %28, %29 : vector<8x128xf32>
    %31 = arith.negf %30 : vector<8x128xf32>
    %32 = math.exp %31 : vector<8x128xf32>
    %cst_19 = arith.constant 1.000000e+00 : f32
    %33 = vector.broadcast %cst_19 : f32 to vector<8x128xf32>
    %34 = arith.addf %33, %32 : vector<8x128xf32>
    %35 = arith.divf %33, %34 : vector<8x128xf32>
    %c0_20 = arith.constant 0 : index
    %c0_21 = arith.constant 0 : index
    %36 = vector.load %arg8[%c0_20, %c0_21] : memref<8x128xf32, #tpu.memory_space<vmem>>, vector<8x128xf32>
    tpu.vector_store %arg8[%c0_20, %c0_21], %35 {strides = array<i32>} : memref<8x128xf32, #tpu.memory_space<vmem>>, vector<8x128xf32>,
    return
  }
  func.func @transform_0(%arg0: i32) -> (i32, i32) {
    %c0_i32 = arith.constant 0 : i32
    %c0_i32_0 = arith.constant 0 : i32
    return %arg0, %c0_i32 : i32, i32
  }
  func.func @transform_1(%arg0: i32) -> (i32, i32) {
    %c0_i32 = arith.constant 0 : i32
    %c0_i32_0 = arith.constant 0 : i32
    %c0_i32_1 = arith.constant 0 : i32
    return %c0_i32, %c0_i32_0 : i32, i32
  }
  func.func @transform_2(%arg0: i32) -> (i32, i32) {
    %c0_i32 = arith.constant 0 : i32
    %c0_i32_0 = arith.constant 0 : i32
    %c0_i32_1 = arith.constant 0 : i32
    return %c0_i32, %c0_i32_0 : i32, i32
  }
  func.func @transform_3(%arg0: i32) -> (i32, i32) {
    %c0_i32 = arith.constant 0 : i32
    %c0_i32_0 = arith.constant 0 : i32
    %c0_i32_1 = arith.constant 0 : i32
    return %c0_i32, %c0_i32_0 : i32, i32
  }
  func.func @transform_4(%arg0: i32) -> (i32, i32) {
    %c0_i32 = arith.constant 0 : i32
    %c0_i32_0 = arith.constant 0 : i32
    %c0_i32_1 = arith.constant 0 : i32
    return %c0_i32, %c0_i32_0 : i32, i32
  }
  func.func @transform_5(%arg0: i32) -> (i32, i32) {
    %c0_i32 = arith.constant 0 : i32
    %c0_i32_0 = arith.constant 0 : i32
    %c0_i32_1 = arith.constant 0 : i32
    return %c0_i32, %c0_i32_0 : i32, i32
  }
  func.func @transform_6(%arg0: i32) -> (i32, i32) {
    %c0_i32 = arith.constant 0 : i32
    %c0_i32_0 = arith.constant 0 : i32
    %c0_i32_1 = arith.constant 0 : i32
    return %c0_i32, %c0_i32_0 : i32, i32
  }
  func.func @transform_7(%arg0: i32) -> (i32, i32) {
    %c0_i32 = arith.constant 0 : i32
    %c0_i32_0 = arith.constant 0 : i32
    return %arg0, %c0_i32 : i32, i32
  }
}

</mosaic_0001>

<llo_original>
// kernel: tpu_custom_call.1
$region0: #{tpu_custom_call.1}
  #allocation0 [shape = 'u32[]', space=smem, size = 0x4, offset = 0x4, fixed_abs, tag = 'smem constant byte address 0x4 - core index']
  #allocation1 [shape = 'u32[144,128]{1,0:T(1,128)}', space=vmem, size = 0x12000, scoped, tag = 'internal scratch']
  %s0 = inlined_call_operand.hbm [shape: bf16[8,768], index: 0, kind: input, shape index: {}]
  %s1 = inlined_call_operand.hbm [shape: bf16[768,1024], index: 1, kind: input, shape index: {}]
  %s2 = inlined_call_operand.hbm [shape: f32[1,1024], index: 2, kind: input, shape index: {}]
  %s3 = inlined_call_operand.hbm [shape: bf16[1024,512], index: 3, kind: input, shape index: {}]
  %s4 = inlined_call_operand.hbm [shape: f32[1,512], index: 4, kind: input, shape index: {}]
  %s5 = inlined_call_operand.hbm [shape: f32[1,512], index: 5, kind: input, shape index: {}]
  %s6 = inlined_call_operand.hbm [shape: f32[1,128], index: 6, kind: input, shape index: {}]
  %s7 = inlined_call_operand.hbm [shape: f32[8,128], index: 7, kind: output, shape index: {}]
  %s8 = sld [smem:[#allocation0]]
  $region66: #{tpu_custom_call.1} parent=0
    _
  %s10 = ssub.s32 1, %s8
  %s11 = scalar_select 0, %s10, %s8
  $region1: #{tpu_custom_call.1} parent=0
    #allocation2 [shape = 'u8[12288]{0}', space=vmem, size = 0x3000, scoped, tag = 'input window, operand 0, single buffered']
    #allocation3 [shape = 's32[1]{0}', space=sflag, size = 0x4, scoped, tag = 'scoped memory for tpu_custom_call.1']
    #allocation4 [shape = 's32[1]{0}', space=sflag, size = 0x4, scoped, tag = 'scoped memory for tpu_custom_call.1']
    #allocation5 [shape = 'u8[1572864]{0}', space=vmem, size = 0x180000, scoped, tag = 'input window, operand 1, single buffered']
    #allocation6 [shape = 's32[1]{0}', space=sflag, size = 0x4, scoped, tag = 'scoped memory for tpu_custom_call.1']
    #allocation7 [shape = 'u8[4096]{0}', space=vmem, size = 0x1000, scoped, tag = 'input window, operand 2, single buffered']
    #allocation8 [shape = 'u8[1048576]{0}', space=vmem, size = 0x100000, scoped, tag = 'input window, operand 3, single buffered']
    #allocation9 [shape = 's32[1]{0}', space=sflag, size = 0x4, scoped, tag = 'scoped memory for tpu_custom_call.1']
    #allocation10 [shape = 'u8[2048]{0}', space=vmem, size = 0x800, scoped, tag = 'input window, operand 4, single buffered']
    #allocation11 [shape = 'u8[2048]{0}', space=vmem, size = 0x800, scoped, tag = 'input window, operand 5, single buffered']
    #allocation12 [shape = 's32[1]{0}', space=sflag, size = 0x4, scoped, tag = 'scoped memory for tpu_custom_call.1']
    #allocation13 [shape = 'u8[512]{0}', space=vmem, size = 0x400, scoped, tag = 'input window, operand 6, single buffered']
    #allocation14 [shape = 'u8[4096]{0}', space=vmem, size = 0x1000, scoped, tag = 'output window, operand 0, single buffered']
    %12 = vsyncpa [#allocation3], 0
    %13 = vsyncpa [#allocation6], 0
    %14 = vsyncpa [#allocation9], 0
    %15 = vsyncpa [#allocation12], 0
    %16 = vsyncpa [#allocation4], 0
    // Predicated region
    $region2: #{tpu_custom_call.1} parent=1 // pred_check
      _
    $region3: #{tpu_custom_call.1} parent=1 // pred_check_branch
      %18 = sbr.rel (0) target = $region5
    $region4: #{tpu_custom_call.1} parent=1 // pred_region
      %s20 = ssub.s32 384, 384
      %21 = vsyncadd [#allocation3], %s20
      %s23 = sshll.u32 [#allocation2], 4
      %s24 = int_to_ptr.vmem [resolvable:$true] %s23
      %26 = dma.hbm_to_vmem [thread:$0]  %s0, 384, %s24, [#allocation3]
    $region5: #{tpu_custom_call.1} parent=1 // pred_fallthru
      _
    // Predicated region
    $region6: #{tpu_custom_call.1} parent=1 // pred_check
      _
    $region7: #{tpu_custom_call.1} parent=1 // pred_check_branch
      %28 = sbr.rel (0) target = $region9
    $region8: #{tpu_custom_call.1} parent=1 // pred_region
      %s30 = ssub.s32 49152, 49152
      %31 = vsyncadd [#allocation6], %s30
      %s32 = sshll.u32 [#allocation5], 4
      %s33 = int_to_ptr.vmem [resolvable:$true] %s32
      %38 = dma.hbm_to_vmem [thread:$0]  %s1, 49152, %s33, [#allocation6], 512, 512, 32
    $region9: #{tpu_custom_call.1} parent=1 // pred_fallthru
      _
    // Predicated region
    $region10: #{tpu_custom_call.1} parent=1 // pred_check
      _
    $region11: #{tpu_custom_call.1} parent=1 // pred_check_branch
      %40 = sbr.rel (0) target = $region13
    $region12: #{tpu_custom_call.1} parent=1 // pred_region
      %s42 = ssub.s32 128, 128
      %43 = vsyncadd [#allocation6], %s42
      %s45 = sshll.u32 [#allocation7], 4
      %s46 = int_to_ptr.vmem [resolvable:$true] %s45
      %48 = dma.hbm_to_vmem [thread:$0]  %s2, 128, %s46, [#allocation6]
    $region13: #{tpu_custom_call.1} parent=1 // pred_fallthru
      _
    // Predicated region
    $region14: #{tpu_custom_call.1} parent=1 // pred_check
      _
    $region15: #{tpu_custom_call.1} parent=1 // pred_check_branch
      %50 = sbr.rel (0) target = $region17
    $region16: #{tpu_custom_call.1} parent=1 // pred_region
      %s52 = ssub.s32 32768, 32768
      %53 = vsyncadd [#allocation9], %s52
      %s54 = sshll.u32 [#allocation8], 4
      %s55 = int_to_ptr.vmem [resolvable:$true] %s54
      %60 = dma.hbm_to_vmem [thread:$0]  %s3, 32768, %s55, [#allocation9], 256, 256, 16
    $region17: #{tpu_custom_call.1} parent=1 // pred_fallthru
      _
    // Predicated region
    $region18: #{tpu_custom_call.1} parent=1 // pred_check
      _
    $region19: #{tpu_custom_call.1} parent=1 // pred_check_branch
      %62 = sbr.rel (0) target = $region21
    $region20: #{tpu_custom_call.1} parent=1 // pred_region
      %s64 = ssub.s32 64, 64
      %65 = vsyncadd [#allocation9], %s64
      %s67 = sshll.u32 [#allocation10], 4
      %s68 = int_to_ptr.vmem [resolvable:$true] %s67
      %70 = dma.hbm_to_vmem [thread:$0]  %s4, 64, %s68, [#allocation9]
    $region21: #{tpu_custom_call.1} parent=1 // pred_fallthru
      _
    // Predicated region
    $region22: #{tpu_custom_call.1} parent=1 // pred_check
      _
    $region23: #{tpu_custom_call.1} parent=1 // pred_check_branch
      %72 = sbr.rel (0) target = $region25
    $region24: #{tpu_custom_call.1} parent=1 // pred_region
      %s74 = ssub.s32 64, 64
      %75 = vsyncadd [#allocation12], %s74
      %s77 = sshll.u32 [#allocation11], 4
      %s78 = int_to_ptr.vmem [resolvable:$true] %s77
      %80 = dma.hbm_to_vmem [thread:$0]  %s5, 64, %s78, [#allocation12]
    $region25: #{tpu_custom_call.1} parent=1 // pred_fallthru
      _
    // Predicated region
    $region26: #{tpu_custom_call.1} parent=1 // pred_check
      _
    $region27: #{tpu_custom_call.1} parent=1 // pred_check_branch
      %82 = sbr.rel (0) target = $region29
    $region28: #{tpu_custom_call.1} parent=1 // pred_region
      %s84 = ssub.s32 16, 16
      %85 = vsyncadd [#allocation12], %s84
      %s87 = sshll.u32 [#allocation13], 4
      %s88 = int_to_ptr.vmem [resolvable:$true] %s87
      %90 = dma.hbm_to_vmem [thread:$0]  %s6, 16, %s88, [#allocation12]
    $region29: #{tpu_custom_call.1} parent=1 // pred_fallthru
      _
    // Predicated region
    $region30: #{tpu_custom_call.1} parent=1 // pred_check
      _
    $region31: #{tpu_custom_call.1} parent=1 // pred_check_branch
      %92 = sbr.rel (0) target = $region33
    $region32: #{tpu_custom_call.1} parent=1 // pred_region
      %93 = dma.done [#allocation3], 384
    $region33: #{tpu_custom_call.1} parent=1 // pred_fallthru
      _
    // Predicated region
    $region34: #{tpu_custom_call.1} parent=1 // pred_check
      _
    $region35: #{tpu_custom_call.1} parent=1 // pred_check_branch
      %95 = sbr.rel (0) target = $region37
    $region36: #{tpu_custom_call.1} parent=1 // pred_region
      %96 = dma.done [#allocation6], 49152
    $region37: #{tpu_custom_call.1} parent=1 // pred_fallthru
      _
    // Predicated region
    $region38: #{tpu_custom_call.1} parent=1 // pred_check
      _
    $region39: #{tpu_custom_call.1} parent=1 // pred_check_branch
      %98 = sbr.rel (0) target = $region41
    $region40: #{tpu_custom_call.1} parent=1 // pred_region
      %99 = dma.done [#allocation6], 128
    $region41: #{tpu_custom_call.1} parent=1 // pred_fallthru
      _
    // Predicated region
    $region42: #{tpu_custom_call.1} parent=1 // pred_check
      _
    $region43: #{tpu_custom_call.1} parent=1 // pred_check_branch
      %101 = sbr.rel (0) target = $region45
    $region44: #{tpu_custom_call.1} parent=1 // pred_region
      %102 = dma.done [#allocation9], 32768
    $region45: #{tpu_custom_call.1} parent=1 // pred_fallthru
      _
    // Predicated region
    $region46: #{tpu_custom_call.1} parent=1 // pred_check
      _
    $region47: #{tpu_custom_call.1} parent=1 // pred_check_branch
      %104 = sbr.rel (0) target = $region49
    $region48: #{tpu_custom_call.1} parent=1 // pred_region
      %105 = dma.done [#allocation9], 64
    $region49: #{tpu_custom_call.1} parent=1 // pred_fallthru
      _
    // Predicated region
    $region50: #{tpu_custom_call.1} parent=1 // pred_check
      _
    $region51: #{tpu_custom_call.1} parent=1 // pred_check_branch
      %107 = sbr.rel (0) target = $region53
    $region52: #{tpu_custom_call.1} parent=1 // pred_region
      %108 = dma.done [#allocation12], 64
    $region53: #{tpu_custom_call.1} parent=1 // pred_fallthru
      _
    // Predicated region
    $region54: #{tpu_custom_call.1} parent=1 // pred_check
      _
    $region55: #{tpu_custom_call.1} parent=1 // pred_check_branch
      %110 = sbr.rel (0) target = $region57
    $region56: #{tpu_custom_call.1} parent=1 // pred_region
      %111 = dma.done [#allocation12], 16
    $region57: #{tpu_custom_call.1} parent=1 // pred_fallthru
      _
    %v112 = vld [vmem:[#allocation2] sm:$0xff]
    %v113 = vld [vmem:[#allocation2 + $0x8] sm:$0xff]
    %v114 = vld [vmem:[#allocation2 + $0x10] sm:$0xff]
    %v115 = vld [vmem:[#allocation5] sm:$0xff]
    %v116 = vld [vmem:[#allocation5 + $0x8] sm:$0xff]
    %v117 = vld [vmem:[#allocation5 + $0x10] sm:$0xff]
    %v118 = vld [vmem:[#allocation5 + $0x18] sm:$0xff]
    %v119 = vld [vmem:[#allocation5 + $0x20] sm:$0xff]
    %v120 = vld [vmem:[#allocation5 + $0x28] sm:$0xff]
    %v121 = vld [vmem:[#allocation5 + $0x30] sm:$0xff]
    %v122 = vld [vmem:[#allocation5 + $0x38] sm:$0xff]
    %v123 = vld [vmem:[#allocation5 + $0x40] sm:$0xff]
    %v124 = vld [vmem:[#allocation5 + $0x48] sm:$0xff]
    %v125 = vld [vmem:[#allocation5 + $0x50] sm:$0xff]
    %v126 = vld [vmem:[#allocation5 + $0x58] sm:$0xff]
    %v127 = vld [vmem:[#allocation5 + $0x60] sm:$0xff]
    %v128 = vld [vmem:[#allocation5 + $0x68] sm:$0xff]
    %v129 = vld [vmem:[#allocation5 + $0x70] sm:$0xff]
    %v130 = vld [vmem:[#allocation5 + $0x78] sm:$0xff]
    %v131 = vld [vmem:[#allocation5 + $0x80] sm:$0xff]
    %v132 = vld [vmem:[#allocation5 + $0x88] sm:$0xff]
    %v133 = vld [vmem:[#allocation5 + $0x90] sm:$0xff]
    %v134 = vld [vmem:[#allocation5 + $0x98] sm:$0xff]
    %v135 = vld [vmem:[#allocation5 + $0xa0] sm:$0xff]
    %v136 = vld [vmem:[#allocation5 + $0xa8] sm:$0xff]
    %v137 = vld [vmem:[#allocation5 + $0xb0] sm:$0xff]
    %v138 = vld [vmem:[#allocation5 + $0xb8] sm:$0xff]
    %v139 = vld [vmem:[#allocation5 + $0xc0] sm:$0xff]
    %v140 = vld [vmem:[#allocation5 + $0xc8] sm:$0xff]
    %v141 = vld [vmem:[#allocation5 + $0xd0] sm:$0xff]
    %v142 = vld [vmem:[#allocation5 + $0xd8] sm:$0xff]
    %v143 = vld [vmem:[#allocation5 + $0xe0] sm:$0xff]
    %v144 = vld [vmem:[#allocation5 + $0xe8] sm:$0xff]
    %v145 = vld [vmem:[#allocation5 + $0xf0] sm:$0xff]
    %v146 = vld [vmem:[#allocation5 + $0xf8] sm:$0xff]
    %v147 = vld [vmem:[#allocation5 + $0x100] sm:$0xff]
    %v148 = vld [vmem:[#allocation5 + $0x108] sm:$0xff]
    %v149 = vld [vmem:[#allocation5 + $0x110] sm:$0xff]
    %v150 = vld [vmem:[#allocation5 + $0x118] sm:$0xff]
    %v151 = vld [vmem:[#allocation5 + $0x120] sm:$0xff]
    %v152 = vld [vmem:[#allocation5 + $0x128] sm:$0xff]
    %v153 = vld [vmem:[#allocation5 + $0x130] sm:$0xff]
    %v154 = vld [vmem:[#allocation5 + $0x138] sm:$0xff]
    %v155 = vld [vmem:[#allocation5 + $0x140] sm:$0xff]
    %v156 = vld [vmem:[#allocation5 + $0x148] sm:$0xff]
    %v157 = vld [vmem:[#allocation5 + $0x150] sm:$0xff]
    %v158 = vld [vmem:[#allocation5 + $0x158] sm:$0xff]
    %v159 = vld [vmem:[#allocation5 + $0x160] sm:$0xff]
    %v160 = vld [vmem:[#allocation5 + $0x168] sm:$0xff]
    %v161 = vld [vmem:[#allocation5 + $0x170] sm:$0xff]
    %v162 = vld [vmem:[#allocation5 + $0x178] sm:$0xff]
    %v163 = vld [vmem:[#allocation5 + $0x180] sm:$0xff]
    %v164 = vld [vmem:[#allocation5 + $0x188] sm:$0xff]
    %v165 = vld [vmem:[#allocation5 + $0x190] sm:$0xff]
    %v166 = vld [vmem:[#allocation5 + $0x198] sm:$0xff]
    %v167 = vld [vmem:[#allocation5 + $0x1a0] sm:$0xff]
    %v168 = vld [vmem:[#allocation5 + $0x1a8] sm:$0xff]
    %v169 = vld [vmem:[#allocation5 + $0x1b0] sm:$0xff]
    %v170 = vld [vmem:[#allocation5 + $0x1b8] sm:$0xff]
    %v171 = vld [vmem:[#allocation5 + $0x1c0] sm:$0xff]
    %v172 = vld [vmem:[#allocation5 + $0x1c8] sm:$0xff]
    %v173 = vld [vmem:[#allocation5 + $0x1d0] sm:$0xff]
    %v174 = vld [vmem:[#allocation5 + $0x1d8] sm:$0xff]
    %v175 = vld [vmem:[#allocation5 + $0x1e0] sm:$0xff]
    %v176 = vld [vmem:[#allocation5 + $0x1e8] sm:$0xff]
    %v177 = vld [vmem:[#allocation5 + $0x1f0] sm:$0xff]
    %v178 = vld [vmem:[#allocation5 + $0x1f8] sm:$0xff]
    %v179 = vld [vmem:[#allocation5 + $0x200] sm:$0xff]
    %v180 = vld [vmem:[#allocation5 + $0x208] sm:$0xff]
    %v181 = vld [vmem:[#allocation5 + $0x210] sm:$0xff]
    %v182 = vld [vmem:[#allocation5 + $0x218] sm:$0xff]
    %v183 = vld [vmem:[#allocation5 + $0x220] sm:$0xff]
    %v184 = vld [vmem:[#allocation5 + $0x228] sm:$0xff]
    %v185 = vld [vmem:[#allocation5 + $0x230] sm:$0xff]
    %v186 = vld [vmem:[#allocation5 + $0x238] sm:$0xff]
    %v187 = vld [vmem:[#allocation5 + $0x240] sm:$0xff]
    %v188 = vld [vmem:[#allocation5 + $0x248] sm:$0xff]
    %v189 = vld [vmem:[#allocation5 + $0x250] sm:$0xff]
    %v190 = vld [vmem:[#allocation5 + $0x258] sm:$0xff]
    %v191 = vld [vmem:[#allocation5 + $0x260] sm:$0xff]
    %v192 = vld [vmem:[#allocation5 + $0x268] sm:$0xff]
    %v193 = vld [vmem:[#allocation5 + $0x270] sm:$0xff]
    %v194 = vld [vmem:[#allocation5 + $0x278] sm:$0xff]
    %v195 = vld [vmem:[#allocation5 + $0x280] sm:$0xff]
    %v196 = vld [vmem:[#allocation5 + $0x288] sm:$0xff]
    %v197 = vld [vmem:[#allocation5 + $0x290] sm:$0xff]
    %v198 = vld [vmem:[#allocation5 + $0x298] sm:$0xff]
    %v199 = vld [vmem:[#allocation5 + $0x2a0] sm:$0xff]
    %v200 = vld [vmem:[#allocation5 + $0x2a8] sm:$0xff]
    %v201 = vld [vmem:[#allocation5 + $0x2b0] sm:$0xff]
    %v202 = vld [vmem:[#allocation5 + $0x2b8] sm:$0xff]
    %v203 = vld [vmem:[#allocation5 + $0x2c0] sm:$0xff]
    %v204 = vld [vmem:[#allocation5 + $0x2c8] sm:$0xff]
    %v205 = vld [vmem:[#allocation5 + $0x2d0] sm:$0xff]
    %v206 = vld [vmem:[#allocation5 + $0x2d8] sm:$0xff]
    %v207 = vld [vmem:[#allocation5 + $0x2e0] sm:$0xff]
    %v208 = vld [vmem:[#allocation5 + $0x2e8] sm:$0xff]
    %v209 = vld [vmem:[#allocation5 + $0x2f0] sm:$0xff]
    %v210 = vld [vmem:[#allocation5 + $0x2f8] sm:$0xff]
    %v211 = vld [vmem:[#allocation5 + $0x300] sm:$0xff]
    %v212 = vld [vmem:[#allocation5 + $0x308] sm:$0xff]
    %v213 = vld [vmem:[#allocation5 + $0x310] sm:$0xff]
    %v214 = vld [vmem:[#allocation5 + $0x318] sm:$0xff]
    %v215 = vld [vmem:[#allocation5 + $0x320] sm:$0xff]
    %v216 = vld [vmem:[#allocation5 + $0x328] sm:$0xff]
    %v217 = vld [vmem:[#allocation5 + $0x330] sm:$0xff]
    %v218 = vld [vmem:[#allocation5 + $0x338] sm:$0xff]
    %v219 = vld [vmem:[#allocation5 + $0x340] sm:$0xff]
    %v220 = vld [vmem:[#allocation5 + $0x348] sm:$0xff]
    %v221 = vld [vmem:[#allocation5 + $0x350] sm:$0xff]
    %v222 = vld [vmem:[#allocation5 + $0x358] sm:$0xff]
    %v223 = vld [vmem:[#allocation5 + $0x360] sm:$0xff]
    %v224 = vld [vmem:[#allocation5 + $0x368] sm:$0xff]
    %v225 = vld [vmem:[#allocation5 + $0x370] sm:$0xff]
    %v226 = vld [vmem:[#allocation5 + $0x378] sm:$0xff]
    %v227 = vld [vmem:[#allocation5 + $0x380] sm:$0xff]
    %v228 = vld [vmem:[#allocation5 + $0x388] sm:$0xff]
    %v229 = vld [vmem:[#allocation5 + $0x390] sm:$0xff]
    %v230 = vld [vmem:[#allocation5 + $0x398] sm:$0xff]
    %v231 = vld [vmem:[#allocation5 + $0x3a0] sm:$0xff]
    %v232 = vld [vmem:[#allocation5 + $0x3a8] sm:$0xff]
    %v233 = vld [vmem:[#allocation5 + $0x3b0] sm:$0xff]
    %v234 = vld [vmem:[#allocation5 + $0x3b8] sm:$0xff]
    %v235 = vld [vmem:[#allocation5 + $0x3c0] sm:$0xff]
    %v236 = vld [vmem:[#allocation5 + $0x3c8] sm:$0xff]
    %v237 = vld [vmem:[#allocation5 + $0x3d0] sm:$0xff]
    %v238 = vld [vmem:[#allocation5 + $0x3d8] sm:$0xff]
    %v239 = vld [vmem:[#allocation5 + $0x3e0] sm:$0xff]
    %v240 = vld [vmem:[#allocation5 + $0x3e8] sm:$0xff]
    %v241 = vld [vmem:[#allocation5 + $0x3f0] sm:$0xff]
    %v242 = vld [vmem:[#allocation5 + $0x3f8] sm:$0xff]
    %v243 = vld [vmem:[#allocation5 + $0x400] sm:$0xff]
    %v244 = vld [vmem:[#allocation5 + $0x408] sm:$0xff]
    %v245 = vld [vmem:[#allocation5 + $0x410] sm:$0xff]
    %v246 = vld [vmem:[#allocation5 + $0x418] sm:$0xff]
    %v247 = vld [vmem:[#allocation5 + $0x420] sm:$0xff]
    %v248 = vld [vmem:[#allocation5 + $0x428] sm:$0xff]
    %v249 = vld [vmem:[#allocation5 + $0x430] sm:$0xff]
    %v250 = vld [vmem:[#allocation5 + $0x438] sm:$0xff]
    %v251 = vld [vmem:[#allocation5 + $0x440] sm:$0xff]
    %v252 = vld [vmem:[#allocation5 + $0x448] sm:$0xff]
    %v253 = vld [vmem:[#allocation5 + $0x450] sm:$0xff]
    %v254 = vld [vmem:[#allocation5 + $0x458] sm:$0xff]
    %v255 = vld [vmem:[#allocation5 + $0x460] sm:$0xff]
    %v256 = vld [vmem:[#allocation5 + $0x468] sm:$0xff]
    %v257 = vld [vmem:[#allocation5 + $0x470] sm:$0xff]
    %v258 = vld [vmem:[#allocation5 + $0x478] sm:$0xff]
    %v259 = vld [vmem:[#allocation5 + $0x480] sm:$0xff]
    %v260 = vld [vmem:[#allocation5 + $0x488] sm:$0xff]
    %v261 = vld [vmem:[#allocation5 + $0x490] sm:$0xff]
    %v262 = vld [vmem:[#allocation5 + $0x498] sm:$0xff]
    %v263 = vld [vmem:[#allocation5 + $0x4a0] sm:$0xff]
    %v264 = vld [vmem:[#allocation5 + $0x4a8] sm:$0xff]
    %v265 = vld [vmem:[#allocation5 + $0x4b0] sm:$0xff]
    %v266 = vld [vmem:[#allocation5 + $0x4b8] sm:$0xff]
    %v267 = vld [vmem:[#allocation5 + $0x4c0] sm:$0xff]
    %v268 = vld [vmem:[#allocation5 + $0x4c8] sm:$0xff]
    %v269 = vld [vmem:[#allocation5 + $0x4d0] sm:$0xff]
    %v270 = vld [vmem:[#allocation5 + $0x4d8] sm:$0xff]
    %v271 = vld [vmem:[#allocation5 + $0x4e0] sm:$0xff]
    %v272 = vld [vmem:[#allocation5 + $0x4e8] sm:$0xff]
    %v273 = vld [vmem:[#allocation5 + $0x4f0] sm:$0xff]
    %v274 = vld [vmem:[#allocation5 + $0x4f8] sm:$0xff]
    %v275 = vld [vmem:[#allocation5 + $0x500] sm:$0xff]
    %v276 = vld [vmem:[#allocation5 + $0x508] sm:$0xff]
    %v277 = vld [vmem:[#allocation5 + $0x510] sm:$0xff]
    %v278 = vld [vmem:[#allocation5 + $0x518] sm:$0xff]
    %v279 = vld [vmem:[#allocation5 + $0x520] sm:$0xff]
    %v280 = vld [vmem:[#allocation5 + $0x528] sm:$0xff]
    %v281 = vld [vmem:[#allocation5 + $0x530] sm:$0xff]
    %v282 = vld [vmem:[#allocation5 + $0x538] sm:$0xff]
    %v283 = vld [vmem:[#allocation5 + $0x540] sm:$0xff]
    %v284 = vld [vmem:[#allocation5 + $0x548] sm:$0xff]
    %v285 = vld [vmem:[#allocation5 + $0x550] sm:$0xff]
    %v286 = vld [vmem:[#allocation5 + $0x558] sm:$0xff]
    %v287 = vld [vmem:[#allocation5 + $0x560] sm:$0xff]
    %v288 = vld [vmem:[#allocation5 + $0x568] sm:$0xff]
    %v289 = vld [vmem:[#allocation5 + $0x570] sm:$0xff]
    %v290 = vld [vmem:[#allocation5 + $0x578] sm:$0xff]
    %v291 = vld [vmem:[#allocation5 + $0x580] sm:$0xff]
    %v292 = vld [vmem:[#allocation5 + $0x588] sm:$0xff]
    %v293 = vld [vmem:[#allocation5 + $0x590] sm:$0xff]
    %v294 = vld [vmem:[#allocation5 + $0x598] sm:$0xff]
    %v295 = vld [vmem:[#allocation5 + $0x5a0] sm:$0xff]
    %v296 = vld [vmem:[#allocation5 + $0x5a8] sm:$0xff]
    %v297 = vld [vmem:[#allocation5 + $0x5b0] sm:$0xff]
    %v298 = vld [vmem:[#allocation5 + $0x5b8] sm:$0xff]
    %v299 = vld [vmem:[#allocation5 + $0x5c0] sm:$0xff]
    %v300 = vld [vmem:[#allocation5 + $0x5c8] sm:$0xff]
    %v301 = vld [vmem:[#allocation5 + $0x5d0] sm:$0xff]
    %v302 = vld [vmem:[#allocation5 + $0x5d8] sm:$0xff]
    %v303 = vld [vmem:[#allocation5 + $0x5e0] sm:$0xff]
    %v304 = vld [vmem:[#allocation5 + $0x5e8] sm:$0xff]
    %v305 = vld [vmem:[#allocation5 + $0x5f0] sm:$0xff]
    %v306 = vld [vmem:[#allocation5 + $0x5f8] sm:$0xff]
    %v307 = vld [vmem:[#allocation5 + $0x600] sm:$0xff]
    %v308 = vld [vmem:[#allocation5 + $0x608] sm:$0xff]
    %v309 = vld [vmem:[#allocation5 + $0x610] sm:$0xff]
    %v310 = vld [vmem:[#allocation5 + $0x618] sm:$0xff]
    %v311 = vld [vmem:[#allocation5 + $0x620] sm:$0xff]
    %v312 = vld [vmem:[#allocation5 + $0x628] sm:$0xff]
    %v313 = vld [vmem:[#allocation5 + $0x630] sm:$0xff]
    %v314 = vld [vmem:[#allocation5 + $0x638] sm:$0xff]
    %v315 = vld [vmem:[#allocation5 + $0x640] sm:$0xff]
    %v316 = vld [vmem:[#allocation5 + $0x648] sm:$0xff]
    %v317 = vld [vmem:[#allocation5 + $0x650] sm:$0xff]
    %v318 = vld [vmem:[#allocation5 + $0x658] sm:$0xff]
    %v319 = vld [vmem:[#allocation5 + $0x660] sm:$0xff]
    %v320 = vld [vmem:[#allocation5 + $0x668] sm:$0xff]
    %v321 = vld [vmem:[#allocation5 + $0x670] sm:$0xff]
    %v322 = vld [vmem:[#allocation5 + $0x678] sm:$0xff]
    %v323 = vld [vmem:[#allocation5 + $0x680] sm:$0xff]
    %v324 = vld [vmem:[#allocation5 + $0x688] sm:$0xff]
    %v325 = vld [vmem:[#allocation5 + $0x690] sm:$0xff]
    %v326 = vld [vmem:[#allocation5 + $0x698] sm:$0xff]
    %v327 = vld [vmem:[#allocation5 + $0x6a0] sm:$0xff]
    %v328 = vld [vmem:[#allocation5 + $0x6a8] sm:$0xff]
    %v329 = vld [vmem:[#allocation5 + $0x6b0] sm:$0xff]
    %v330 = vld [vmem:[#allocation5 + $0x6b8] sm:$0xff]
    %v331 = vld [vmem:[#allocation5 + $0x6c0] sm:$0xff]
    %v332 = vld [vmem:[#allocation5 + $0x6c8] sm:$0xff]
    %v333 = vld [vmem:[#allocation5 + $0x6d0] sm:$0xff]
    %v334 = vld [vmem:[#allocation5 + $0x6d8] sm:$0xff]
    %v335 = vld [vmem:[#allocation5 + $0x6e0] sm:$0xff]
    %v336 = vld [vmem:[#allocation5 + $0x6e8] sm:$0xff]
    %v337 = vld [vmem:[#allocation5 + $0x6f0] sm:$0xff]
    %v338 = vld [vmem:[#allocation5 + $0x6f8] sm:$0xff]
    %v339 = vld [vmem:[#allocation5 + $0x700] sm:$0xff]
    %v340 = vld [vmem:[#allocation5 + $0x708] sm:$0xff]
    %v341 = vld [vmem:[#allocation5 + $0x710] sm:$0xff]
    %v342 = vld [vmem:[#allocation5 + $0x718] sm:$0xff]
    %v343 = vld [vmem:[#allocation5 + $0x720] sm:$0xff]
    %v344 = vld [vmem:[#allocation5 + $0x728] sm:$0xff]
    %v345 = vld [vmem:[#allocation5 + $0x730] sm:$0xff]
    %v346 = vld [vmem:[#allocation5 + $0x738] sm:$0xff]
    %v347 = vld [vmem:[#allocation5 + $0x740] sm:$0xff]
    %v348 = vld [vmem:[#allocation5 + $0x748] sm:$0xff]
    %v349 = vld [vmem:[#allocation5 + $0x750] sm:$0xff]
    %v350 = vld [vmem:[#allocation5 + $0x758] sm:$0xff]
    %v351 = vld [vmem:[#allocation5 + $0x760] sm:$0xff]
    %v352 = vld [vmem:[#allocation5 + $0x768] sm:$0xff]
    %v353 = vld [vmem:[#allocation5 + $0x770] sm:$0xff]
    %v354 = vld [vmem:[#allocation5 + $0x778] sm:$0xff]
    %v355 = vld [vmem:[#allocation5 + $0x780] sm:$0xff]
    %v356 = vld [vmem:[#allocation5 + $0x788] sm:$0xff]
    %v357 = vld [vmem:[#allocation5 + $0x790] sm:$0xff]
    %v358 = vld [vmem:[#allocation5 + $0x798] sm:$0xff]
    %v359 = vld [vmem:[#allocation5 + $0x7a0] sm:$0xff]
    %v360 = vld [vmem:[#allocation5 + $0x7a8] sm:$0xff]
    %v361 = vld [vmem:[#allocation5 + $0x7b0] sm:$0xff]
    %v362 = vld [vmem:[#allocation5 + $0x7b8] sm:$0xff]
    %v363 = vld [vmem:[#allocation5 + $0x7c0] sm:$0xff]
    %v364 = vld [vmem:[#allocation5 + $0x7c8] sm:$0xff]
    %v365 = vld [vmem:[#allocation5 + $0x7d0] sm:$0xff]
    %v366 = vld [vmem:[#allocation5 + $0x7d8] sm:$0xff]
    %v367 = vld [vmem:[#allocation5 + $0x7e0] sm:$0xff]
    %v368 = vld [vmem:[#allocation5 + $0x7e8] sm:$0xff]
    %v369 = vld [vmem:[#allocation5 + $0x7f0] sm:$0xff]
    %v370 = vld [vmem:[#allocation5 + $0x7f8] sm:$0xff]
    %v371 = vld [vmem:[#allocation5 + $0x800] sm:$0xff]
    %v372 = vld [vmem:[#allocation5 + $0x808] sm:$0xff]
    %v373 = vld [vmem:[#allocation5 + $0x810] sm:$0xff]
    %v374 = vld [vmem:[#allocation5 + $0x818] sm:$0xff]
    %v375 = vld [vmem:[#allocation5 + $0x820] sm:$0xff]
    %v376 = vld [vmem:[#allocation5 + $0x828] sm:$0xff]
    %v377 = vld [vmem:[#allocation5 + $0x830] sm:$0xff]
    %v378 = vld [vmem:[#allocation5 + $0x838] sm:$0xff]
    %v379 = vld [vmem:[#allocation5 + $0x840] sm:$0xff]
    %v380 = vld [vmem:[#allocation5 + $0x848] sm:$0xff]
    %v381 = vld [vmem:[#allocation5 + $0x850] sm:$0xff]
    %v382 = vld [vmem:[#allocation5 + $0x858] sm:$0xff]
    %v383 = vld [vmem:[#allocation5 + $0x860] sm:$0xff]
    %v384 = vld [vmem:[#allocation5 + $0x868] sm:$0xff]
    %v385 = vld [vmem:[#allocation5 + $0x870] sm:$0xff]
    %v386 = vld [vmem:[#allocation5 + $0x878] sm:$0xff]
    %v387 = vld [vmem:[#allocation5 + $0x880] sm:$0xff]
    %v388 = vld [vmem:[#allocation5 + $0x888] sm:$0xff]
    %v389 = vld [vmem:[#allocation5 + $0x890] sm:$0xff]
    %v390 = vld [vmem:[#allocation5 + $0x898] sm:$0xff]
    %v391 = vld [vmem:[#allocation5 + $0x8a0] sm:$0xff]
    %v392 = vld [vmem:[#allocation5 + $0x8a8] sm:$0xff]
    %v393 = vld [vmem:[#allocation5 + $0x8b0] sm:$0xff]
    %v394 = vld [vmem:[#allocation5 + $0x8b8] sm:$0xff]
    %v395 = vld [vmem:[#allocation5 + $0x8c0] sm:$0xff]
    %v396 = vld [vmem:[#allocation5 + $0x8c8] sm:$0xff]
    %v397 = vld [vmem:[#allocation5 + $0x8d0] sm:$0xff]
    %v398 = vld [vmem:[#allocation5 + $0x8d8] sm:$0xff]
    %v399 = vld [vmem:[#allocation5 + $0x8e0] sm:$0xff]
    %v400 = vld [vmem:[#allocation5 + $0x8e8] sm:$0xff]
    %v401 = vld [vmem:[#allocation5 + $0x8f0] sm:$0xff]
    %v402 = vld [vmem:[#allocation5 + $0x8f8] sm:$0xff]
    %v403 = vld [vmem:[#allocation5 + $0x900] sm:$0xff]
    %v404 = vld [vmem:[#allocation5 + $0x908] sm:$0xff]
    %v405 = vld [vmem:[#allocation5 + $0x910] sm:$0xff]
    %v406 = vld [vmem:[#allocation5 + $0x918] sm:$0xff]
    %v407 = vld [vmem:[#allocation5 + $0x920] sm:$0xff]
    %v408 = vld [vmem:[#allocation5 + $0x928] sm:$0xff]
    %v409 = vld [vmem:[#allocation5 + $0x930] sm:$0xff]
    %v410 = vld [vmem:[#allocation5 + $0x938] sm:$0xff]
    %v411 = vld [vmem:[#allocation5 + $0x940] sm:$0xff]
    %v412 = vld [vmem:[#allocation5 + $0x948] sm:$0xff]
    %v413 = vld [vmem:[#allocation5 + $0x950] sm:$0xff]
    %v414 = vld [vmem:[#allocation5 + $0x958] sm:$0xff]
    %v415 = vld [vmem:[#allocation5 + $0x960] sm:$0xff]
    %v416 = vld [vmem:[#allocation5 + $0x968] sm:$0xff]
    %v417 = vld [vmem:[#allocation5 + $0x970] sm:$0xff]
    %v418 = vld [vmem:[#allocation5 + $0x978] sm:$0xff]
    %v419 = vld [vmem:[#allocation5 + $0x980] sm:$0xff]
    %v420 = vld [vmem:[#allocation5 + $0x988] sm:$0xff]
    %v421 = vld [vmem:[#allocation5 + $0x990] sm:$0xff]
    %v422 = vld [vmem:[#allocation5 + $0x998] sm:$0xff]
    %v423 = vld [vmem:[#allocation5 + $0x9a0] sm:$0xff]
    %v424 = vld [vmem:[#allocation5 + $0x9a8] sm:$0xff]
    %v425 = vld [vmem:[#allocation5 + $0x9b0] sm:$0xff]
    %v426 = vld [vmem:[#allocation5 + $0x9b8] sm:$0xff]
    %v427 = vld [vmem:[#allocation5 + $0x9c0] sm:$0xff]
    %v428 = vld [vmem:[#allocation5 + $0x9c8] sm:$0xff]
    %v429 = vld [vmem:[#allocation5 + $0x9d0] sm:$0xff]
    %v430 = vld [vmem:[#allocation5 + $0x9d8] sm:$0xff]
    %v431 = vld [vmem:[#allocation5 + $0x9e0] sm:$0xff]
    %v432 = vld [vmem:[#allocation5 + $0x9e8] sm:$0xff]
    %v433 = vld [vmem:[#allocation5 + $0x9f0] sm:$0xff]
    %v434 = vld [vmem:[#allocation5 + $0x9f8] sm:$0xff]
    %v435 = vld [vmem:[#allocation5 + $0xa00] sm:$0xff]
    %v436 = vld [vmem:[#allocation5 + $0xa08] sm:$0xff]
    %v437 = vld [vmem:[#allocation5 + $0xa10] sm:$0xff]
    %v438 = vld [vmem:[#allocation5 + $0xa18] sm:$0xff]
    %v439 = vld [vmem:[#allocation5 + $0xa20] sm:$0xff]
    %v440 = vld [vmem:[#allocation5 + $0xa28] sm:$0xff]
    %v441 = vld [vmem:[#allocation5 + $0xa30] sm:$0xff]
    %v442 = vld [vmem:[#allocation5 + $0xa38] sm:$0xff]
    %v443 = vld [vmem:[#allocation5 + $0xa40] sm:$0xff]
    %v444 = vld [vmem:[#allocation5 + $0xa48] sm:$0xff]
    %v445 = vld [vmem:[#allocation5 + $0xa50] sm:$0xff]
    %v446 = vld [vmem:[#allocation5 + $0xa58] sm:$0xff]
    %v447 = vld [vmem:[#allocation5 + $0xa60] sm:$0xff]
    %v448 = vld [vmem:[#allocation5 + $0xa68] sm:$0xff]
    %v449 = vld [vmem:[#allocation5 + $0xa70] sm:$0xff]
    %v450 = vld [vmem:[#allocation5 + $0xa78] sm:$0xff]
    %v451 = vld [vmem:[#allocation5 + $0xa80] sm:$0xff]
    %v452 = vld [vmem:[#allocation5 + $0xa88] sm:$0xff]
    %v453 = vld [vmem:[#allocation5 + $0xa90] sm:$0xff]
    %v454 = vld [vmem:[#allocation5 + $0xa98] sm:$0xff]
    %v455 = vld [vmem:[#allocation5 + $0xaa0] sm:$0xff]
    %v456 = vld [vmem:[#allocation5 + $0xaa8] sm:$0xff]
    %v457 = vld [vmem:[#allocation5 + $0xab0] sm:$0xff]
    %v458 = vld [vmem:[#allocation5 + $0xab8] sm:$0xff]
    %v459 = vld [vmem:[#allocation5 + $0xac0] sm:$0xff]
    %v460 = vld [vmem:[#allocation5 + $0xac8] sm:$0xff]
    %v461 = vld [vmem:[#allocation5 + $0xad0] sm:$0xff]
    %v462 = vld [vmem:[#allocation5 + $0xad8] sm:$0xff]
    %v463 = vld [vmem:[#allocation5 + $0xae0] sm:$0xff]
    %v464 = vld [vmem:[#allocation5 + $0xae8] sm:$0xff]
    %v465 = vld [vmem:[#allocation5 + $0xaf0] sm:$0xff]
    %v466 = vld [vmem:[#allocation5 + $0xaf8] sm:$0xff]
    %v467 = vld [vmem:[#allocation5 + $0xb00] sm:$0xff]
    %v468 = vld [vmem:[#allocation5 + $0xb08] sm:$0xff]
    %v469 = vld [vmem:[#allocation5 + $0xb10] sm:$0xff]
    %v470 = vld [vmem:[#allocation5 + $0xb18] sm:$0xff]
    %v471 = vld [vmem:[#allocation5 + $0xb20] sm:$0xff]
    %v472 = vld [vmem:[#allocation5 + $0xb28] sm:$0xff]
    %v473 = vld [vmem:[#allocation5 + $0xb30] sm:$0xff]
    %v474 = vld [vmem:[#allocation5 + $0xb38] sm:$0xff]
    %v475 = vld [vmem:[#allocation5 + $0xb40] sm:$0xff]
    %v476 = vld [vmem:[#allocation5 + $0xb48] sm:$0xff]
    %v477 = vld [vmem:[#allocation5 + $0xb50] sm:$0xff]
    %v478 = vld [vmem:[#allocation5 + $0xb58] sm:$0xff]
    %v479 = vld [vmem:[#allocation5 + $0xb60] sm:$0xff]
    %v480 = vld [vmem:[#allocation5 + $0xb68] sm:$0xff]
    %v481 = vld [vmem:[#allocation5 + $0xb70] sm:$0xff]
    %v482 = vld [vmem:[#allocation5 + $0xb78] sm:$0xff]
    %v483 = vld [vmem:[#allocation5 + $0xb80] sm:$0xff]
    %v484 = vld [vmem:[#allocation5 + $0xb88] sm:$0xff]
    %v485 = vld [vmem:[#allocation5 + $0xb90] sm:$0xff]
    %v486 = vld [vmem:[#allocation5 + $0xb98] sm:$0xff]
    %v487 = vld [vmem:[#allocation5 + $0xba0] sm:$0xff]
    %v488 = vld [vmem:[#allocation5 + $0xba8] sm:$0xff]
    %v489 = vld [vmem:[#allocation5 + $0xbb0] sm:$0xff]
    %v490 = vld [vmem:[#allocation5 + $0xbb8] sm:$0xff]
    %v491 = vld [vmem:[#allocation5 + $0xbc0] sm:$0xff]
    %v492 = vld [vmem:[#allocation5 + $0xbc8] sm:$0xff]
    %v493 = vld [vmem:[#allocation5 + $0xbd0] sm:$0xff]
    %v494 = vld [vmem:[#allocation5 + $0xbd8] sm:$0xff]
    %v495 = vld [vmem:[#allocation5 + $0xbe0] sm:$0xff]
    %v496 = vld [vmem:[#allocation5 + $0xbe8] sm:$0xff]
    %v497 = vld [vmem:[#allocation5 + $0xbf0] sm:$0xff]
    %v498 = vld [vmem:[#allocation5 + $0xbf8] sm:$0xff]
    %v499 = vld [vmem:[#allocation7] sm:$0xff]
    %v501 = vlaneseq
    %v502 = vshrl.u32 %v501, 7
    %v503 = vsub.s32 0, %v502
    %v504 = vrot.slane %v499, %v503
    %v505 = vlaneseq
    %v506 = vshrl.u32 %v505, 7
    %v507 = vsub.s32 1, %v506
    %v508 = vrot.slane %v499, %v507
    %v509 = vlaneseq
    %v510 = vshrl.u32 %v509, 7
    %v511 = vsub.s32 2, %v510
    %v512 = vrot.slane %v499, %v511
    %v513 = vlaneseq
    %v514 = vshrl.u32 %v513, 7
    %v515 = vsub.s32 3, %v514
    %v516 = vrot.slane %v499, %v515
    %v517 = vlaneseq
    %v518 = vshrl.u32 %v517, 7
    %v519 = vsub.s32 4, %v518
    %v520 = vrot.slane %v499, %v519
    %v521 = vlaneseq
    %v522 = vshrl.u32 %v521, 7
    %v523 = vsub.s32 5, %v522
    %v524 = vrot.slane %v499, %v523
    %v525 = vlaneseq
    %v526 = vshrl.u32 %v525, 7
    %v527 = vsub.s32 6, %v526
    %v528 = vrot.slane %v499, %v527
    %v529 = vlaneseq
    %v530 = vshrl.u32 %v529, 7
    %v531 = vsub.s32 7, %v530
    %v532 = vrot.slane %v499, %v531
    %v544 = vunpack.c.l.b16 %v112
    %v545 = vunpack.c.h.b16 %v112
    %v546 = vunpack.c.l.b16 %v113
    %v547 = vunpack.c.h.b16 %v113
    %v548 = vunpack.c.l.b16 %v114
    %v549 = vunpack.c.h.b16 %v114
    %v550 = vpack.c.b16 %v544, %v544
    %v551 = vpack.c.b16 %v545, %v545
    %v552 = vpack.c.b16 %v546, %v546
    %v553 = vpack.c.b16 %v547, %v547
    %v554 = vpack.c.b16 %v548, %v548
    %v555 = vpack.c.b16 %v549, %v549
    %v946 = vunpack.c.l.b16 %v115
    %v947 = vunpack.c.h.b16 %v115
    %v948 = vunpack.c.l.b16 %v116
    %v949 = vunpack.c.h.b16 %v116
    %v950 = vunpack.c.l.b16 %v117
    %v951 = vunpack.c.h.b16 %v117
    %v952 = vunpack.c.l.b16 %v118
    %v953 = vunpack.c.h.b16 %v118
    %v954 = vunpack.c.l.b16 %v119
    %v955 = vunpack.c.h.b16 %v119
    %v956 = vunpack.c.l.b16 %v120
    %v957 = vunpack.c.h.b16 %v120
    %v958 = vunpack.c.l.b16 %v121
    %v959 = vunpack.c.h.b16 %v121
    %v960 = vunpack.c.l.b16 %v122
    %v961 = vunpack.c.h.b16 %v122
    %v962 = vunpack.c.l.b16 %v123
    %v963 = vunpack.c.h.b16 %v123
    %v964 = vunpack.c.l.b16 %v124
    %v965 = vunpack.c.h.b16 %v124
    %v966 = vunpack.c.l.b16 %v125
    %v967 = vunpack.c.h.b16 %v125
    %v968 = vunpack.c.l.b16 %v126
    %v969 = vunpack.c.h.b16 %v126
    %v970 = vunpack.c.l.b16 %v127
    %v971 = vunpack.c.h.b16 %v127
    %v972 = vunpack.c.l.b16 %v128
    %v973 = vunpack.c.h.b16 %v128
    %v974 = vunpack.c.l.b16 %v129
    %v975 = vunpack.c.h.b16 %v129
    %v976 = vunpack.c.l.b16 %v130
    %v977 = vunpack.c.h.b16 %v130
    %v978 = vunpack.c.l.b16 %v131
    %v979 = vunpack.c.h.b16 %v131
    %v980 = vunpack.c.l.b16 %v132
    %v981 = vunpack.c.h.b16 %v132
    %v982 = vunpack.c.l.b16 %v133
    %v983 = vunpack.c.h.b16 %v133
    %v984 = vunpack.c.l.b16 %v134
    %v985 = vunpack.c.h.b16 %v134
    %v986 = vunpack.c.l.b16 %v135
    %v987 = vunpack.c.h.b16 %v135
    %v988 = vunpack.c.l.b16 %v136
    %v989 = vunpack.c.h.b16 %v136
    %v990 = vunpack.c.l.b16 %v137
    %v991 = vunpack.c.h.b16 %v137
    %v992 = vunpack.c.l.b16 %v138
    %v993 = vunpack.c.h.b16 %v138
    %v994 = vunpack.c.l.b16 %v139
    %v995 = vunpack.c.h.b16 %v139
    %v996 = vunpack.c.l.b16 %v140
    %v997 = vunpack.c.h.b16 %v140
    %v998 = vunpack.c.l.b16 %v141
    %v999 = vunpack.c.h.b16 %v141
    %v1000 = vunpack.c.l.b16 %v142
    %v1001 = vunpack.c.h.b16 %v142
    %v1002 = vunpack.c.l.b16 %v143
    %v1003 = vunpack.c.h.b16 %v143
    %v1004 = vunpack.c.l.b16 %v144
    %v1005 = vunpack.c.h.b16 %v144
    %v1006 = vunpack.c.l.b16 %v145
    %v1007 = vunpack.c.h.b16 %v145
    %v1008 = vunpack.c.l.b16 %v146
    %v1009 = vunpack.c.h.b16 %v146
    %v1010 = vunpack.c.l.b16 %v147
    %v1011 = vunpack.c.h.b16 %v147
    %v1012 = vunpack.c.l.b16 %v148
    %v1013 = vunpack.c.h.b16 %v148
    %v1014 = vunpack.c.l.b16 %v149
    %v1015 = vunpack.c.h.b16 %v149
    %v1016 = vunpack.c.l.b16 %v150
    %v1017 = vunpack.c.h.b16 %v150
    %v1018 = vunpack.c.l.b16 %v151
    %v1019 = vunpack.c.h.b16 %v151
    %v1020 = vunpack.c.l.b16 %v152
    %v1021 = vunpack.c.h.b16 %v152
    %v1022 = vunpack.c.l.b16 %v153
    %v1023 = vunpack.c.h.b16 %v153
    %v1024 = vunpack.c.l.b16 %v154
    %v1025 = vunpack.c.h.b16 %v154
    %v1026 = vunpack.c.l.b16 %v155
    %v1027 = vunpack.c.h.b16 %v155
    %v1028 = vunpack.c.l.b16 %v156
    %v1029 = vunpack.c.h.b16 %v156
    %v1030 = vunpack.c.l.b16 %v157
    %v1031 = vunpack.c.h.b16 %v157
    %v1032 = vunpack.c.l.b16 %v158
    %v1033 = vunpack.c.h.b16 %v158
    %v1034 = vunpack.c.l.b16 %v159
    %v1035 = vunpack.c.h.b16 %v159
    %v1036 = vunpack.c.l.b16 %v160
    %v1037 = vunpack.c.h.b16 %v160
    %v1038 = vunpack.c.l.b16 %v161
    %v1039 = vunpack.c.h.b16 %v161
    %v1040 = vunpack.c.l.b16 %v162
    %v1041 = vunpack.c.h.b16 %v162
    %v1042 = vunpack.c.l.b16 %v163
    %v1043 = vunpack.c.h.b16 %v163
    %v1044 = vunpack.c.l.b16 %v164
    %v1045 = vunpack.c.h.b16 %v164
    %v1046 = vunpack.c.l.b16 %v165
    %v1047 = vunpack.c.h.b16 %v165
    %v1048 = vunpack.c.l.b16 %v166
    %v1049 = vunpack.c.h.b16 %v166
    %v1050 = vunpack.c.l.b16 %v167
    %v1051 = vunpack.c.h.b16 %v167
    %v1052 = vunpack.c.l.b16 %v168
    %v1053 = vunpack.c.h.b16 %v168
    %v1054 = vunpack.c.l.b16 %v169
    %v1055 = vunpack.c.h.b16 %v169
    %v1056 = vunpack.c.l.b16 %v170
    %v1057 = vunpack.c.h.b16 %v170
    %v1058 = vunpack.c.l.b16 %v171
    %v1059 = vunpack.c.h.b16 %v171
    %v1060 = vunpack.c.l.b16 %v172
    %v1061 = vunpack.c.h.b16 %v172
    %v1062 = vunpack.c.l.b16 %v173
    %v1063 = vunpack.c.h.b16 %v173
    %v1064 = vunpack.c.l.b16 %v174
    %v1065 = vunpack.c.h.b16 %v174
    %v1066 = vunpack.c.l.b16 %v175
    %v1067 = vunpack.c.h.b16 %v175
    %v1068 = vunpack.c.l.b16 %v176
    %v1069 = vunpack.c.h.b16 %v176
    %v1070 = vunpack.c.l.b16 %v177
    %v1071 = vunpack.c.h.b16 %v177
    %v1072 = vunpack.c.l.b16 %v178
    %v1073 = vunpack.c.h.b16 %v178
    %v1074 = vunpack.c.l.b16 %v179
    %v1075 = vunpack.c.h.b16 %v179
    %v1076 = vunpack.c.l.b16 %v180
    %v1077 = vunpack.c.h.b16 %v180
    %v1078 = vunpack.c.l.b16 %v181
    %v1079 = vunpack.c.h.b16 %v181
    %v1080 = vunpack.c.l.b16 %v182
    %v1081 = vunpack.c.h.b16 %v182
    %v1082 = vunpack.c.l.b16 %v183
    %v1083 = vunpack.c.h.b16 %v183
    %v1084 = vunpack.c.l.b16 %v184
    %v1085 = vunpack.c.h.b16 %v184
    %v1086 = vunpack.c.l.b16 %v185
    %v1087 = vunpack.c.h.b16 %v185
    %v1088 = vunpack.c.l.b16 %v186
    %v1089 = vunpack.c.h.b16 %v186
    %v1090 = vunpack.c.l.b16 %v187
    %v1091 = vunpack.c.h.b16 %v187
    %v1092 = vunpack.c.l.b16 %v188
    %v1093 = vunpack.c.h.b16 %v188
    %v1094 = vunpack.c.l.b16 %v189
    %v1095 = vunpack.c.h.b16 %v189
    %v1096 = vunpack.c.l.b16 %v190
    %v1097 = vunpack.c.h.b16 %v190
    %v1098 = vunpack.c.l.b16 %v191
    %v1099 = vunpack.c.h.b16 %v191
    %v1100 = vunpack.c.l.b16 %v192
    %v1101 = vunpack.c.h.b16 %v192
    %v1102 = vunpack.c.l.b16 %v193
    %v1103 = vunpack.c.h.b16 %v193
    %v1104 = vunpack.c.l.b16 %v194
    %v1105 = vunpack.c.h.b16 %v194
    %v1106 = vunpack.c.l.b16 %v195
    %v1107 = vunpack.c.h.b16 %v195
    %v1108 = vunpack.c.l.b16 %v196
    %v1109 = vunpack.c.h.b16 %v196
    %v1110 = vunpack.c.l.b16 %v197
    %v1111 = vunpack.c.h.b16 %v197
    %v1112 = vunpack.c.l.b16 %v198
    %v1113 = vunpack.c.h.b16 %v198
    %v1114 = vunpack.c.l.b16 %v199
    %v1115 = vunpack.c.h.b16 %v199
    %v1116 = vunpack.c.l.b16 %v200
    %v1117 = vunpack.c.h.b16 %v200
    %v1118 = vunpack.c.l.b16 %v201
    %v1119 = vunpack.c.h.b16 %v201
    %v1120 = vunpack.c.l.b16 %v202
    %v1121 = vunpack.c.h.b16 %v202
    %v1122 = vunpack.c.l.b16 %v203
    %v1123 = vunpack.c.h.b16 %v203
    %v1124 = vunpack.c.l.b16 %v204
    %v1125 = vunpack.c.h.b16 %v204
    %v1126 = vunpack.c.l.b16 %v205
    %v1127 = vunpack.c.h.b16 %v205
    %v1128 = vunpack.c.l.b16 %v206
    %v1129 = vunpack.c.h.b16 %v206
    %v1130 = vunpack.c.l.b16 %v207
    %v1131 = vunpack.c.h.b16 %v207
    %v1132 = vunpack.c.l.b16 %v208
    %v1133 = vunpack.c.h.b16 %v208
    %v1134 = vunpack.c.l.b16 %v209
    %v1135 = vunpack.c.h.b16 %v209
    %v1136 = vunpack.c.l.b16 %v210
    %v1137 = vunpack.c.h.b16 %v210
    %v1138 = vunpack.c.l.b16 %v211
    %v1139 = vunpack.c.h.b16 %v211
    %v1140 = vunpack.c.l.b16 %v212
    %v1141 = vunpack.c.h.b16 %v212
    %v1142 = vunpack.c.l.b16 %v213
    %v1143 = vunpack.c.h.b16 %v213
    %v1144 = vunpack.c.l.b16 %v214
    %v1145 = vunpack.c.h.b16 %v214
    %v1146 = vunpack.c.l.b16 %v215
    %v1147 = vunpack.c.h.b16 %v215
    %v1148 = vunpack.c.l.b16 %v216
    %v1149 = vunpack.c.h.b16 %v216
    %v1150 = vunpack.c.l.b16 %v217
    %v1151 = vunpack.c.h.b16 %v217
    %v1152 = vunpack.c.l.b16 %v218
    %v1153 = vunpack.c.h.b16 %v218
    %v1154 = vunpack.c.l.b16 %v219
    %v1155 = vunpack.c.h.b16 %v219
    %v1156 = vunpack.c.l.b16 %v220
    %v1157 = vunpack.c.h.b16 %v220
    %v1158 = vunpack.c.l.b16 %v221
    %v1159 = vunpack.c.h.b16 %v221
    %v1160 = vunpack.c.l.b16 %v222
    %v1161 = vunpack.c.h.b16 %v222
    %v1162 = vunpack.c.l.b16 %v223
    %v1163 = vunpack.c.h.b16 %v223
    %v1164 = vunpack.c.l.b16 %v224
    %v1165 = vunpack.c.h.b16 %v224
    %v1166 = vunpack.c.l.b16 %v225
    %v1167 = vunpack.c.h.b16 %v225
    %v1168 = vunpack.c.l.b16 %v226
    %v1169 = vunpack.c.h.b16 %v226
    %v1170 = vunpack.c.l.b16 %v227
    %v1171 = vunpack.c.h.b16 %v227
    %v1172 = vunpack.c.l.b16 %v228
    %v1173 = vunpack.c.h.b16 %v228
    %v1174 = vunpack.c.l.b16 %v229
    %v1175 = vunpack.c.h.b16 %v229
    %v1176 = vunpack.c.l.b16 %v230
    %v1177 = vunpack.c.h.b16 %v230
    %v1178 = vunpack.c.l.b16 %v231
    %v1179 = vunpack.c.h.b16 %v231
    %v1180 = vunpack.c.l.b16 %v232
    %v1181 = vunpack.c.h.b16 %v232
    %v1182 = vunpack.c.l.b16 %v233
    %v1183 = vunpack.c.h.b16 %v233
    %v1184 = vunpack.c.l.b16 %v234
    %v1185 = vunpack.c.h.b16 %v234
    %v1186 = vunpack.c.l.b16 %v235
    %v1187 = vunpack.c.h.b16 %v235
    %v1188 = vunpack.c.l.b16 %v236
    %v1189 = vunpack.c.h.b16 %v236
    %v1190 = vunpack.c.l.b16 %v237
    %v1191 = vunpack.c.h.b16 %v237
    %v1192 = vunpack.c.l.b16 %v238
    %v1193 = vunpack.c.h.b16 %v238
    %v1194 = vunpack.c.l.b16 %v239
    %v1195 = vunpack.c.h.b16 %v239
    %v1196 = vunpack.c.l.b16 %v240
    %v1197 = vunpack.c.h.b16 %v240
    %v1198 = vunpack.c.l.b16 %v241
    %v1199 = vunpack.c.h.b16 %v241
    %v1200 = vunpack.c.l.b16 %v242
    %v1201 = vunpack.c.h.b16 %v242
    %v1202 = vunpack.c.l.b16 %v243
    %v1203 = vunpack.c.h.b16 %v243
    %v1204 = vunpack.c.l.b16 %v244
    %v1205 = vunpack.c.h.b16 %v244
    %v1206 = vunpack.c.l.b16 %v245
    %v1207 = vunpack.c.h.b16 %v245
    %v1208 = vunpack.c.l.b16 %v246
    %v1209 = vunpack.c.h.b16 %v246
    %v1210 = vunpack.c.l.b16 %v247
    %v1211 = vunpack.c.h.b16 %v247
    %v1212 = vunpack.c.l.b16 %v248
    %v1213 = vunpack.c.h.b16 %v248
    %v1214 = vunpack.c.l.b16 %v249
    %v1215 = vunpack.c.h.b16 %v249
    %v1216 = vunpack.c.l.b16 %v250
    %v1217 = vunpack.c.h.b16 %v250
    %v1218 = vunpack.c.l.b16 %v251
    %v1219 = vunpack.c.h.b16 %v251
    %v1220 = vunpack.c.l.b16 %v252
    %v1221 = vunpack.c.h.b16 %v252
    %v1222 = vunpack.c.l.b16 %v253
    %v1223 = vunpack.c.h.b16 %v253
    %v1224 = vunpack.c.l.b16 %v254
    %v1225 = vunpack.c.h.b16 %v254
    %v1226 = vunpack.c.l.b16 %v255
    %v1227 = vunpack.c.h.b16 %v255
    %v1228 = vunpack.c.l.b16 %v256
    %v1229 = vunpack.c.h.b16 %v256
    %v1230 = vunpack.c.l.b16 %v257
    %v1231 = vunpack.c.h.b16 %v257
    %v1232 = vunpack.c.l.b16 %v258
    %v1233 = vunpack.c.h.b16 %v258
    %v1234 = vunpack.c.l.b16 %v259
    %v1235 = vunpack.c.h.b16 %v259
    %v1236 = vunpack.c.l.b16 %v260
    %v1237 = vunpack.c.h.b16 %v260
    %v1238 = vunpack.c.l.b16 %v261
    %v1239 = vunpack.c.h.b16 %v261
    %v1240 = vunpack.c.l.b16 %v262
    %v1241 = vunpack.c.h.b16 %v262
    %v1242 = vunpack.c.l.b16 %v263
    %v1243 = vunpack.c.h.b16 %v263
    %v1244 = vunpack.c.l.b16 %v264
    %v1245 = vunpack.c.h.b16 %v264
    %v1246 = vunpack.c.l.b16 %v265
    %v1247 = vunpack.c.h.b16 %v265
    %v1248 = vunpack.c.l.b16 %v266
    %v1249 = vunpack.c.h.b16 %v266
    %v1250 = vunpack.c.l.b16 %v267
    %v1251 = vunpack.c.h.b16 %v267
    %v1252 = vunpack.c.l.b16 %v268
    %v1253 = vunpack.c.h.b16 %v268
    %v1254 = vunpack.c.l.b16 %v269
    %v1255 = vunpack.c.h.b16 %v269
    %v1256 = vunpack.c.l.b16 %v270
    %v1257 = vunpack.c.h.b16 %v270
    %v1258 = vunpack.c.l.b16 %v271
    %v1259 = vunpack.c.h.b16 %v271
    %v1260 = vunpack.c.l.b16 %v272
    %v1261 = vunpack.c.h.b16 %v272
    %v1262 = vunpack.c.l.b16 %v273
    %v1263 = vunpack.c.h.b16 %v273
    %v1264 = vunpack.c.l.b16 %v274
    %v1265 = vunpack.c.h.b16 %v274
    %v1266 = vunpack.c.l.b16 %v275
    %v1267 = vunpack.c.h.b16 %v275
    %v1268 = vunpack.c.l.b16 %v276
    %v1269 = vunpack.c.h.b16 %v276
    %v1270 = vunpack.c.l.b16 %v277
    %v1271 = vunpack.c.h.b16 %v277
    %v1272 = vunpack.c.l.b16 %v278
    %v1273 = vunpack.c.h.b16 %v278
    %v1274 = vunpack.c.l.b16 %v279
    %v1275 = vunpack.c.h.b16 %v279
    %v1276 = vunpack.c.l.b16 %v280
    %v1277 = vunpack.c.h.b16 %v280
    %v1278 = vunpack.c.l.b16 %v281
    %v1279 = vunpack.c.h.b16 %v281
    %v1280 = vunpack.c.l.b16 %v282
    %v1281 = vunpack.c.h.b16 %v282
    %v1282 = vunpack.c.l.b16 %v283
    %v1283 = vunpack.c.h.b16 %v283
    %v1284 = vunpack.c.l.b16 %v284
    %v1285 = vunpack.c.h.b16 %v284
    %v1286 = vunpack.c.l.b16 %v285
    %v1287 = vunpack.c.h.b16 %v285
    %v1288 = vunpack.c.l.b16 %v286
    %v1289 = vunpack.c.h.b16 %v286
    %v1290 = vunpack.c.l.b16 %v287
    %v1291 = vunpack.c.h.b16 %v287
    %v1292 = vunpack.c.l.b16 %v288
    %v1293 = vunpack.c.h.b16 %v288
    %v1294 = vunpack.c.l.b16 %v289
    %v1295 = vunpack.c.h.b16 %v289
    %v1296 = vunpack.c.l.b16 %v290
    %v1297 = vunpack.c.h.b16 %v290
    %v1298 = vunpack.c.l.b16 %v291
    %v1299 = vunpack.c.h.b16 %v291
    %v1300 = vunpack.c.l.b16 %v292
    %v1301 = vunpack.c.h.b16 %v292
    %v1302 = vunpack.c.l.b16 %v293
    %v1303 = vunpack.c.h.b16 %v293
    %v1304 = vunpack.c.l.b16 %v294
    %v1305 = vunpack.c.h.b16 %v294
    %v1306 = vunpack.c.l.b16 %v295
    %v1307 = vunpack.c.h.b16 %v295
    %v1308 = vunpack.c.l.b16 %v296
    %v1309 = vunpack.c.h.b16 %v296
    %v1310 = vunpack.c.l.b16 %v297
    %v1311 = vunpack.c.h.b16 %v297
    %v1312 = vunpack.c.l.b16 %v298
    %v1313 = vunpack.c.h.b16 %v298
    %v1314 = vunpack.c.l.b16 %v299
    %v1315 = vunpack.c.h.b16 %v299
    %v1316 = vunpack.c.l.b16 %v300
    %v1317 = vunpack.c.h.b16 %v300
    %v1318 = vunpack.c.l.b16 %v301
    %v1319 = vunpack.c.h.b16 %v301
    %v1320 = vunpack.c.l.b16 %v302
    %v1321 = vunpack.c.h.b16 %v302
    %v1322 = vunpack.c.l.b16 %v303
    %v1323 = vunpack.c.h.b16 %v303
    %v1324 = vunpack.c.l.b16 %v304
    %v1325 = vunpack.c.h.b16 %v304
    %v1326 = vunpack.c.l.b16 %v305
    %v1327 = vunpack.c.h.b16 %v305
    %v1328 = vunpack.c.l.b16 %v306
    %v1329 = vunpack.c.h.b16 %v306
    %v1330 = vunpack.c.l.b16 %v307
    %v1331 = vunpack.c.h.b16 %v307
    %v1332 = vunpack.c.l.b16 %v308
    %v1333 = vunpack.c.h.b16 %v308
    %v1334 = vunpack.c.l.b16 %v309
    %v1335 = vunpack.c.h.b16 %v309
    %v1336 = vunpack.c.l.b16 %v310
    %v1337 = vunpack.c.h.b16 %v310
    %v1338 = vunpack.c.l.b16 %v311
    %v1339 = vunpack.c.h.b16 %v311
    %v1340 = vunpack.c.l.b16 %v312
    %v1341 = vunpack.c.h.b16 %v312
    %v1342 = vunpack.c.l.b16 %v313
    %v1343 = vunpack.c.h.b16 %v313
    %v1344 = vunpack.c.l.b16 %v314
    %v1345 = vunpack.c.h.b16 %v314
    %v1346 = vunpack.c.l.b16 %v315
    %v1347 = vunpack.c.h.b16 %v315
    %v1348 = vunpack.c.l.b16 %v316
    %v1349 = vunpack.c.h.b16 %v316
    %v1350 = vunpack.c.l.b16 %v317
    %v1351 = vunpack.c.h.b16 %v317
    %v1352 = vunpack.c.l.b16 %v318
    %v1353 = vunpack.c.h.b16 %v318
    %v1354 = vunpack.c.l.b16 %v319
    %v1355 = vunpack.c.h.b16 %v319
    %v1356 = vunpack.c.l.b16 %v320
    %v1357 = vunpack.c.h.b16 %v320
    %v1358 = vunpack.c.l.b16 %v321
    %v1359 = vunpack.c.h.b16 %v321
    %v1360 = vunpack.c.l.b16 %v322
    %v1361 = vunpack.c.h.b16 %v322
    %v1362 = vunpack.c.l.b16 %v323
    %v1363 = vunpack.c.h.b16 %v323
    %v1364 = vunpack.c.l.b16 %v324
    %v1365 = vunpack.c.h.b16 %v324
    %v1366 = vunpack.c.l.b16 %v325
    %v1367 = vunpack.c.h.b16 %v325
    %v1368 = vunpack.c.l.b16 %v326
    %v1369 = vunpack.c.h.b16 %v326
    %v1370 = vunpack.c.l.b16 %v327
    %v1371 = vunpack.c.h.b16 %v327
    %v1372 = vunpack.c.l.b16 %v328
    %v1373 = vunpack.c.h.b16 %v328
    %v1374 = vunpack.c.l.b16 %v329
    %v1375 = vunpack.c.h.b16 %v329
    %v1376 = vunpack.c.l.b16 %v330
    %v1377 = vunpack.c.h.b16 %v330
    %v1378 = vunpack.c.l.b16 %v331
    %v1379 = vunpack.c.h.b16 %v331
    %v1380 = vunpack.c.l.b16 %v332
    %v1381 = vunpack.c.h.b16 %v332
    %v1382 = vunpack.c.l.b16 %v333
    %v1383 = vunpack.c.h.b16 %v333
    %v1384 = vunpack.c.l.b16 %v334
    %v1385 = vunpack.c.h.b16 %v334
    %v1386 = vunpack.c.l.b16 %v335
    %v1387 = vunpack.c.h.b16 %v335
    %v1388 = vunpack.c.l.b16 %v336
    %v1389 = vunpack.c.h.b16 %v336
    %v1390 = vunpack.c.l.b16 %v337
    %v1391 = vunpack.c.h.b16 %v337
    %v1392 = vunpack.c.l.b16 %v338
    %v1393 = vunpack.c.h.b16 %v338
    %v1394 = vunpack.c.l.b16 %v339
    %v1395 = vunpack.c.h.b16 %v339
    %v1396 = vunpack.c.l.b16 %v340
    %v1397 = vunpack.c.h.b16 %v340
    %v1398 = vunpack.c.l.b16 %v341
    %v1399 = vunpack.c.h.b16 %v341
    %v1400 = vunpack.c.l.b16 %v342
    %v1401 = vunpack.c.h.b16 %v342
    %v1402 = vunpack.c.l.b16 %v343
    %v1403 = vunpack.c.h.b16 %v343
    %v1404 = vunpack.c.l.b16 %v344
    %v1405 = vunpack.c.h.b16 %v344
    %v1406 = vunpack.c.l.b16 %v345
    %v1407 = vunpack.c.h.b16 %v345
    %v1408 = vunpack.c.l.b16 %v346
    %v1409 = vunpack.c.h.b16 %v346
    %v1410 = vunpack.c.l.b16 %v347
    %v1411 = vunpack.c.h.b16 %v347
    %v1412 = vunpack.c.l.b16 %v348
    %v1413 = vunpack.c.h.b16 %v348
    %v1414 = vunpack.c.l.b16 %v349
    %v1415 = vunpack.c.h.b16 %v349
    %v1416 = vunpack.c.l.b16 %v350
    %v1417 = vunpack.c.h.b16 %v350
    %v1418 = vunpack.c.l.b16 %v351
    %v1419 = vunpack.c.h.b16 %v351
    %v1420 = vunpack.c.l.b16 %v352
    %v1421 = vunpack.c.h.b16 %v352
    %v1422 = vunpack.c.l.b16 %v353
    %v1423 = vunpack.c.h.b16 %v353
    %v1424 = vunpack.c.l.b16 %v354
    %v1425 = vunpack.c.h.b16 %v354
    %v1426 = vunpack.c.l.b16 %v355
    %v1427 = vunpack.c.h.b16 %v355
    %v1428 = vunpack.c.l.b16 %v356
    %v1429 = vunpack.c.h.b16 %v356
    %v1430 = vunpack.c.l.b16 %v357
    %v1431 = vunpack.c.h.b16 %v357
    %v1432 = vunpack.c.l.b16 %v358
    %v1433 = vunpack.c.h.b16 %v358
    %v1434 = vunpack.c.l.b16 %v359
    %v1435 = vunpack.c.h.b16 %v359
    %v1436 = vunpack.c.l.b16 %v360
    %v1437 = vunpack.c.h.b16 %v360
    %v1438 = vunpack.c.l.b16 %v361
    %v1439 = vunpack.c.h.b16 %v361
    %v1440 = vunpack.c.l.b16 %v362
    %v1441 = vunpack.c.h.b16 %v362
    %v1442 = vunpack.c.l.b16 %v363
    %v1443 = vunpack.c.h.b16 %v363
    %v1444 = vunpack.c.l.b16 %v364
    %v1445 = vunpack.c.h.b16 %v364
    %v1446 = vunpack.c.l.b16 %v365
    %v1447 = vunpack.c.h.b16 %v365
    %v1448 = vunpack.c.l.b16 %v366
    %v1449 = vunpack.c.h.b16 %v366
    %v1450 = vunpack.c.l.b16 %v367
    %v1451 = vunpack.c.h.b16 %v367
    %v1452 = vunpack.c.l.b16 %v368
    %v1453 = vunpack.c.h.b16 %v368
    %v1454 = vunpack.c.l.b16 %v369
    %v1455 = vunpack.c.h.b16 %v369
    %v1456 = vunpack.c.l.b16 %v370
    %v1457 = vunpack.c.h.b16 %v370
    %v1458 = vunpack.c.l.b16 %v371
    %v1459 = vunpack.c.h.b16 %v371
    %v1460 = vunpack.c.l.b16 %v372
    %v1461 = vunpack.c.h.b16 %v372
    %v1462 = vunpack.c.l.b16 %v373
    %v1463 = vunpack.c.h.b16 %v373
    %v1464 = vunpack.c.l.b16 %v374
    %v1465 = vunpack.c.h.b16 %v374
    %v1466 = vunpack.c.l.b16 %v375
    %v1467 = vunpack.c.h.b16 %v375
    %v1468 = vunpack.c.l.b16 %v376
    %v1469 = vunpack.c.h.b16 %v376
    %v1470 = vunpack.c.l.b16 %v377
    %v1471 = vunpack.c.h.b16 %v377
    %v1472 = vunpack.c.l.b16 %v378
    %v1473 = vunpack.c.h.b16 %v378
    %v1474 = vunpack.c.l.b16 %v379
    %v1475 = vunpack.c.h.b16 %v379
    %v1476 = vunpack.c.l.b16 %v380
    %v1477 = vunpack.c.h.b16 %v380
    %v1478 = vunpack.c.l.b16 %v381
    %v1479 = vunpack.c.h.b16 %v381
    %v1480 = vunpack.c.l.b16 %v382
    %v1481 = vunpack.c.h.b16 %v382
    %v1482 = vunpack.c.l.b16 %v383
    %v1483 = vunpack.c.h.b16 %v383
    %v1484 = vunpack.c.l.b16 %v384
    %v1485 = vunpack.c.h.b16 %v384
    %v1486 = vunpack.c.l.b16 %v385
    %v1487 = vunpack.c.h.b16 %v385
    %v1488 = vunpack.c.l.b16 %v386
    %v1489 = vunpack.c.h.b16 %v386
    %v1490 = vunpack.c.l.b16 %v387
    %v1491 = vunpack.c.h.b16 %v387
    %v1492 = vunpack.c.l.b16 %v388
    %v1493 = vunpack.c.h.b16 %v388
    %v1494 = vunpack.c.l.b16 %v389
    %v1495 = vunpack.c.h.b16 %v389
    %v1496 = vunpack.c.l.b16 %v390
    %v1497 = vunpack.c.h.b16 %v390
    %v1498 = vunpack.c.l.b16 %v391
    %v1499 = vunpack.c.h.b16 %v391
    %v1500 = vunpack.c.l.b16 %v392
    %v1501 = vunpack.c.h.b16 %v392
    %v1502 = vunpack.c.l.b16 %v393
    %v1503 = vunpack.c.h.b16 %v393
    %v1504 = vunpack.c.l.b16 %v394
    %v1505 = vunpack.c.h.b16 %v394
    %v1506 = vunpack.c.l.b16 %v395
    %v1507 = vunpack.c.h.b16 %v395
    %v1508 = vunpack.c.l.b16 %v396
    %v1509 = vunpack.c.h.b16 %v396
    %v1510 = vunpack.c.l.b16 %v397
    %v1511 = vunpack.c.h.b16 %v397
    %v1512 = vunpack.c.l.b16 %v398
    %v1513 = vunpack.c.h.b16 %v398
    %v1514 = vunpack.c.l.b16 %v399
    %v1515 = vunpack.c.h.b16 %v399
    %v1516 = vunpack.c.l.b16 %v400
    %v1517 = vunpack.c.h.b16 %v400
    %v1518 = vunpack.c.l.b16 %v401
    %v1519 = vunpack.c.h.b16 %v401
    %v1520 = vunpack.c.l.b16 %v402
    %v1521 = vunpack.c.h.b16 %v402
    %v1522 = vunpack.c.l.b16 %v403
    %v1523 = vunpack.c.h.b16 %v403
    %v1524 = vunpack.c.l.b16 %v404
    %v1525 = vunpack.c.h.b16 %v404
    %v1526 = vunpack.c.l.b16 %v405
    %v1527 = vunpack.c.h.b16 %v405
    %v1528 = vunpack.c.l.b16 %v406
    %v1529 = vunpack.c.h.b16 %v406
    %v1530 = vunpack.c.l.b16 %v407
    %v1531 = vunpack.c.h.b16 %v407
    %v1532 = vunpack.c.l.b16 %v408
    %v1533 = vunpack.c.h.b16 %v408
    %v1534 = vunpack.c.l.b16 %v409
    %v1535 = vunpack.c.h.b16 %v409
    %v1536 = vunpack.c.l.b16 %v410
    %v1537 = vunpack.c.h.b16 %v410
    %v1538 = vunpack.c.l.b16 %v411
    %v1539 = vunpack.c.h.b16 %v411
    %v1540 = vunpack.c.l.b16 %v412
    %v1541 = vunpack.c.h.b16 %v412
    %v1542 = vunpack.c.l.b16 %v413
    %v1543 = vunpack.c.h.b16 %v413
    %v1544 = vunpack.c.l.b16 %v414
    %v1545 = vunpack.c.h.b16 %v414
    %v1546 = vunpack.c.l.b16 %v415
    %v1547 = vunpack.c.h.b16 %v415
    %v1548 = vunpack.c.l.b16 %v416
    %v1549 = vunpack.c.h.b16 %v416
    %v1550 = vunpack.c.l.b16 %v417
    %v1551 = vunpack.c.h.b16 %v417
    %v1552 = vunpack.c.l.b16 %v418
    %v1553 = vunpack.c.h.b16 %v418
    %v1554 = vunpack.c.l.b16 %v419
    %v1555 = vunpack.c.h.b16 %v419
    %v1556 = vunpack.c.l.b16 %v420
    %v1557 = vunpack.c.h.b16 %v420
    %v1558 = vunpack.c.l.b16 %v421
    %v1559 = vunpack.c.h.b16 %v421
    %v1560 = vunpack.c.l.b16 %v422
    %v1561 = vunpack.c.h.b16 %v422
    %v1562 = vunpack.c.l.b16 %v423
    %v1563 = vunpack.c.h.b16 %v423
    %v1564 = vunpack.c.l.b16 %v424
    %v1565 = vunpack.c.h.b16 %v424
    %v1566 = vunpack.c.l.b16 %v425
    %v1567 = vunpack.c.h.b16 %v425
    %v1568 = vunpack.c.l.b16 %v426
    %v1569 = vunpack.c.h.b16 %v426
    %v1570 = vunpack.c.l.b16 %v427
    %v1571 = vunpack.c.h.b16 %v427
    %v1572 = vunpack.c.l.b16 %v428
    %v1573 = vunpack.c.h.b16 %v428
    %v1574 = vunpack.c.l.b16 %v429
    %v1575 = vunpack.c.h.b16 %v429
    %v1576 = vunpack.c.l.b16 %v430
    %v1577 = vunpack.c.h.b16 %v430
    %v1578 = vunpack.c.l.b16 %v431
    %v1579 = vunpack.c.h.b16 %v431
    %v1580 = vunpack.c.l.b16 %v432
    %v1581 = vunpack.c.h.b16 %v432
    %v1582 = vunpack.c.l.b16 %v433
    %v1583 = vunpack.c.h.b16 %v433
    %v1584 = vunpack.c.l.b16 %v434
    %v1585 = vunpack.c.h.b16 %v434
    %v1586 = vunpack.c.l.b16 %v435
    %v1587 = vunpack.c.h.b16 %v435
    %v1588 = vunpack.c.l.b16 %v436
    %v1589 = vunpack.c.h.b16 %v436
    %v1590 = vunpack.c.l.b16 %v437
    %v1591 = vunpack.c.h.b16 %v437
    %v1592 = vunpack.c.l.b16 %v438
    %v1593 = vunpack.c.h.b16 %v438
    %v1594 = vunpack.c.l.b16 %v439
    %v1595 = vunpack.c.h.b16 %v439
    %v1596 = vunpack.c.l.b16 %v440
    %v1597 = vunpack.c.h.b16 %v440
    %v1598 = vunpack.c.l.b16 %v441
    %v1599 = vunpack.c.h.b16 %v441
    %v1600 = vunpack.c.l.b16 %v442
    %v1601 = vunpack.c.h.b16 %v442
    %v1602 = vunpack.c.l.b16 %v443
    %v1603 = vunpack.c.h.b16 %v443
    %v1604 = vunpack.c.l.b16 %v444
    %v1605 = vunpack.c.h.b16 %v444
    %v1606 = vunpack.c.l.b16 %v445
    %v1607 = vunpack.c.h.b16 %v445
    %v1608 = vunpack.c.l.b16 %v446
    %v1609 = vunpack.c.h.b16 %v446
    %v1610 = vunpack.c.l.b16 %v447
    %v1611 = vunpack.c.h.b16 %v447
    %v1612 = vunpack.c.l.b16 %v448
    %v1613 = vunpack.c.h.b16 %v448
    %v1614 = vunpack.c.l.b16 %v449
    %v1615 = vunpack.c.h.b16 %v449
    %v1616 = vunpack.c.l.b16 %v450
    %v1617 = vunpack.c.h.b16 %v450
    %v1618 = vunpack.c.l.b16 %v451
    %v1619 = vunpack.c.h.b16 %v451
    %v1620 = vunpack.c.l.b16 %v452
    %v1621 = vunpack.c.h.b16 %v452
    %v1622 = vunpack.c.l.b16 %v453
    %v1623 = vunpack.c.h.b16 %v453
    %v1624 = vunpack.c.l.b16 %v454
    %v1625 = vunpack.c.h.b16 %v454
    %v1626 = vunpack.c.l.b16 %v455
    %v1627 = vunpack.c.h.b16 %v455
    %v1628 = vunpack.c.l.b16 %v456
    %v1629 = vunpack.c.h.b16 %v456
    %v1630 = vunpack.c.l.b16 %v457
    %v1631 = vunpack.c.h.b16 %v457
    %v1632 = vunpack.c.l.b16 %v458
    %v1633 = vunpack.c.h.b16 %v458
    %v1634 = vunpack.c.l.b16 %v459
    %v1635 = vunpack.c.h.b16 %v459
    %v1636 = vunpack.c.l.b16 %v460
    %v1637 = vunpack.c.h.b16 %v460
    %v1638 = vunpack.c.l.b16 %v461
    %v1639 = vunpack.c.h.b16 %v461
    %v1640 = vunpack.c.l.b16 %v462
    %v1641 = vunpack.c.h.b16 %v462
    %v1642 = vunpack.c.l.b16 %v463
    %v1643 = vunpack.c.h.b16 %v463
    %v1644 = vunpack.c.l.b16 %v464
    %v1645 = vunpack.c.h.b16 %v464
    %v1646 = vunpack.c.l.b16 %v465
    %v1647 = vunpack.c.h.b16 %v465
    %v1648 = vunpack.c.l.b16 %v466
    %v1649 = vunpack.c.h.b16 %v466
    %v1650 = vunpack.c.l.b16 %v467
    %v1651 = vunpack.c.h.b16 %v467
    %v1652 = vunpack.c.l.b16 %v468
    %v1653 = vunpack.c.h.b16 %v468
    %v1654 = vunpack.c.l.b16 %v469
    %v1655 = vunpack.c.h.b16 %v469
    %v1656 = vunpack.c.l.b16 %v470
    %v1657 = vunpack.c.h.b16 %v470
    %v1658 = vunpack.c.l.b16 %v471
    %v1659 = vunpack.c.h.b16 %v471
    %v1660 = vunpack.c.l.b16 %v472
    %v1661 = vunpack.c.h.b16 %v472
    %v1662 = vunpack.c.l.b16 %v473
    %v1663 = vunpack.c.h.b16 %v473
    %v1664 = vunpack.c.l.b16 %v474
    %v1665 = vunpack.c.h.b16 %v474
    %v1666 = vunpack.c.l.b16 %v475
    %v1667 = vunpack.c.h.b16 %v475
    %v1668 = vunpack.c.l.b16 %v476
    %v1669 = vunpack.c.h.b16 %v476
    %v1670 = vunpack.c.l.b16 %v477
    %v1671 = vunpack.c.h.b16 %v477
    %v1672 = vunpack.c.l.b16 %v478
    %v1673 = vunpack.c.h.b16 %v478
    %v1674 = vunpack.c.l.b16 %v479
    %v1675 = vunpack.c.h.b16 %v479
    %v1676 = vunpack.c.l.b16 %v480
    %v1677 = vunpack.c.h.b16 %v480
    %v1678 = vunpack.c.l.b16 %v481
    %v1679 = vunpack.c.h.b16 %v481
    %v1680 = vunpack.c.l.b16 %v482
    %v1681 = vunpack.c.h.b16 %v482
    %v1682 = vunpack.c.l.b16 %v483
    %v1683 = vunpack.c.h.b16 %v483
    %v1684 = vunpack.c.l.b16 %v484
    %v1685 = vunpack.c.h.b16 %v484
    %v1686 = vunpack.c.l.b16 %v485
    %v1687 = vunpack.c.h.b16 %v485
    %v1688 = vunpack.c.l.b16 %v486
    %v1689 = vunpack.c.h.b16 %v486
    %v1690 = vunpack.c.l.b16 %v487
    %v1691 = vunpack.c.h.b16 %v487
    %v1692 = vunpack.c.l.b16 %v488
    %v1693 = vunpack.c.h.b16 %v488
    %v1694 = vunpack.c.l.b16 %v489
    %v1695 = vunpack.c.h.b16 %v489
    %v1696 = vunpack.c.l.b16 %v490
    %v1697 = vunpack.c.h.b16 %v490
    %v1698 = vunpack.c.l.b16 %v491
    %v1699 = vunpack.c.h.b16 %v491
    %v1700 = vunpack.c.l.b16 %v492
    %v1701 = vunpack.c.h.b16 %v492
    %v1702 = vunpack.c.l.b16 %v493
    %v1703 = vunpack.c.h.b16 %v493
    %v1704 = vunpack.c.l.b16 %v494
    %v1705 = vunpack.c.h.b16 %v494
    %v1706 = vunpack.c.l.b16 %v495
    %v1707 = vunpack.c.h.b16 %v495
    %v1708 = vunpack.c.l.b16 %v496
    %v1709 = vunpack.c.h.b16 %v496
    %v1710 = vunpack.c.l.b16 %v497
    %v1711 = vunpack.c.h.b16 %v497
    %v1712 = vunpack.c.l.b16 %v498
    %v1713 = vunpack.c.h.b16 %v498
    %v1714 = vpack.c.b16 %v954, %v946
    %v1715 = vpack.c.b16 %v955, %v947
    %v1716 = vpack.c.b16 %v956, %v948
    %v1717 = vpack.c.b16 %v957, %v949
    %v1718 = vpack.c.b16 %v958, %v950
    %v1719 = vpack.c.b16 %v959, %v951
    %v1720 = vpack.c.b16 %v960, %v952
    %v1721 = vpack.c.b16 %v961, %v953
    %v1722 = vpack.c.b16 %v970, %v962
    %v1723 = vpack.c.b16 %v971, %v963
    %v1724 = vpack.c.b16 %v972, %v964
    %v1725 = vpack.c.b16 %v973, %v965
    %v1726 = vpack.c.b16 %v974, %v966
    %v1727 = vpack.c.b16 %v975, %v967
    %v1728 = vpack.c.b16 %v976, %v968
    %v1729 = vpack.c.b16 %v977, %v969
    %v1730 = vpack.c.b16 %v986, %v978
    %v1731 = vpack.c.b16 %v987, %v979
    %v1732 = vpack.c.b16 %v988, %v980
    %v1733 = vpack.c.b16 %v989, %v981
    %v1734 = vpack.c.b16 %v990, %v982
    %v1735 = vpack.c.b16 %v991, %v983
    %v1736 = vpack.c.b16 %v992, %v984
    %v1737 = vpack.c.b16 %v993, %v985
    %v1738 = vpack.c.b16 %v1002, %v994
    %v1739 = vpack.c.b16 %v1003, %v995
    %v1740 = vpack.c.b16 %v1004, %v996
    %v1741 = vpack.c.b16 %v1005, %v997
    %v1742 = vpack.c.b16 %v1006, %v998
    %v1743 = vpack.c.b16 %v1007, %v999
    %v1744 = vpack.c.b16 %v1008, %v1000
    %v1745 = vpack.c.b16 %v1009, %v1001
    %v1746 = vpack.c.b16 %v1018, %v1010
    %v1747 = vpack.c.b16 %v1019, %v1011
    %v1748 = vpack.c.b16 %v1020, %v1012
    %v1749 = vpack.c.b16 %v1021, %v1013
    %v1750 = vpack.c.b16 %v1022, %v1014
    %v1751 = vpack.c.b16 %v1023, %v1015
    %v1752 = vpack.c.b16 %v1024, %v1016
    %v1753 = vpack.c.b16 %v1025, %v1017
    %v1754 = vpack.c.b16 %v1034, %v1026
    %v1755 = vpack.c.b16 %v1035, %v1027
    %v1756 = vpack.c.b16 %v1036, %v1028
    %v1757 = vpack.c.b16 %v1037, %v1029
    %v1758 = vpack.c.b16 %v1038, %v1030
    %v1759 = vpack.c.b16 %v1039, %v1031
    %v1760 = vpack.c.b16 %v1040, %v1032
    %v1761 = vpack.c.b16 %v1041, %v1033
    %v1762 = vpack.c.b16 %v1050, %v1042
    %v1763 = vpack.c.b16 %v1051, %v1043
    %v1764 = vpack.c.b16 %v1052, %v1044
    %v1765 = vpack.c.b16 %v1053, %v1045
    %v1766 = vpack.c.b16 %v1054, %v1046
    %v1767 = vpack.c.b16 %v1055, %v1047
    %v1768 = vpack.c.b16 %v1056, %v1048
    %v1769 = vpack.c.b16 %v1057, %v1049
    %v1770 = vpack.c.b16 %v1066, %v1058
    %v1771 = vpack.c.b16 %v1067, %v1059
    %v1772 = vpack.c.b16 %v1068, %v1060
    %v1773 = vpack.c.b16 %v1069, %v1061
    %v1774 = vpack.c.b16 %v1070, %v1062
    %v1775 = vpack.c.b16 %v1071, %v1063
    %v1776 = vpack.c.b16 %v1072, %v1064
    %v1777 = vpack.c.b16 %v1073, %v1065
    %v1778 = vpack.c.b16 %v1082, %v1074
    %v1779 = vpack.c.b16 %v1083, %v1075
    %v1780 = vpack.c.b16 %v1084, %v1076
    %v1781 = vpack.c.b16 %v1085, %v1077
    %v1782 = vpack.c.b16 %v1086, %v1078
    %v1783 = vpack.c.b16 %v1087, %v1079
    %v1784 = vpack.c.b16 %v1088, %v1080
    %v1785 = vpack.c.b16 %v1089, %v1081
    %v1786 = vpack.c.b16 %v1098, %v1090
    %v1787 = vpack.c.b16 %v1099, %v1091
    %v1788 = vpack.c.b16 %v1100, %v1092
    %v1789 = vpack.c.b16 %v1101, %v1093
    %v1790 = vpack.c.b16 %v1102, %v1094
    %v1791 = vpack.c.b16 %v1103, %v1095
    %v1792 = vpack.c.b16 %v1104, %v1096
    %v1793 = vpack.c.b16 %v1105, %v1097
    %v1794 = vpack.c.b16 %v1114, %v1106
    %v1795 = vpack.c.b16 %v1115, %v1107
    %v1796 = vpack.c.b16 %v1116, %v1108
    %v1797 = vpack.c.b16 %v1117, %v1109
    %v1798 = vpack.c.b16 %v1118, %v1110
    %v1799 = vpack.c.b16 %v1119, %v1111
    %v1800 = vpack.c.b16 %v1120, %v1112
    %v1801 = vpack.c.b16 %v1121, %v1113
    %v1802 = vpack.c.b16 %v1130, %v1122
    %v1803 = vpack.c.b16 %v1131, %v1123
    %v1804 = vpack.c.b16 %v1132, %v1124
    %v1805 = vpack.c.b16 %v1133, %v1125
    %v1806 = vpack.c.b16 %v1134, %v1126
    %v1807 = vpack.c.b16 %v1135, %v1127
    %v1808 = vpack.c.b16 %v1136, %v1128
    %v1809 = vpack.c.b16 %v1137, %v1129
    %v1810 = vpack.c.b16 %v1146, %v1138
    %v1811 = vpack.c.b16 %v1147, %v1139
    %v1812 = vpack.c.b16 %v1148, %v1140
    %v1813 = vpack.c.b16 %v1149, %v1141
    %v1814 = vpack.c.b16 %v1150, %v1142
    %v1815 = vpack.c.b16 %v1151, %v1143
    %v1816 = vpack.c.b16 %v1152, %v1144
    %v1817 = vpack.c.b16 %v1153, %v1145
    %v1818 = vpack.c.b16 %v1162, %v1154
    %v1819 = vpack.c.b16 %v1163, %v1155
    %v1820 = vpack.c.b16 %v1164, %v1156
    %v1821 = vpack.c.b16 %v1165, %v1157
    %v1822 = vpack.c.b16 %v1166, %v1158
    %v1823 = vpack.c.b16 %v1167, %v1159
    %v1824 = vpack.c.b16 %v1168, %v1160
    %v1825 = vpack.c.b16 %v1169, %v1161
    %v1826 = vpack.c.b16 %v1178, %v1170
    %v1827 = vpack.c.b16 %v1179, %v1171
    %v1828 = vpack.c.b16 %v1180, %v1172
    %v1829 = vpack.c.b16 %v1181, %v1173
    %v1830 = vpack.c.b16 %v1182, %v1174
    %v1831 = vpack.c.b16 %v1183, %v1175
    %v1832 = vpack.c.b16 %v1184, %v1176
    %v1833 = vpack.c.b16 %v1185, %v1177
    %v1834 = vpack.c.b16 %v1194, %v1186
    %v1835 = vpack.c.b16 %v1195, %v1187
    %v1836 = vpack.c.b16 %v1196, %v1188
    %v1837 = vpack.c.b16 %v1197, %v1189
    %v1838 = vpack.c.b16 %v1198, %v1190
    %v1839 = vpack.c.b16 %v1199, %v1191
    %v1840 = vpack.c.b16 %v1200, %v1192
    %v1841 = vpack.c.b16 %v1201, %v1193
    %v1842 = vpack.c.b16 %v1210, %v1202
    %v1843 = vpack.c.b16 %v1211, %v1203
    %v1844 = vpack.c.b16 %v1212, %v1204
    %v1845 = vpack.c.b16 %v1213, %v1205
    %v1846 = vpack.c.b16 %v1214, %v1206
    %v1847 = vpack.c.b16 %v1215, %v1207
    %v1848 = vpack.c.b16 %v1216, %v1208
    %v1849 = vpack.c.b16 %v1217, %v1209
    %v1850 = vpack.c.b16 %v1226, %v1218
    %v1851 = vpack.c.b16 %v1227, %v1219
    %v1852 = vpack.c.b16 %v1228, %v1220
    %v1853 = vpack.c.b16 %v1229, %v1221
    %v1854 = vpack.c.b16 %v1230, %v1222
    %v1855 = vpack.c.b16 %v1231, %v1223
    %v1856 = vpack.c.b16 %v1232, %v1224
    %v1857 = vpack.c.b16 %v1233, %v1225
    %v1858 = vpack.c.b16 %v1242, %v1234
    %v1859 = vpack.c.b16 %v1243, %v1235
    %v1860 = vpack.c.b16 %v1244, %v1236
    %v1861 = vpack.c.b16 %v1245, %v1237
    %v1862 = vpack.c.b16 %v1246, %v1238
    %v1863 = vpack.c.b16 %v1247, %v1239
    %v1864 = vpack.c.b16 %v1248, %v1240
    %v1865 = vpack.c.b16 %v1249, %v1241
    %v1866 = vpack.c.b16 %v1258, %v1250
    %v1867 = vpack.c.b16 %v1259, %v1251
    %v1868 = vpack.c.b16 %v1260, %v1252
    %v1869 = vpack.c.b16 %v1261, %v1253
    %v1870 = vpack.c.b16 %v1262, %v1254
    %v1871 = vpack.c.b16 %v1263, %v1255
    %v1872 = vpack.c.b16 %v1264, %v1256
    %v1873 = vpack.c.b16 %v1265, %v1257
    %v1874 = vpack.c.b16 %v1274, %v1266
    %v1875 = vpack.c.b16 %v1275, %v1267
    %v1876 = vpack.c.b16 %v1276, %v1268
    %v1877 = vpack.c.b16 %v1277, %v1269
    %v1878 = vpack.c.b16 %v1278, %v1270
    %v1879 = vpack.c.b16 %v1279, %v1271
    %v1880 = vpack.c.b16 %v1280, %v1272
    %v1881 = vpack.c.b16 %v1281, %v1273
    %v1882 = vpack.c.b16 %v1290, %v1282
    %v1883 = vpack.c.b16 %v1291, %v1283
    %v1884 = vpack.c.b16 %v1292, %v1284
    %v1885 = vpack.c.b16 %v1293, %v1285
    %v1886 = vpack.c.b16 %v1294, %v1286
    %v1887 = vpack.c.b16 %v1295, %v1287
    %v1888 = vpack.c.b16 %v1296, %v1288
    %v1889 = vpack.c.b16 %v1297, %v1289
    %v1890 = vpack.c.b16 %v1306, %v1298
    %v1891 = vpack.c.b16 %v1307, %v1299
    %v1892 = vpack.c.b16 %v1308, %v1300
    %v1893 = vpack.c.b16 %v1309, %v1301
    %v1894 = vpack.c.b16 %v1310, %v1302
    %v1895 = vpack.c.b16 %v1311, %v1303
    %v1896 = vpack.c.b16 %v1312, %v1304
    %v1897 = vpack.c.b16 %v1313, %v1305
    %v1898 = vpack.c.b16 %v1322, %v1314
    %v1899 = vpack.c.b16 %v1323, %v1315
    %v1900 = vpack.c.b16 %v1324, %v1316
    %v1901 = vpack.c.b16 %v1325, %v1317
    %v1902 = vpack.c.b16 %v1326, %v1318
    %v1903 = vpack.c.b16 %v1327, %v1319
    %v1904 = vpack.c.b16 %v1328, %v1320
    %v1905 = vpack.c.b16 %v1329, %v1321
    %v1906 = vpack.c.b16 %v1338, %v1330
    %v1907 = vpack.c.b16 %v1339, %v1331
    %v1908 = vpack.c.b16 %v1340, %v1332
    %v1909 = vpack.c.b16 %v1341, %v1333
    %v1910 = vpack.c.b16 %v1342, %v1334
    %v1911 = vpack.c.b16 %v1343, %v1335
    %v1912 = vpack.c.b16 %v1344, %v1336
    %v1913 = vpack.c.b16 %v1345, %v1337
    %v1914 = vpack.c.b16 %v1354, %v1346
    %v1915 = vpack.c.b16 %v1355, %v1347
    %v1916 = vpack.c.b16 %v1356, %v1348
    %v1917 = vpack.c.b16 %v1357, %v1349
    %v1918 = vpack.c.b16 %v1358, %v1350
    %v1919 = vpack.c.b16 %v1359, %v1351
    %v1920 = vpack.c.b16 %v1360, %v1352
    %v1921 = vpack.c.b16 %v1361, %v1353
    %v1922 = vpack.c.b16 %v1370, %v1362
    %v1923 = vpack.c.b16 %v1371, %v1363
    %v1924 = vpack.c.b16 %v1372, %v1364
    %v1925 = vpack.c.b16 %v1373, %v1365
    %v1926 = vpack.c.b16 %v1374, %v1366
    %v1927 = vpack.c.b16 %v1375, %v1367
    %v1928 = vpack.c.b16 %v1376, %v1368
    %v1929 = vpack.c.b16 %v1377, %v1369
    %v1930 = vpack.c.b16 %v1386, %v1378
    %v1931 = vpack.c.b16 %v1387, %v1379
    %v1932 = vpack.c.b16 %v1388, %v1380
    %v1933 = vpack.c.b16 %v1389, %v1381
    %v1934 = vpack.c.b16 %v1390, %v1382
    %v1935 = vpack.c.b16 %v1391, %v1383
    %v1936 = vpack.c.b16 %v1392, %v1384
    %v1937 = vpack.c.b16 %v1393, %v1385
    %v1938 = vpack.c.b16 %v1402, %v1394
    %v1939 = vpack.c.b16 %v1403, %v1395
    %v1940 = vpack.c.b16 %v1404, %v1396
    %v1941 = vpack.c.b16 %v1405, %v1397
    %v1942 = vpack.c.b16 %v1406, %v1398
    %v1943 = vpack.c.b16 %v1407, %v1399
    %v1944 = vpack.c.b16 %v1408, %v1400
    %v1945 = vpack.c.b16 %v1409, %v1401
    %v1946 = vpack.c.b16 %v1418, %v1410
    %v1947 = vpack.c.b16 %v1419, %v1411
    %v1948 = vpack.c.b16 %v1420, %v1412
    %v1949 = vpack.c.b16 %v1421, %v1413
    %v1950 = vpack.c.b16 %v1422, %v1414
    %v1951 = vpack.c.b16 %v1423, %v1415
    %v1952 = vpack.c.b16 %v1424, %v1416
    %v1953 = vpack.c.b16 %v1425, %v1417
    %v1954 = vpack.c.b16 %v1434, %v1426
    %v1955 = vpack.c.b16 %v1435, %v1427
    %v1956 = vpack.c.b16 %v1436, %v1428
    %v1957 = vpack.c.b16 %v1437, %v1429
    %v1958 = vpack.c.b16 %v1438, %v1430
    %v1959 = vpack.c.b16 %v1439, %v1431
    %v1960 = vpack.c.b16 %v1440, %v1432
    %v1961 = vpack.c.b16 %v1441, %v1433
    %v1962 = vpack.c.b16 %v1450, %v1442
    %v1963 = vpack.c.b16 %v1451, %v1443
    %v1964 = vpack.c.b16 %v1452, %v1444
    %v1965 = vpack.c.b16 %v1453, %v1445
    %v1966 = vpack.c.b16 %v1454, %v1446
    %v1967 = vpack.c.b16 %v1455, %v1447
    %v1968 = vpack.c.b16 %v1456, %v1448
    %v1969 = vpack.c.b16 %v1457, %v1449
    %v1970 = vpack.c.b16 %v1466, %v1458
    %v1971 = vpack.c.b16 %v1467, %v1459
    %v1972 = vpack.c.b16 %v1468, %v1460
    %v1973 = vpack.c.b16 %v1469, %v1461
    %v1974 = vpack.c.b16 %v1470, %v1462
    %v1975 = vpack.c.b16 %v1471, %v1463
    %v1976 = vpack.c.b16 %v1472, %v1464
    %v1977 = vpack.c.b16 %v1473, %v1465
    %v1978 = vpack.c.b16 %v1482, %v1474
    %v1979 = vpack.c.b16 %v1483, %v1475
    %v1980 = vpack.c.b16 %v1484, %v1476
    %v1981 = vpack.c.b16 %v1485, %v1477
    %v1982 = vpack.c.b16 %v1486, %v1478
    %v1983 = vpack.c.b16 %v1487, %v1479
    %v1984 = vpack.c.b16 %v1488, %v1480
    %v1985 = vpack.c.b16 %v1489, %v1481
    %v1986 = vpack.c.b16 %v1498, %v1490
    %v1987 = vpack.c.b16 %v1499, %v1491
    %v1988 = vpack.c.b16 %v1500, %v1492
    %v1989 = vpack.c.b16 %v1501, %v1493
    %v1990 = vpack.c.b16 %v1502, %v1494
    %v1991 = vpack.c.b16 %v1503, %v1495
    %v1992 = vpack.c.b16 %v1504, %v1496
    %v1993 = vpack.c.b16 %v1505, %v1497
    %v1994 = vpack.c.b16 %v1514, %v1506
    %v1995 = vpack.c.b16 %v1515, %v1507
    %v1996 = vpack.c.b16 %v1516, %v1508
    %v1997 = vpack.c.b16 %v1517, %v1509
    %v1998 = vpack.c.b16 %v1518, %v1510
    %v1999 = vpack.c.b16 %v1519, %v1511
    %v2000 = vpack.c.b16 %v1520, %v1512
    %v2001 = vpack.c.b16 %v1521, %v1513
    %v2002 = vpack.c.b16 %v1530, %v1522
    %v2003 = vpack.c.b16 %v1531, %v1523
    %v2004 = vpack.c.b16 %v1532, %v1524
    %v2005 = vpack.c.b16 %v1533, %v1525
    %v2006 = vpack.c.b16 %v1534, %v1526
    %v2007 = vpack.c.b16 %v1535, %v1527
    %v2008 = vpack.c.b16 %v1536, %v1528
    %v2009 = vpack.c.b16 %v1537, %v1529
    %v2010 = vpack.c.b16 %v1546, %v1538
    %v2011 = vpack.c.b16 %v1547, %v1539
    %v2012 = vpack.c.b16 %v1548, %v1540
    %v2013 = vpack.c.b16 %v1549, %v1541
    %v2014 = vpack.c.b16 %v1550, %v1542
    %v2015 = vpack.c.b16 %v1551, %v1543
    %v2016 = vpack.c.b16 %v1552, %v1544
    %v2017 = vpack.c.b16 %v1553, %v1545
    %v2018 = vpack.c.b16 %v1562, %v1554
    %v2019 = vpack.c.b16 %v1563, %v1555
    %v2020 = vpack.c.b16 %v1564, %v1556
    %v2021 = vpack.c.b16 %v1565, %v1557
    %v2022 = vpack.c.b16 %v1566, %v1558
    %v2023 = vpack.c.b16 %v1567, %v1559
    %v2024 = vpack.c.b16 %v1568, %v1560
    %v2025 = vpack.c.b16 %v1569, %v1561
    %v2026 = vpack.c.b16 %v1578, %v1570
    %v2027 = vpack.c.b16 %v1579, %v1571
    %v2028 = vpack.c.b16 %v1580, %v1572
    %v2029 = vpack.c.b16 %v1581, %v1573
    %v2030 = vpack.c.b16 %v1582, %v1574
    %v2031 = vpack.c.b16 %v1583, %v1575
    %v2032 = vpack.c.b16 %v1584, %v1576
    %v2033 = vpack.c.b16 %v1585, %v1577
    %v2034 = vpack.c.b16 %v1594, %v1586
    %v2035 = vpack.c.b16 %v1595, %v1587
    %v2036 = vpack.c.b16 %v1596, %v1588
    %v2037 = vpack.c.b16 %v1597, %v1589
    %v2038 = vpack.c.b16 %v1598, %v1590
    %v2039 = vpack.c.b16 %v1599, %v1591
    %v2040 = vpack.c.b16 %v1600, %v1592
    %v2041 = vpack.c.b16 %v1601, %v1593
    %v2042 = vpack.c.b16 %v1610, %v1602
    %v2043 = vpack.c.b16 %v1611, %v1603
    %v2044 = vpack.c.b16 %v1612, %v1604
    %v2045 = vpack.c.b16 %v1613, %v1605
    %v2046 = vpack.c.b16 %v1614, %v1606
    %v2047 = vpack.c.b16 %v1615, %v1607
    %v2048 = vpack.c.b16 %v1616, %v1608
    %v2049 = vpack.c.b16 %v1617, %v1609
    %v2050 = vpack.c.b16 %v1626, %v1618
    %v2051 = vpack.c.b16 %v1627, %v1619
    %v2052 = vpack.c.b16 %v1628, %v1620
    %v2053 = vpack.c.b16 %v1629, %v1621
    %v2054 = vpack.c.b16 %v1630, %v1622
    %v2055 = vpack.c.b16 %v1631, %v1623
    %v2056 = vpack.c.b16 %v1632, %v1624
    %v2057 = vpack.c.b16 %v1633, %v1625
    %v2058 = vpack.c.b16 %v1642, %v1634
    %v2059 = vpack.c.b16 %v1643, %v1635
    %v2060 = vpack.c.b16 %v1644, %v1636
    %v2061 = vpack.c.b16 %v1645, %v1637
    %v2062 = vpack.c.b16 %v1646, %v1638
    %v2063 = vpack.c.b16 %v1647, %v1639
    %v2064 = vpack.c.b16 %v1648, %v1640
    %v2065 = vpack.c.b16 %v1649, %v1641
    %v2066 = vpack.c.b16 %v1658, %v1650
    %v2067 = vpack.c.b16 %v1659, %v1651
    %v2068 = vpack.c.b16 %v1660, %v1652
    %v2069 = vpack.c.b16 %v1661, %v1653
    %v2070 = vpack.c.b16 %v1662, %v1654
    %v2071 = vpack.c.b16 %v1663, %v1655
    %v2072 = vpack.c.b16 %v1664, %v1656
    %v2073 = vpack.c.b16 %v1665, %v1657
    %v2074 = vpack.c.b16 %v1674, %v1666
    %v2075 = vpack.c.b16 %v1675, %v1667
    %v2076 = vpack.c.b16 %v1676, %v1668
    %v2077 = vpack.c.b16 %v1677, %v1669
    %v2078 = vpack.c.b16 %v1678, %v1670
    %v2079 = vpack.c.b16 %v1679, %v1671
    %v2080 = vpack.c.b16 %v1680, %v1672
    %v2081 = vpack.c.b16 %v1681, %v1673
    %v2082 = vpack.c.b16 %v1690, %v1682
    %v2083 = vpack.c.b16 %v1691, %v1683
    %v2084 = vpack.c.b16 %v1692, %v1684
    %v2085 = vpack.c.b16 %v1693, %v1685
    %v2086 = vpack.c.b16 %v1694, %v1686
    %v2087 = vpack.c.b16 %v1695, %v1687
    %v2088 = vpack.c.b16 %v1696, %v1688
    %v2089 = vpack.c.b16 %v1697, %v1689
    %v2090 = vpack.c.b16 %v1706, %v1698
    %v2091 = vpack.c.b16 %v1707, %v1699
    %v2092 = vpack.c.b16 %v1708, %v1700
    %v2093 = vpack.c.b16 %v1709, %v1701
    %v2094 = vpack.c.b16 %v1710, %v1702
    %v2095 = vpack.c.b16 %v1711, %v1703
    %v2096 = vpack.c.b16 %v1712, %v1704
    %v2097 = vpack.c.b16 %v1713, %v1705
    %2482 = vmatprep.subr.bf16.mxu0 %v1715
    %2483 = vmatpush1.bf16.msra.mxu0 %v1714
    %2484 = vmatprep.subr.bf16.mxu0 %v1723
    %2485 = vmatpush1.bf16.msra.mxu0 %v1722
    %2486 = vmatprep.subr.bf16.mxu0 %v1731
    %2487 = vmatpush1.bf16.msra.mxu0 %v1730
    %2488 = vmatprep.subr.bf16.mxu0 %v1739
    %2489 = vmatpush1.bf16.msra.mxu0 %v1738
    %2490 = vmatprep.subr.bf16.mxu0 %v1747
    %2491 = vmatpush1.bf16.msra.mxu0 %v1746
    %2492 = vmatprep.subr.bf16.mxu0 %v1755
    %2493 = vmatpush1.bf16.msra.mxu0 %v1754
    %2494 = vmatprep.subr.bf16.mxu0 %v1763
    %2495 = vmatpush1.bf16.msra.mxu0 %v1762
    %2496 = vmatprep.subr.bf16.mxu0 %v1771
    %2497 = vmatpush1.bf16.msra.mxu0 %v1770
    %2498 = vmatprep.subr.bf16.mxu0 %v1779
    %2499 = vmatpush1.bf16.msra.mxu0 %v1778
    %2500 = vmatprep.subr.bf16.mxu0 %v1787
    %2501 = vmatpush1.bf16.msra.mxu0 %v1786
    %2502 = vmatprep.subr.bf16.mxu0 %v1795
    %2503 = vmatpush1.bf16.msra.mxu0 %v1794
    %2504 = vmatprep.subr.bf16.mxu0 %v1803
    %2505 = vmatpush1.bf16.msra.mxu0 %v1802
    %2506 = vmatprep.subr.bf16.mxu0 %v1811
    %2507 = vmatpush1.bf16.msra.mxu0 %v1810
    %2508 = vmatprep.subr.bf16.mxu0 %v1819
    %2509 = vmatpush1.bf16.msra.mxu0 %v1818
    %2510 = vmatprep.subr.bf16.mxu0 %v1827
    %2511 = vmatpush1.bf16.msra.mxu0 %v1826
    %2512 = vmatprep.subr.bf16.mxu0 %v1835
    %2513 = vmatpush1.bf16.msra.mxu0 %v1834
    %2514 = vmatprep.mubr.bf16.mxu0 %v551
    %2515 = vmatmul.mubr.bf16.gmra.mrb[0].mxu0 %v550
    %v2516 = vpop.f32.mrb[0].mxu0
    %v2517 = vadd.f32 %v504, %v2516
    %v2518 = vpop.f32.mrb[0].mxu0
    %v2519 = vadd.f32 %v508, %v2518
    %v2520 = vpop.f32.mrb[0].mxu0
    %v2521 = vpop.f32.mrb[0].mxu0
    %2522 = vdwg.mxu0
    %2523 = vmatprep.subr.bf16.mxu0 %v1843
    %2524 = vmatpush1.bf16.msra.mxu0 %v1842
    %2525 = vmatprep.subr.bf16.mxu0 %v1851
    %2526 = vmatpush1.bf16.msra.mxu0 %v1850
    %2527 = vmatprep.subr.bf16.mxu0 %v1859
    %2528 = vmatpush1.bf16.msra.mxu0 %v1858
    %2529 = vmatprep.subr.bf16.mxu0 %v1867
    %2530 = vmatpush1.bf16.msra.mxu0 %v1866
    %2531 = vmatprep.subr.bf16.mxu0 %v1875
    %2532 = vmatpush1.bf16.msra.mxu0 %v1874
    %2533 = vmatprep.subr.bf16.mxu0 %v1883
    %2534 = vmatpush1.bf16.msra.mxu0 %v1882
    %2535 = vmatprep.subr.bf16.mxu0 %v1891
    %2536 = vmatpush1.bf16.msra.mxu0 %v1890
    %2537 = vmatprep.subr.bf16.mxu0 %v1899
    %2538 = vmatpush1.bf16.msra.mxu0 %v1898
    %2539 = vmatprep.subr.bf16.mxu0 %v1907
    %2540 = vmatpush1.bf16.msra.mxu0 %v1906
    %2541 = vmatprep.subr.bf16.mxu0 %v1915
    %2542 = vmatpush1.bf16.msra.mxu0 %v1914
    %2543 = vmatprep.subr.bf16.mxu0 %v1923
    %2544 = vmatpush1.bf16.msra.mxu0 %v1922
    %2545 = vmatprep.subr.bf16.mxu0 %v1931
    %2546 = vmatpush1.bf16.msra.mxu0 %v1930
    %2547 = vmatprep.subr.bf16.mxu0 %v1939
    %2548 = vmatpush1.bf16.msra.mxu0 %v1938
    %2549 = vmatprep.subr.bf16.mxu0 %v1947
    %2550 = vmatpush1.bf16.msra.mxu0 %v1946
    %2551 = vmatprep.subr.bf16.mxu0 %v1955
    %2552 = vmatpush1.bf16.msra.mxu0 %v1954
    %2553 = vmatprep.subr.bf16.mxu0 %v1963
    %2554 = vmatpush1.bf16.msra.mxu0 %v1962
    %2555 = vmatprep.mubr.bf16.mxu0 %v553
    %2556 = vmatmul.mubr.bf16.gmra.mrb[0].mxu0 %v552
    %v2557 = vpop.f32.mrb[0].mxu0
    %v2558 = vadd.f32 %v2517, %v2557
    %v2559 = vpop.f32.mrb[0].mxu0
    %v2560 = vadd.f32 %v2519, %v2559
    %v2561 = vpop.f32.mrb[0].mxu0
    %v2562 = vpop.f32.mrb[0].mxu0
    %2563 = vdwg.mxu0
    %2564 = vmatprep.subr.bf16.mxu0 %v1971
    %2565 = vmatpush1.bf16.msra.mxu0 %v1970
    %2566 = vmatprep.subr.bf16.mxu0 %v1979
    %2567 = vmatpush1.bf16.msra.mxu0 %v1978
    %2568 = vmatprep.subr.bf16.mxu0 %v1987
    %2569 = vmatpush1.bf16.msra.mxu0 %v1986
    %2570 = vmatprep.subr.bf16.mxu0 %v1995
    %2571 = vmatpush1.bf16.msra.mxu0 %v1994
    %2572 = vmatprep.subr.bf16.mxu0 %v2003
    %2573 = vmatpush1.bf16.msra.mxu0 %v2002
    %2574 = vmatprep.subr.bf16.mxu0 %v2011
    %2575 = vmatpush1.bf16.msra.mxu0 %v2010
    %2576 = vmatprep.subr.bf16.mxu0 %v2019
    %2577 = vmatpush1.bf16.msra.mxu0 %v2018
    %2578 = vmatprep.subr.bf16.mxu0 %v2027
    %2579 = vmatpush1.bf16.msra.mxu0 %v2026
    %2580 = vmatprep.subr.bf16.mxu0 %v2035
    %2581 = vmatpush1.bf16.msra.mxu0 %v2034
    %2582 = vmatprep.subr.bf16.mxu0 %v2043
    %2583 = vmatpush1.bf16.msra.mxu0 %v2042
    %2584 = vmatprep.subr.bf16.mxu0 %v2051
    %2585 = vmatpush1.bf16.msra.mxu0 %v2050
    %2586 = vmatprep.subr.bf16.mxu0 %v2059
    %2587 = vmatpush1.bf16.msra.mxu0 %v2058
    %2588 = vmatprep.subr.bf16.mxu0 %v2067
    %2589 = vmatpush1.bf16.msra.mxu0 %v2066
    %2590 = vmatprep.subr.bf16.mxu0 %v2075
    %2591 = vmatpush1.bf16.msra.mxu0 %v2074
    %2592 = vmatprep.subr.bf16.mxu0 %v2083
    %2593 = vmatpush1.bf16.msra.mxu0 %v2082
    %2594 = vmatprep.subr.bf16.mxu0 %v2091
    %2595 = vmatpush1.bf16.msra.mxu0 %v2090
    %2596 = vmatprep.mubr.bf16.mxu0 %v555
    %2597 = vmatmul.mubr.bf16.gmra.mrb[0].mxu0 %v554
    %v2598 = vpop.f32.mrb[0].mxu0
    %v2599 = vadd.f32 %v2558, %v2598
    %v2600 = vpop.f32.mrb[0].mxu0
    %v2601 = vadd.f32 %v2560, %v2600
    %v2602 = vpop.f32.mrb[0].mxu0
    %v2603 = vpop.f32.mrb[0].mxu0
    %2604 = vdwg.mxu0
    %2605 = vmatprep.subr.bf16.mxu0 %v1717
    %2606 = vmatpush1.bf16.msra.mxu0 %v1716
    %2607 = vmatprep.subr.bf16.mxu0 %v1725
    %2608 = vmatpush1.bf16.msra.mxu0 %v1724
    %2609 = vmatprep.subr.bf16.mxu0 %v1733
    %2610 = vmatpush1.bf16.msra.mxu0 %v1732
    %2611 = vmatprep.subr.bf16.mxu0 %v1741
    %2612 = vmatpush1.bf16.msra.mxu0 %v1740
    %2613 = vmatprep.subr.bf16.mxu0 %v1749
    %2614 = vmatpush1.bf16.msra.mxu0 %v1748
    %2615 = vmatprep.subr.bf16.mxu0 %v1757
    %2616 = vmatpush1.bf16.msra.mxu0 %v1756
    %2617 = vmatprep.subr.bf16.mxu0 %v1765
    %2618 = vmatpush1.bf16.msra.mxu0 %v1764
    %2619 = vmatprep.subr.bf16.mxu0 %v1773
    %2620 = vmatpush1.bf16.msra.mxu0 %v1772
    %2621 = vmatprep.subr.bf16.mxu0 %v1781
    %2622 = vmatpush1.bf16.msra.mxu0 %v1780
    %2623 = vmatprep.subr.bf16.mxu0 %v1789
    %2624 = vmatpush1.bf16.msra.mxu0 %v1788
    %2625 = vmatprep.subr.bf16.mxu0 %v1797
    %2626 = vmatpush1.bf16.msra.mxu0 %v1796
    %2627 = vmatprep.subr.bf16.mxu0 %v1805
    %2628 = vmatpush1.bf16.msra.mxu0 %v1804
    %2629 = vmatprep.subr.bf16.mxu0 %v1813
    %2630 = vmatpush1.bf16.msra.mxu0 %v1812
    %2631 = vmatprep.subr.bf16.mxu0 %v1821
    %2632 = vmatpush1.bf16.msra.mxu0 %v1820
    %2633 = vmatprep.subr.bf16.mxu0 %v1829
    %2634 = vmatpush1.bf16.msra.mxu0 %v1828
    %2635 = vmatprep.subr.bf16.mxu0 %v1837
    %2636 = vmatpush1.bf16.msra.mxu0 %v1836
    %2637 = vmatprep.mubr.bf16.mxu0 %v551
    %2638 = vmatmul.mubr.bf16.gmra.mrb[0].mxu0 %v550
    %v2639 = vpop.f32.mrb[0].mxu0
    %v2640 = vadd.f32 %v512, %v2639
    %v2641 = vpop.f32.mrb[0].mxu0
    %v2642 = vadd.f32 %v516, %v2641
    %v2643 = vpop.f32.mrb[0].mxu0
    %v2644 = vpop.f32.mrb[0].mxu0
    %2645 = vdwg.mxu0
    %2646 = vmatprep.subr.bf16.mxu0 %v1845
    %2647 = vmatpush1.bf16.msra.mxu0 %v1844
    %2648 = vmatprep.subr.bf16.mxu0 %v1853
    %2649 = vmatpush1.bf16.msra.mxu0 %v1852
    %2650 = vmatprep.subr.bf16.mxu0 %v1861
    %2651 = vmatpush1.bf16.msra.mxu0 %v1860
    %2652 = vmatprep.subr.bf16.mxu0 %v1869
    %2653 = vmatpush1.bf16.msra.mxu0 %v1868
    %2654 = vmatprep.subr.bf16.mxu0 %v1877
    %2655 = vmatpush1.bf16.msra.mxu0 %v1876
    %2656 = vmatprep.subr.bf16.mxu0 %v1885
    %2657 = vmatpush1.bf16.msra.mxu0 %v1884
    %2658 = vmatprep.subr.bf16.mxu0 %v1893
    %2659 = vmatpush1.bf16.msra.mxu0 %v1892
    %2660 = vmatprep.subr.bf16.mxu0 %v1901
    %2661 = vmatpush1.bf16.msra.mxu0 %v1900
    %2662 = vmatprep.subr.bf16.mxu0 %v1909
    %2663 = vmatpush1.bf16.msra.mxu0 %v1908
    %2664 = vmatprep.subr.bf16.mxu0 %v1917
    %2665 = vmatpush1.bf16.msra.mxu0 %v1916
    %2666 = vmatprep.subr.bf16.mxu0 %v1925
    %2667 = vmatpush1.bf16.msra.mxu0 %v1924
    %2668 = vmatprep.subr.bf16.mxu0 %v1933
    %2669 = vmatpush1.bf16.msra.mxu0 %v1932
    %2670 = vmatprep.subr.bf16.mxu0 %v1941
    %2671 = vmatpush1.bf16.msra.mxu0 %v1940
    %2672 = vmatprep.subr.bf16.mxu0 %v1949
    %2673 = vmatpush1.bf16.msra.mxu0 %v1948
    %2674 = vmatprep.subr.bf16.mxu0 %v1957
    %2675 = vmatpush1.bf16.msra.mxu0 %v1956
    %2676 = vmatprep.subr.bf16.mxu0 %v1965
    %2677 = vmatpush1.bf16.msra.mxu0 %v1964
    %2678 = vmatprep.mubr.bf16.mxu0 %v553
    %2679 = vmatmul.mubr.bf16.gmra.mrb[0].mxu0 %v552
    %v2680 = vpop.f32.mrb[0].mxu0
    %v2681 = vadd.f32 %v2640, %v2680
    %v2682 = vpop.f32.mrb[0].mxu0
    %v2683 = vadd.f32 %v2642, %v2682
    %v2684 = vpop.f32.mrb[0].mxu0
    %v2685 = vpop.f32.mrb[0].mxu0
    %2686 = vdwg.mxu0
    %2687 = vmatprep.subr.bf16.mxu0 %v1973
    %2688 = vmatpush1.bf16.msra.mxu0 %v1972
    %2689 = vmatprep.subr.bf16.mxu0 %v1981
    %2690 = vmatpush1.bf16.msra.mxu0 %v1980
    %2691 = vmatprep.subr.bf16.mxu0 %v1989
    %2692 = vmatpush1.bf16.msra.mxu0 %v1988
    %2693 = vmatprep.subr.bf16.mxu0 %v1997
    %2694 = vmatpush1.bf16.msra.mxu0 %v1996
    %2695 = vmatprep.subr.bf16.mxu0 %v2005
    %2696 = vmatpush1.bf16.msra.mxu0 %v2004
    %2697 = vmatprep.subr.bf16.mxu0 %v2013
    %2698 = vmatpush1.bf16.msra.mxu0 %v2012
    %2699 = vmatprep.subr.bf16.mxu0 %v2021
    %2700 = vmatpush1.bf16.msra.mxu0 %v2020
    %2701 = vmatprep.subr.bf16.mxu0 %v2029
    %2702 = vmatpush1.bf16.msra.mxu0 %v2028
    %2703 = vmatprep.subr.bf16.mxu0 %v2037
    %2704 = vmatpush1.bf16.msra.mxu0 %v2036
    %2705 = vmatprep.subr.bf16.mxu0 %v2045
    %2706 = vmatpush1.bf16.msra.mxu0 %v2044
    %2707 = vmatprep.subr.bf16.mxu0 %v2053
    %2708 = vmatpush1.bf16.msra.mxu0 %v2052
    %2709 = vmatprep.subr.bf16.mxu0 %v2061
    %2710 = vmatpush1.bf16.msra.mxu0 %v2060
    %2711 = vmatprep.subr.bf16.mxu0 %v2069
    %2712 = vmatpush1.bf16.msra.mxu0 %v2068
    %2713 = vmatprep.subr.bf16.mxu0 %v2077
    %2714 = vmatpush1.bf16.msra.mxu0 %v2076
    %2715 = vmatprep.subr.bf16.mxu0 %v2085
    %2716 = vmatpush1.bf16.msra.mxu0 %v2084
    %2717 = vmatprep.subr.bf16.mxu0 %v2093
    %2718 = vmatpush1.bf16.msra.mxu0 %v2092
    %2719 = vmatprep.mubr.bf16.mxu0 %v555
    %2720 = vmatmul.mubr.bf16.gmra.mrb[0].mxu0 %v554
    %v2721 = vpop.f32.mrb[0].mxu0
    %v2722 = vadd.f32 %v2681, %v2721
    %v2723 = vpop.f32.mrb[0].mxu0
    %v2724 = vadd.f32 %v2683, %v2723
    %v2725 = vpop.f32.mrb[0].mxu0
    %v2726 = vpop.f32.mrb[0].mxu0
    %2727 = vdwg.mxu0
    %2728 = vmatprep.subr.bf16.mxu0 %v1719
    %2729 = vmatpush1.bf16.msra.mxu0 %v1718
    %2730 = vmatprep.subr.bf16.mxu0 %v1727
    %2731 = vmatpush1.bf16.msra.mxu0 %v1726
    %2732 = vmatprep.subr.bf16.mxu0 %v1735
    %2733 = vmatpush1.bf16.msra.mxu0 %v1734
    %2734 = vmatprep.subr.bf16.mxu0 %v1743
    %2735 = vmatpush1.bf16.msra.mxu0 %v1742
    %2736 = vmatprep.subr.bf16.mxu0 %v1751
    %2737 = vmatpush1.bf16.msra.mxu0 %v1750
    %2738 = vmatprep.subr.bf16.mxu0 %v1759
    %2739 = vmatpush1.bf16.msra.mxu0 %v1758
    %2740 = vmatprep.subr.bf16.mxu0 %v1767
    %2741 = vmatpush1.bf16.msra.mxu0 %v1766
    %2742 = vmatprep.subr.bf16.mxu0 %v1775
    %2743 = vmatpush1.bf16.msra.mxu0 %v1774
    %2744 = vmatprep.subr.bf16.mxu0 %v1783
    %2745 = vmatpush1.bf16.msra.mxu0 %v1782
    %2746 = vmatprep.subr.bf16.mxu0 %v1791
    %2747 = vmatpush1.bf16.msra.mxu0 %v1790
    %2748 = vmatprep.subr.bf16.mxu0 %v1799
    %2749 = vmatpush1.bf16.msra.mxu0 %v1798
    %2750 = vmatprep.subr.bf16.mxu0 %v1807
    %2751 = vmatpush1.bf16.msra.mxu0 %v1806
    %2752 = vmatprep.subr.bf16.mxu0 %v1815
    %2753 = vmatpush1.bf16.msra.mxu0 %v1814
    %2754 = vmatprep.subr.bf16.mxu0 %v1823
    %2755 = vmatpush1.bf16.msra.mxu0 %v1822
    %2756 = vmatprep.subr.bf16.mxu0 %v1831
    %2757 = vmatpush1.bf16.msra.mxu0 %v1830
    %2758 = vmatprep.subr.bf16.mxu0 %v1839
    %2759 = vmatpush1.bf16.msra.mxu0 %v1838
    %2760 = vmatprep.mubr.bf16.mxu0 %v551
    %2761 = vmatmul.mubr.bf16.gmra.mrb[0].mxu0 %v550
    %v2762 = vpop.f32.mrb[0].mxu0
    %v2763 = vadd.f32 %v520, %v2762
    %v2764 = vpop.f32.mrb[0].mxu0
    %v2765 = vadd.f32 %v524, %v2764
    %v2766 = vpop.f32.mrb[0].mxu0
    %v2767 = vpop.f32.mrb[0].mxu0
    %2768 = vdwg.mxu0
    %2769 = vmatprep.subr.bf16.mxu0 %v1847
    %2770 = vmatpush1.bf16.msra.mxu0 %v1846
    %2771 = vmatprep.subr.bf16.mxu0 %v1855
    %2772 = vmatpush1.bf16.msra.mxu0 %v1854
    %2773 = vmatprep.subr.bf16.mxu0 %v1863
    %2774 = vmatpush1.bf16.msra.mxu0 %v1862
    %2775 = vmatprep.subr.bf16.mxu0 %v1871
    %2776 = vmatpush1.bf16.msra.mxu0 %v1870
    %2777 = vmatprep.subr.bf16.mxu0 %v1879
    %2778 = vmatpush1.bf16.msra.mxu0 %v1878
    %2779 = vmatprep.subr.bf16.mxu0 %v1887
    %2780 = vmatpush1.bf16.msra.mxu0 %v1886
    %2781 = vmatprep.subr.bf16.mxu0 %v1895
    %2782 = vmatpush1.bf16.msra.mxu0 %v1894
    %2783 = vmatprep.subr.bf16.mxu0 %v1903
    %2784 = vmatpush1.bf16.msra.mxu0 %v1902
    %2785 = vmatprep.subr.bf16.mxu0 %v1911
    %2786 = vmatpush1.bf16.msra.mxu0 %v1910
    %2787 = vmatprep.subr.bf16.mxu0 %v1919
    %2788 = vmatpush1.bf16.msra.mxu0 %v1918
    %2789 = vmatprep.subr.bf16.mxu0 %v1927
    %2790 = vmatpush1.bf16.msra.mxu0 %v1926
    %2791 = vmatprep.subr.bf16.mxu0 %v1935
    %2792 = vmatpush1.bf16.msra.mxu0 %v1934
    %2793 = vmatprep.subr.bf16.mxu0 %v1943
    %2794 = vmatpush1.bf16.msra.mxu0 %v1942
    %2795 = vmatprep.subr.bf16.mxu0 %v1951
    %2796 = vmatpush1.bf16.msra.mxu0 %v1950
    %2797 = vmatprep.subr.bf16.mxu0 %v1959
    %2798 = vmatpush1.bf16.msra.mxu0 %v1958
    %2799 = vmatprep.subr.bf16.mxu0 %v1967
    %2800 = vmatpush1.bf16.msra.mxu0 %v1966
    %2801 = vmatprep.mubr.bf16.mxu0 %v553
    %2802 = vmatmul.mubr.bf16.gmra.mrb[0].mxu0 %v552
    %v2803 = vpop.f32.mrb[0].mxu0
    %v2804 = vadd.f32 %v2763, %v2803
    %v2805 = vpop.f32.mrb[0].mxu0
    %v2806 = vadd.f32 %v2765, %v2805
    %v2807 = vpop.f32.mrb[0].mxu0
    %v2808 = vpop.f32.mrb[0].mxu0
    %2809 = vdwg.mxu0
    %2810 = vmatprep.subr.bf16.mxu0 %v1975
    %2811 = vmatpush1.bf16.msra.mxu0 %v1974
    %2812 = vmatprep.subr.bf16.mxu0 %v1983
    %2813 = vmatpush1.bf16.msra.mxu0 %v1982
    %2814 = vmatprep.subr.bf16.mxu0 %v1991
    %2815 = vmatpush1.bf16.msra.mxu0 %v1990
    %2816 = vmatprep.subr.bf16.mxu0 %v1999
    %2817 = vmatpush1.bf16.msra.mxu0 %v1998
    %2818 = vmatprep.subr.bf16.mxu0 %v2007
    %2819 = vmatpush1.bf16.msra.mxu0 %v2006
    %2820 = vmatprep.subr.bf16.mxu0 %v2015
    %2821 = vmatpush1.bf16.msra.mxu0 %v2014
    %2822 = vmatprep.subr.bf16.mxu0 %v2023
    %2823 = vmatpush1.bf16.msra.mxu0 %v2022
    %2824 = vmatprep.subr.bf16.mxu0 %v2031
    %2825 = vmatpush1.bf16.msra.mxu0 %v2030
    %2826 = vmatprep.subr.bf16.mxu0 %v2039
    %2827 = vmatpush1.bf16.msra.mxu0 %v2038
    %2828 = vmatprep.subr.bf16.mxu0 %v2047
    %2829 = vmatpush1.bf16.msra.mxu0 %v2046
    %2830 = vmatprep.subr.bf16.mxu0 %v2055
    %2831 = vmatpush1.bf16.msra.mxu0 %v2054
    %2832 = vmatprep.subr.bf16.mxu0 %v2063
    %2833 = vmatpush1.bf16.msra.mxu0 %v2062
    %2834 = vmatprep.subr.bf16.mxu0 %v2071
    %2835 = vmatpush1.bf16.msra.mxu0 %v2070
    %2836 = vmatprep.subr.bf16.mxu0 %v2079
    %2837 = vmatpush1.bf16.msra.mxu0 %v2078
    %2838 = vmatprep.subr.bf16.mxu0 %v2087
    %2839 = vmatpush1.bf16.msra.mxu0 %v2086
    %2840 = vmatprep.subr.bf16.mxu0 %v2095
    %2841 = vmatpush1.bf16.msra.mxu0 %v2094
    %2842 = vmatprep.mubr.bf16.mxu0 %v555
    %2843 = vmatmul.mubr.bf16.gmra.mrb[0].mxu0 %v554
    %v2844 = vpop.f32.mrb[0].mxu0
    %v2845 = vadd.f32 %v2804, %v2844
    %v2846 = vpop.f32.mrb[0].mxu0
    %v2847 = vadd.f32 %v2806, %v2846
    %v2848 = vpop.f32.mrb[0].mxu0
    %v2849 = vpop.f32.mrb[0].mxu0
    %2850 = vdwg.mxu0
    %2851 = vmatprep.subr.bf16.mxu0 %v1721
    %2852 = vmatpush1.bf16.msra.mxu0 %v1720
    %2853 = vmatprep.subr.bf16.mxu0 %v1729
    %2854 = vmatpush1.bf16.msra.mxu0 %v1728
    %2855 = vmatprep.subr.bf16.mxu0 %v1737
    %2856 = vmatpush1.bf16.msra.mxu0 %v1736
    %2857 = vmatprep.subr.bf16.mxu0 %v1745
    %2858 = vmatpush1.bf16.msra.mxu0 %v1744
    %2859 = vmatprep.subr.bf16.mxu0 %v1753
    %2860 = vmatpush1.bf16.msra.mxu0 %v1752
    %2861 = vmatprep.subr.bf16.mxu0 %v1761
    %2862 = vmatpush1.bf16.msra.mxu0 %v1760
    %2863 = vmatprep.subr.bf16.mxu0 %v1769
    %2864 = vmatpush1.bf16.msra.mxu0 %v1768
    %2865 = vmatprep.subr.bf16.mxu0 %v1777
    %2866 = vmatpush1.bf16.msra.mxu0 %v1776
    %2867 = vmatprep.subr.bf16.mxu0 %v1785
    %2868 = vmatpush1.bf16.msra.mxu0 %v1784
    %2869 = vmatprep.subr.bf16.mxu0 %v1793
    %2870 = vmatpush1.bf16.msra.mxu0 %v1792
    %2871 = vmatprep.subr.bf16.mxu0 %v1801
    %2872 = vmatpush1.bf16.msra.mxu0 %v1800
    %2873 = vmatprep.subr.bf16.mxu0 %v1809
    %2874 = vmatpush1.bf16.msra.mxu0 %v1808
    %2875 = vmatprep.subr.bf16.mxu0 %v1817
    %2876 = vmatpush1.bf16.msra.mxu0 %v1816
    %2877 = vmatprep.subr.bf16.mxu0 %v1825
    %2878 = vmatpush1.bf16.msra.mxu0 %v1824
    %2879 = vmatprep.subr.bf16.mxu0 %v1833
    %2880 = vmatpush1.bf16.msra.mxu0 %v1832
    %2881 = vmatprep.subr.bf16.mxu0 %v1841
    %2882 = vmatpush1.bf16.msra.mxu0 %v1840
    %2883 = vmatprep.mubr.bf16.mxu0 %v551
    %2884 = vmatmul.mubr.bf16.gmra.mrb[0].mxu0 %v550
    %v2885 = vpop.f32.mrb[0].mxu0
    %v2886 = vadd.f32 %v528, %v2885
    %v2887 = vpop.f32.mrb[0].mxu0
    %v2888 = vadd.f32 %v532, %v2887
    %v2889 = vpop.f32.mrb[0].mxu0
    %v2890 = vpop.f32.mrb[0].mxu0
    %2891 = vdwg.mxu0
    %2892 = vmatprep.subr.bf16.mxu0 %v1849
    %2893 = vmatpush1.bf16.msra.mxu0 %v1848
    %2894 = vmatprep.subr.bf16.mxu0 %v1857
    %2895 = vmatpush1.bf16.msra.mxu0 %v1856
    %2896 = vmatprep.subr.bf16.mxu0 %v1865
    %2897 = vmatpush1.bf16.msra.mxu0 %v1864
    %2898 = vmatprep.subr.bf16.mxu0 %v1873
    %2899 = vmatpush1.bf16.msra.mxu0 %v1872
    %2900 = vmatprep.subr.bf16.mxu0 %v1881
    %2901 = vmatpush1.bf16.msra.mxu0 %v1880
    %2902 = vmatprep.subr.bf16.mxu0 %v1889
    %2903 = vmatpush1.bf16.msra.mxu0 %v1888
    %2904 = vmatprep.subr.bf16.mxu0 %v1897
    %2905 = vmatpush1.bf16.msra.mxu0 %v1896
    %2906 = vmatprep.subr.bf16.mxu0 %v1905
    %2907 = vmatpush1.bf16.msra.mxu0 %v1904
    %2908 = vmatprep.subr.bf16.mxu0 %v1913
    %2909 = vmatpush1.bf16.msra.mxu0 %v1912
    %2910 = vmatprep.subr.bf16.mxu0 %v1921
    %2911 = vmatpush1.bf16.msra.mxu0 %v1920
    %2912 = vmatprep.subr.bf16.mxu0 %v1929
    %2913 = vmatpush1.bf16.msra.mxu0 %v1928
    %2914 = vmatprep.subr.bf16.mxu0 %v1937
    %2915 = vmatpush1.bf16.msra.mxu0 %v1936
    %2916 = vmatprep.subr.bf16.mxu0 %v1945
    %2917 = vmatpush1.bf16.msra.mxu0 %v1944
    %2918 = vmatprep.subr.bf16.mxu0 %v1953
    %2919 = vmatpush1.bf16.msra.mxu0 %v1952
    %2920 = vmatprep.subr.bf16.mxu0 %v1961
    %2921 = vmatpush1.bf16.msra.mxu0 %v1960
    %2922 = vmatprep.subr.bf16.mxu0 %v1969
    %2923 = vmatpush1.bf16.msra.mxu0 %v1968
    %2924 = vmatprep.mubr.bf16.mxu0 %v553
    %2925 = vmatmul.mubr.bf16.gmra.mrb[0].mxu0 %v552
    %v2926 = vpop.f32.mrb[0].mxu0
    %v2927 = vadd.f32 %v2886, %v2926
    %v2928 = vpop.f32.mrb[0].mxu0
    %v2929 = vadd.f32 %v2888, %v2928
    %v2930 = vpop.f32.mrb[0].mxu0
    %v2931 = vpop.f32.mrb[0].mxu0
    %2932 = vdwg.mxu0
    %2933 = vmatprep.subr.bf16.mxu0 %v1977
    %2934 = vmatpush1.bf16.msra.mxu0 %v1976
    %2935 = vmatprep.subr.bf16.mxu0 %v1985
    %2936 = vmatpush1.bf16.msra.mxu0 %v1984
    %2937 = vmatprep.subr.bf16.mxu0 %v1993
    %2938 = vmatpush1.bf16.msra.mxu0 %v1992
    %2939 = vmatprep.subr.bf16.mxu0 %v2001
    %2940 = vmatpush1.bf16.msra.mxu0 %v2000
    %2941 = vmatprep.subr.bf16.mxu0 %v2009
    %2942 = vmatpush1.bf16.msra.mxu0 %v2008
    %2943 = vmatprep.subr.bf16.mxu0 %v2017
    %2944 = vmatpush1.bf16.msra.mxu0 %v2016
    %2945 = vmatprep.subr.bf16.mxu0 %v2025
    %2946 = vmatpush1.bf16.msra.mxu0 %v2024
    %2947 = vmatprep.subr.bf16.mxu0 %v2033
    %2948 = vmatpush1.bf16.msra.mxu0 %v2032
    %2949 = vmatprep.subr.bf16.mxu0 %v2041
    %2950 = vmatpush1.bf16.msra.mxu0 %v2040
    %2951 = vmatprep.subr.bf16.mxu0 %v2049
    %2952 = vmatpush1.bf16.msra.mxu0 %v2048
    %2953 = vmatprep.subr.bf16.mxu0 %v2057
    %2954 = vmatpush1.bf16.msra.mxu0 %v2056
    %2955 = vmatprep.subr.bf16.mxu0 %v2065
    %2956 = vmatpush1.bf16.msra.mxu0 %v2064
    %2957 = vmatprep.subr.bf16.mxu0 %v2073
    %2958 = vmatpush1.bf16.msra.mxu0 %v2072
    %2959 = vmatprep.subr.bf16.mxu0 %v2081
    %2960 = vmatpush1.bf16.msra.mxu0 %v2080
    %2961 = vmatprep.subr.bf16.mxu0 %v2089
    %2962 = vmatpush1.bf16.msra.mxu0 %v2088
    %2963 = vmatprep.subr.bf16.mxu0 %v2097
    %2964 = vmatpush1.bf16.msra.mxu0 %v2096
    %2965 = vmatprep.mubr.bf16.mxu0 %v555
    %2966 = vmatmul.mubr.bf16.gmra.mrb[0].mxu0 %v554
    %v2967 = vpop.f32.mrb[0].mxu0
    %v2968 = vadd.f32 %v2927, %v2967
    %v2969 = vpop.f32.mrb[0].mxu0
    %v2970 = vadd.f32 %v2929, %v2969
    %v2971 = vpop.f32.mrb[0].mxu0
    %v2972 = vpop.f32.mrb[0].mxu0
    %2973 = vdwg.mxu0
    %vm2974 = vcmp.gt.f32.partialorder %v2599, 0.0
    %vm2975 = vcmp.gt.f32.partialorder %v2601, 0.0
    %vm2976 = vcmp.gt.f32.partialorder %v2722, 0.0
    %vm2977 = vcmp.gt.f32.partialorder %v2724, 0.0
    %vm2978 = vcmp.gt.f32.partialorder %v2845, 0.0
    %vm2979 = vcmp.gt.f32.partialorder %v2847, 0.0
    %vm2980 = vcmp.gt.f32.partialorder %v2968, 0.0
    %vm2981 = vcmp.gt.f32.partialorder %v2970, 0.0
    %v2982 = vmul.f32 %v2599, 0.01
    %v2983 = vmul.f32 %v2601, 0.01
    %v2984 = vmul.f32 %v2722, 0.01
    %v2985 = vmul.f32 %v2724, 0.01
    %v2986 = vmul.f32 %v2845, 0.01
    %v2987 = vmul.f32 %v2847, 0.01
    %v2988 = vmul.f32 %v2968, 0.01
    %v2989 = vmul.f32 %v2970, 0.01
    %v2990 = vsel %vm2974, %v2599, %v2982
    %v2991 = vsel %vm2975, %v2601, %v2983
    %v2992 = vsel %vm2976, %v2722, %v2984
    %v2993 = vsel %vm2977, %v2724, %v2985
    %v2994 = vsel %vm2978, %v2845, %v2986
    %v2995 = vsel %vm2979, %v2847, %v2987
    %v2996 = vsel %vm2980, %v2968, %v2988
    %v2997 = vsel %vm2981, %v2970, %v2989
    %v2998 = vpack.c.bf16 %v2990, %v2990
    %v2999 = vpack.c.bf16 %v2991, %v2991
    %v3000 = vpack.c.bf16 %v2992, %v2992
    %v3001 = vpack.c.bf16 %v2993, %v2993
    %v3002 = vpack.c.bf16 %v2994, %v2994
    %v3003 = vpack.c.bf16 %v2995, %v2995
    %v3004 = vpack.c.bf16 %v2996, %v2996
    %v3005 = vpack.c.bf16 %v2997, %v2997
    %v3006 = vld [vmem:[#allocation8] sm:$0xff]
    %v3007 = vld [vmem:[#allocation8 + $0x8] sm:$0xff]
    %v3008 = vld [vmem:[#allocation8 + $0x10] sm:$0xff]
    %v3009 = vld [vmem:[#allocation8 + $0x18] sm:$0xff]
    %v3010 = vld [vmem:[#allocation8 + $0x20] sm:$0xff]
    %v3011 = vld [vmem:[#allocation8 + $0x28] sm:$0xff]
    %v3012 = vld [vmem:[#allocation8 + $0x30] sm:$0xff]
    %v3013 = vld [vmem:[#allocation8 + $0x38] sm:$0xff]
    %v3014 = vld [vmem:[#allocation8 + $0x40] sm:$0xff]
    %v3015 = vld [vmem:[#allocation8 + $0x48] sm:$0xff]
    %v3016 = vld [vmem:[#allocation8 + $0x50] sm:$0xff]
    %v3017 = vld [vmem:[#allocation8 + $0x58] sm:$0xff]
    %v3018 = vld [vmem:[#allocation8 + $0x60] sm:$0xff]
    %v3019 = vld [vmem:[#allocation8 + $0x68] sm:$0xff]
    %v3020 = vld [vmem:[#allocation8 + $0x70] sm:$0xff]
    %v3021 = vld [vmem:[#allocation8 + $0x78] sm:$0xff]
    %v3022 = vld [vmem:[#allocation8 + $0x80] sm:$0xff]
    %v3023 = vld [vmem:[#allocation8 + $0x88] sm:$0xff]
    %v3024 = vld [vmem:[#allocation8 + $0x90] sm:$0xff]
    %v3025 = vld [vmem:[#allocation8 + $0x98] sm:$0xff]
    %v3026 = vld [vmem:[#allocation8 + $0xa0] sm:$0xff]
    %v3027 = vld [vmem:[#allocation8 + $0xa8] sm:$0xff]
    %v3028 = vld [vmem:[#allocation8 + $0xb0] sm:$0xff]
    %v3029 = vld [vmem:[#allocation8 + $0xb8] sm:$0xff]
    %v3030 = vld [vmem:[#allocation8 + $0xc0] sm:$0xff]
    %v3031 = vld [vmem:[#allocation8 + $0xc8] sm:$0xff]
    %v3032 = vld [vmem:[#allocation8 + $0xd0] sm:$0xff]
    %v3033 = vld [vmem:[#allocation8 + $0xd8] sm:$0xff]
    %v3034 = vld [vmem:[#allocation8 + $0xe0] sm:$0xff]
    %v3035 = vld [vmem:[#allocation8 + $0xe8] sm:$0xff]
    %v3036 = vld [vmem:[#allocation8 + $0xf0] sm:$0xff]
    %v3037 = vld [vmem:[#allocation8 + $0xf8] sm:$0xff]
    %v3038 = vld [vmem:[#allocation8 + $0x100] sm:$0xff]
    %v3039 = vld [vmem:[#allocation8 + $0x108] sm:$0xff]
    %v3040 = vld [vmem:[#allocation8 + $0x110] sm:$0xff]
    %v3041 = vld [vmem:[#allocation8 + $0x118] sm:$0xff]
    %v3042 = vld [vmem:[#allocation8 + $0x120] sm:$0xff]
    %v3043 = vld [vmem:[#allocation8 + $0x128] sm:$0xff]
    %v3044 = vld [vmem:[#allocation8 + $0x130] sm:$0xff]
    %v3045 = vld [vmem:[#allocation8 + $0x138] sm:$0xff]
    %v3046 = vld [vmem:[#allocation8 + $0x140] sm:$0xff]
    %v3047 = vld [vmem:[#allocation8 + $0x148] sm:$0xff]
    %v3048 = vld [vmem:[#allocation8 + $0x150] sm:$0xff]
    %v3049 = vld [vmem:[#allocation8 + $0x158] sm:$0xff]
    %v3050 = vld [vmem:[#allocation8 + $0x160] sm:$0xff]
    %v3051 = vld [vmem:[#allocation8 + $0x168] sm:$0xff]
    %v3052 = vld [vmem:[#allocation8 + $0x170] sm:$0xff]
    %v3053 = vld [vmem:[#allocation8 + $0x178] sm:$0xff]
    %v3054 = vld [vmem:[#allocation8 + $0x180] sm:$0xff]
    %v3055 = vld [vmem:[#allocation8 + $0x188] sm:$0xff]
    %v3056 = vld [vmem:[#allocation8 + $0x190] sm:$0xff]
    %v3057 = vld [vmem:[#allocation8 + $0x198] sm:$0xff]
    %v3058 = vld [vmem:[#allocation8 + $0x1a0] sm:$0xff]
    %v3059 = vld [vmem:[#allocation8 + $0x1a8] sm:$0xff]
    %v3060 = vld [vmem:[#allocation8 + $0x1b0] sm:$0xff]
    %v3061 = vld [vmem:[#allocation8 + $0x1b8] sm:$0xff]
    %v3062 = vld [vmem:[#allocation8 + $0x1c0] sm:$0xff]
    %v3063 = vld [vmem:[#allocation8 + $0x1c8] sm:$0xff]
    %v3064 = vld [vmem:[#allocation8 + $0x1d0] sm:$0xff]
    %v3065 = vld [vmem:[#allocation8 + $0x1d8] sm:$0xff]
    %v3066 = vld [vmem:[#allocation8 + $0x1e0] sm:$0xff]
    %v3067 = vld [vmem:[#allocation8 + $0x1e8] sm:$0xff]
    %v3068 = vld [vmem:[#allocation8 + $0x1f0] sm:$0xff]
    %v3069 = vld [vmem:[#allocation8 + $0x1f8] sm:$0xff]
    %v3070 = vld [vmem:[#allocation8 + $0x200] sm:$0xff]
    %v3071 = vld [vmem:[#allocation8 + $0x208] sm:$0xff]
    %v3072 = vld [vmem:[#allocation8 + $0x210] sm:$0xff]
    %v3073 = vld [vmem:[#allocation8 + $0x218] sm:$0xff]
    %v3074 = vld [vmem:[#allocation8 + $0x220] sm:$0xff]
    %v3075 = vld [vmem:[#allocation8 + $0x228] sm:$0xff]
    %v3076 = vld [vmem:[#allocation8 + $0x230] sm:$0xff]
    %v3077 = vld [vmem:[#allocation8 + $0x238] sm:$0xff]
    %v3078 = vld [vmem:[#allocation8 + $0x240] sm:$0xff]
    %v3079 = vld [vmem:[#allocation8 + $0x248] sm:$0xff]
    %v3080 = vld [vmem:[#allocation8 + $0x250] sm:$0xff]
    %v3081 = vld [vmem:[#allocation8 + $0x258] sm:$0xff]
    %v3082 = vld [vmem:[#allocation8 + $0x260] sm:$0xff]
    %v3083 = vld [vmem:[#allocation8 + $0x268] sm:$0xff]
    %v3084 = vld [vmem:[#allocation8 + $0x270] sm:$0xff]
    %v3085 = vld [vmem:[#allocation8 + $0x278] sm:$0xff]
    %v3086 = vld [vmem:[#allocation8 + $0x280] sm:$0xff]
    %v3087 = vld [vmem:[#allocation8 + $0x288] sm:$0xff]
    %v3088 = vld [vmem:[#allocation8 + $0x290] sm:$0xff]
    %v3089 = vld [vmem:[#allocation8 + $0x298] sm:$0xff]
    %v3090 = vld [vmem:[#allocation8 + $0x2a0] sm:$0xff]
    %v3091 = vld [vmem:[#allocation8 + $0x2a8] sm:$0xff]
    %v3092 = vld [vmem:[#allocation8 + $0x2b0] sm:$0xff]
    %v3093 = vld [vmem:[#allocation8 + $0x2b8] sm:$0xff]
    %v3094 = vld [vmem:[#allocation8 + $0x2c0] sm:$0xff]
    %v3095 = vld [vmem:[#allocation8 + $0x2c8] sm:$0xff]
    %v3096 = vld [vmem:[#allocation8 + $0x2d0] sm:$0xff]
    %v3097 = vld [vmem:[#allocation8 + $0x2d8] sm:$0xff]
    %v3098 = vld [vmem:[#allocation8 + $0x2e0] sm:$0xff]
    %v3099 = vld [vmem:[#allocation8 + $0x2e8] sm:$0xff]
    %v3100 = vld [vmem:[#allocation8 + $0x2f0] sm:$0xff]
    %v3101 = vld [vmem:[#allocation8 + $0x2f8] sm:$0xff]
    %v3102 = vld [vmem:[#allocation8 + $0x300] sm:$0xff]
    %v3103 = vld [vmem:[#allocation8 + $0x308] sm:$0xff]
    %v3104 = vld [vmem:[#allocation8 + $0x310] sm:$0xff]
    %v3105 = vld [vmem:[#allocation8 + $0x318] sm:$0xff]
    %v3106 = vld [vmem:[#allocation8 + $0x320] sm:$0xff]
    %v3107 = vld [vmem:[#allocation8 + $0x328] sm:$0xff]
    %v3108 = vld [vmem:[#allocation8 + $0x330] sm:$0xff]
    %v3109 = vld [vmem:[#allocation8 + $0x338] sm:$0xff]
    %v3110 = vld [vmem:[#allocation8 + $0x340] sm:$0xff]
    %v3111 = vld [vmem:[#allocation8 + $0x348] sm:$0xff]
    %v3112 = vld [vmem:[#allocation8 + $0x350] sm:$0xff]
    %v3113 = vld [vmem:[#allocation8 + $0x358] sm:$0xff]
    %v3114 = vld [vmem:[#allocation8 + $0x360] sm:$0xff]
    %v3115 = vld [vmem:[#allocation8 + $0x368] sm:$0xff]
    %v3116 = vld [vmem:[#allocation8 + $0x370] sm:$0xff]
    %v3117 = vld [vmem:[#allocation8 + $0x378] sm:$0xff]
    %v3118 = vld [vmem:[#allocation8 + $0x380] sm:$0xff]
    %v3119 = vld [vmem:[#allocation8 + $0x388] sm:$0xff]
    %v3120 = vld [vmem:[#allocation8 + $0x390] sm:$0xff]
    %v3121 = vld [vmem:[#allocation8 + $0x398] sm:$0xff]
    %v3122 = vld [vmem:[#allocation8 + $0x3a0] sm:$0xff]
    %v3123 = vld [vmem:[#allocation8 + $0x3a8] sm:$0xff]
    %v3124 = vld [vmem:[#allocation8 + $0x3b0] sm:$0xff]
    %v3125 = vld [vmem:[#allocation8 + $0x3b8] sm:$0xff]
    %v3126 = vld [vmem:[#allocation8 + $0x3c0] sm:$0xff]
    %v3127 = vld [vmem:[#allocation8 + $0x3c8] sm:$0xff]
    %v3128 = vld [vmem:[#allocation8 + $0x3d0] sm:$0xff]
    %v3129 = vld [vmem:[#allocation8 + $0x3d8] sm:$0xff]
    %v3130 = vld [vmem:[#allocation8 + $0x3e0] sm:$0xff]
    %v3131 = vld [vmem:[#allocation8 + $0x3e8] sm:$0xff]
    %v3132 = vld [vmem:[#allocation8 + $0x3f0] sm:$0xff]
    %v3133 = vld [vmem:[#allocation8 + $0x3f8] sm:$0xff]
    %v3134 = vld [vmem:[#allocation8 + $0x400] sm:$0xff]
    %v3135 = vld [vmem:[#allocation8 + $0x408] sm:$0xff]
    %v3136 = vld [vmem:[#allocation8 + $0x410] sm:$0xff]
    %v3137 = vld [vmem:[#allocation8 + $0x418] sm:$0xff]
    %v3138 = vld [vmem:[#allocation8 + $0x420] sm:$0xff]
    %v3139 = vld [vmem:[#allocation8 + $0x428] sm:$0xff]
    %v3140 = vld [vmem:[#allocation8 + $0x430] sm:$0xff]
    %v3141 = vld [vmem:[#allocation8 + $0x438] sm:$0xff]
    %v3142 = vld [vmem:[#allocation8 + $0x440] sm:$0xff]
    %v3143 = vld [vmem:[#allocation8 + $0x448] sm:$0xff]
    %v3144 = vld [vmem:[#allocation8 + $0x450] sm:$0xff]
    %v3145 = vld [vmem:[#allocation8 + $0x458] sm:$0xff]
    %v3146 = vld [vmem:[#allocation8 + $0x460] sm:$0xff]
    %v3147 = vld [vmem:[#allocation8 + $0x468] sm:$0xff]
    %v3148 = vld [vmem:[#allocation8 + $0x470] sm:$0xff]
    %v3149 = vld [vmem:[#allocation8 + $0x478] sm:$0xff]
    %v3150 = vld [vmem:[#allocation8 + $0x480] sm:$0xff]
    %v3151 = vld [vmem:[#allocation8 + $0x488] sm:$0xff]
    %v3152 = vld [vmem:[#allocation8 + $0x490] sm:$0xff]
    %v3153 = vld [vmem:[#allocation8 + $0x498] sm:$0xff]
    %v3154 = vld [vmem:[#allocation8 + $0x4a0] sm:$0xff]
    %v3155 = vld [vmem:[#allocation8 + $0x4a8] sm:$0xff]
    %v3156 = vld [vmem:[#allocation8 + $0x4b0] sm:$0xff]
    %v3157 = vld [vmem:[#allocation8 + $0x4b8] sm:$0xff]
    %v3158 = vld [vmem:[#allocation8 + $0x4c0] sm:$0xff]
    %v3159 = vld [vmem:[#allocation8 + $0x4c8] sm:$0xff]
    %v3160 = vld [vmem:[#allocation8 + $0x4d0] sm:$0xff]
    %v3161 = vld [vmem:[#allocation8 + $0x4d8] sm:$0xff]
    %v3162 = vld [vmem:[#allocation8 + $0x4e0] sm:$0xff]
    %v3163 = vld [vmem:[#allocation8 + $0x4e8] sm:$0xff]
    %v3164 = vld [vmem:[#allocation8 + $0x4f0] sm:$0xff]
    %v3165 = vld [vmem:[#allocation8 + $0x4f8] sm:$0xff]
    %v3166 = vld [vmem:[#allocation8 + $0x500] sm:$0xff]
    %v3167 = vld [vmem:[#allocation8 + $0x508] sm:$0xff]
    %v3168 = vld [vmem:[#allocation8 + $0x510] sm:$0xff]
    %v3169 = vld [vmem:[#allocation8 + $0x518] sm:$0xff]
    %v3170 = vld [vmem:[#allocation8 + $0x520] sm:$0xff]
    %v3171 = vld [vmem:[#allocation8 + $0x528] sm:$0xff]
    %v3172 = vld [vmem:[#allocation8 + $0x530] sm:$0xff]
    %v3173 = vld [vmem:[#allocation8 + $0x538] sm:$0xff]
    %v3174 = vld [vmem:[#allocation8 + $0x540] sm:$0xff]
    %v3175 = vld [vmem:[#allocation8 + $0x548] sm:$0xff]
    %v3176 = vld [vmem:[#allocation8 + $0x550] sm:$0xff]
    %v3177 = vld [vmem:[#allocation8 + $0x558] sm:$0xff]
    %v3178 = vld [vmem:[#allocation8 + $0x560] sm:$0xff]
    %v3179 = vld [vmem:[#allocation8 + $0x568] sm:$0xff]
    %v3180 = vld [vmem:[#allocation8 + $0x570] sm:$0xff]
    %v3181 = vld [vmem:[#allocation8 + $0x578] sm:$0xff]
    %v3182 = vld [vmem:[#allocation8 + $0x580] sm:$0xff]
    %v3183 = vld [vmem:[#allocation8 + $0x588] sm:$0xff]
    %v3184 = vld [vmem:[#allocation8 + $0x590] sm:$0xff]
    %v3185 = vld [vmem:[#allocation8 + $0x598] sm:$0xff]
    %v3186 = vld [vmem:[#allocation8 + $0x5a0] sm:$0xff]
    %v3187 = vld [vmem:[#allocation8 + $0x5a8] sm:$0xff]
    %v3188 = vld [vmem:[#allocation8 + $0x5b0] sm:$0xff]
    %v3189 = vld [vmem:[#allocation8 + $0x5b8] sm:$0xff]
    %v3190 = vld [vmem:[#allocation8 + $0x5c0] sm:$0xff]
    %v3191 = vld [vmem:[#allocation8 + $0x5c8] sm:$0xff]
    %v3192 = vld [vmem:[#allocation8 + $0x5d0] sm:$0xff]
    %v3193 = vld [vmem:[#allocation8 + $0x5d8] sm:$0xff]
    %v3194 = vld [vmem:[#allocation8 + $0x5e0] sm:$0xff]
    %v3195 = vld [vmem:[#allocation8 + $0x5e8] sm:$0xff]
    %v3196 = vld [vmem:[#allocation8 + $0x5f0] sm:$0xff]
    %v3197 = vld [vmem:[#allocation8 + $0x5f8] sm:$0xff]
    %v3198 = vld [vmem:[#allocation8 + $0x600] sm:$0xff]
    %v3199 = vld [vmem:[#allocation8 + $0x608] sm:$0xff]
    %v3200 = vld [vmem:[#allocation8 + $0x610] sm:$0xff]
    %v3201 = vld [vmem:[#allocation8 + $0x618] sm:$0xff]
    %v3202 = vld [vmem:[#allocation8 + $0x620] sm:$0xff]
    %v3203 = vld [vmem:[#allocation8 + $0x628] sm:$0xff]
    %v3204 = vld [vmem:[#allocation8 + $0x630] sm:$0xff]
    %v3205 = vld [vmem:[#allocation8 + $0x638] sm:$0xff]
    %v3206 = vld [vmem:[#allocation8 + $0x640] sm:$0xff]
    %v3207 = vld [vmem:[#allocation8 + $0x648] sm:$0xff]
    %v3208 = vld [vmem:[#allocation8 + $0x650] sm:$0xff]
    %v3209 = vld [vmem:[#allocation8 + $0x658] sm:$0xff]
    %v3210 = vld [vmem:[#allocation8 + $0x660] sm:$0xff]
    %v3211 = vld [vmem:[#allocation8 + $0x668] sm:$0xff]
    %v3212 = vld [vmem:[#allocation8 + $0x670] sm:$0xff]
    %v3213 = vld [vmem:[#allocation8 + $0x678] sm:$0xff]
    %v3214 = vld [vmem:[#allocation8 + $0x680] sm:$0xff]
    %v3215 = vld [vmem:[#allocation8 + $0x688] sm:$0xff]
    %v3216 = vld [vmem:[#allocation8 + $0x690] sm:$0xff]
    %v3217 = vld [vmem:[#allocation8 + $0x698] sm:$0xff]
    %v3218 = vld [vmem:[#allocation8 + $0x6a0] sm:$0xff]
    %v3219 = vld [vmem:[#allocation8 + $0x6a8] sm:$0xff]
    %v3220 = vld [vmem:[#allocation8 + $0x6b0] sm:$0xff]
    %v3221 = vld [vmem:[#allocation8 + $0x6b8] sm:$0xff]
    %v3222 = vld [vmem:[#allocation8 + $0x6c0] sm:$0xff]
    %v3223 = vld [vmem:[#allocation8 + $0x6c8] sm:$0xff]
    %v3224 = vld [vmem:[#allocation8 + $0x6d0] sm:$0xff]
    %v3225 = vld [vmem:[#allocation8 + $0x6d8] sm:$0xff]
    %v3226 = vld [vmem:[#allocation8 + $0x6e0] sm:$0xff]
    %v3227 = vld [vmem:[#allocation8 + $0x6e8] sm:$0xff]
    %v3228 = vld [vmem:[#allocation8 + $0x6f0] sm:$0xff]
    %v3229 = vld [vmem:[#allocation8 + $0x6f8] sm:$0xff]
    %v3230 = vld [vmem:[#allocation8 + $0x700] sm:$0xff]
    %v3231 = vld [vmem:[#allocation8 + $0x708] sm:$0xff]
    %v3232 = vld [vmem:[#allocation8 + $0x710] sm:$0xff]
    %v3233 = vld [vmem:[#allocation8 + $0x718] sm:$0xff]
    %v3234 = vld [vmem:[#allocation8 + $0x720] sm:$0xff]
    %v3235 = vld [vmem:[#allocation8 + $0x728] sm:$0xff]
    %v3236 = vld [vmem:[#allocation8 + $0x730] sm:$0xff]
    %v3237 = vld [vmem:[#allocation8 + $0x738] sm:$0xff]
    %v3238 = vld [vmem:[#allocation8 + $0x740] sm:$0xff]
    %v3239 = vld [vmem:[#allocation8 + $0x748] sm:$0xff]
    %v3240 = vld [vmem:[#allocation8 + $0x750] sm:$0xff]
    %v3241 = vld [vmem:[#allocation8 + $0x758] sm:$0xff]
    %v3242 = vld [vmem:[#allocation8 + $0x760] sm:$0xff]
    %v3243 = vld [vmem:[#allocation8 + $0x768] sm:$0xff]
    %v3244 = vld [vmem:[#allocation8 + $0x770] sm:$0xff]
    %v3245 = vld [vmem:[#allocation8 + $0x778] sm:$0xff]
    %v3246 = vld [vmem:[#allocation8 + $0x780] sm:$0xff]
    %v3247 = vld [vmem:[#allocation8 + $0x788] sm:$0xff]
    %v3248 = vld [vmem:[#allocation8 + $0x790] sm:$0xff]
    %v3249 = vld [vmem:[#allocation8 + $0x798] sm:$0xff]
    %v3250 = vld [vmem:[#allocation8 + $0x7a0] sm:$0xff]
    %v3251 = vld [vmem:[#allocation8 + $0x7a8] sm:$0xff]
    %v3252 = vld [vmem:[#allocation8 + $0x7b0] sm:$0xff]
    %v3253 = vld [vmem:[#allocation8 + $0x7b8] sm:$0xff]
    %v3254 = vld [vmem:[#allocation8 + $0x7c0] sm:$0xff]
    %v3255 = vld [vmem:[#allocation8 + $0x7c8] sm:$0xff]
    %v3256 = vld [vmem:[#allocation8 + $0x7d0] sm:$0xff]
    %v3257 = vld [vmem:[#allocation8 + $0x7d8] sm:$0xff]
    %v3258 = vld [vmem:[#allocation8 + $0x7e0] sm:$0xff]
    %v3259 = vld [vmem:[#allocation8 + $0x7e8] sm:$0xff]
    %v3260 = vld [vmem:[#allocation8 + $0x7f0] sm:$0xff]
    %v3261 = vld [vmem:[#allocation8 + $0x7f8] sm:$0xff]
    %v3262 = vld [vmem:[#allocation10] sm:$0xf]
    %v3264 = vlaneseq
    %v3265 = vshrl.u32 %v3264, 7
    %v3266 = vsub.s32 0, %v3265
    %v3267 = vrot.slane %v3262, %v3266
    %v3268 = vlaneseq
    %v3269 = vshrl.u32 %v3268, 7
    %v3270 = vsub.s32 1, %v3269
    %v3271 = vrot.slane %v3262, %v3270
    %v3272 = vlaneseq
    %v3273 = vshrl.u32 %v3272, 7
    %v3274 = vsub.s32 2, %v3273
    %v3275 = vrot.slane %v3262, %v3274
    %v3276 = vlaneseq
    %v3277 = vshrl.u32 %v3276, 7
    %v3278 = vsub.s32 3, %v3277
    %v3279 = vrot.slane %v3262, %v3278
    %v3540 = vunpack.c.l.b16 %v3006
    %v3541 = vunpack.c.h.b16 %v3006
    %v3542 = vunpack.c.l.b16 %v3007
    %v3543 = vunpack.c.h.b16 %v3007
    %v3544 = vunpack.c.l.b16 %v3008
    %v3545 = vunpack.c.h.b16 %v3008
    %v3546 = vunpack.c.l.b16 %v3009
    %v3547 = vunpack.c.h.b16 %v3009
    %v3548 = vunpack.c.l.b16 %v3010
    %v3549 = vunpack.c.h.b16 %v3010
    %v3550 = vunpack.c.l.b16 %v3011
    %v3551 = vunpack.c.h.b16 %v3011
    %v3552 = vunpack.c.l.b16 %v3012
    %v3553 = vunpack.c.h.b16 %v3012
    %v3554 = vunpack.c.l.b16 %v3013
    %v3555 = vunpack.c.h.b16 %v3013
    %v3556 = vunpack.c.l.b16 %v3014
    %v3557 = vunpack.c.h.b16 %v3014
    %v3558 = vunpack.c.l.b16 %v3015
    %v3559 = vunpack.c.h.b16 %v3015
    %v3560 = vunpack.c.l.b16 %v3016
    %v3561 = vunpack.c.h.b16 %v3016
    %v3562 = vunpack.c.l.b16 %v3017
    %v3563 = vunpack.c.h.b16 %v3017
    %v3564 = vunpack.c.l.b16 %v3018
    %v3565 = vunpack.c.h.b16 %v3018
    %v3566 = vunpack.c.l.b16 %v3019
    %v3567 = vunpack.c.h.b16 %v3019
    %v3568 = vunpack.c.l.b16 %v3020
    %v3569 = vunpack.c.h.b16 %v3020
    %v3570 = vunpack.c.l.b16 %v3021
    %v3571 = vunpack.c.h.b16 %v3021
    %v3572 = vunpack.c.l.b16 %v3022
    %v3573 = vunpack.c.h.b16 %v3022
    %v3574 = vunpack.c.l.b16 %v3023
    %v3575 = vunpack.c.h.b16 %v3023
    %v3576 = vunpack.c.l.b16 %v3024
    %v3577 = vunpack.c.h.b16 %v3024
    %v3578 = vunpack.c.l.b16 %v3025
    %v3579 = vunpack.c.h.b16 %v3025
    %v3580 = vunpack.c.l.b16 %v3026
    %v3581 = vunpack.c.h.b16 %v3026
    %v3582 = vunpack.c.l.b16 %v3027
    %v3583 = vunpack.c.h.b16 %v3027
    %v3584 = vunpack.c.l.b16 %v3028
    %v3585 = vunpack.c.h.b16 %v3028
    %v3586 = vunpack.c.l.b16 %v3029
    %v3587 = vunpack.c.h.b16 %v3029
    %v3588 = vunpack.c.l.b16 %v3030
    %v3589 = vunpack.c.h.b16 %v3030
    %v3590 = vunpack.c.l.b16 %v3031
    %v3591 = vunpack.c.h.b16 %v3031
    %v3592 = vunpack.c.l.b16 %v3032
    %v3593 = vunpack.c.h.b16 %v3032
    %v3594 = vunpack.c.l.b16 %v3033
    %v3595 = vunpack.c.h.b16 %v3033
    %v3596 = vunpack.c.l.b16 %v3034
    %v3597 = vunpack.c.h.b16 %v3034
    %v3598 = vunpack.c.l.b16 %v3035
    %v3599 = vunpack.c.h.b16 %v3035
    %v3600 = vunpack.c.l.b16 %v3036
    %v3601 = vunpack.c.h.b16 %v3036
    %v3602 = vunpack.c.l.b16 %v3037
    %v3603 = vunpack.c.h.b16 %v3037
    %v3604 = vunpack.c.l.b16 %v3038
    %v3605 = vunpack.c.h.b16 %v3038
    %v3606 = vunpack.c.l.b16 %v3039
    %v3607 = vunpack.c.h.b16 %v3039
    %v3608 = vunpack.c.l.b16 %v3040
    %v3609 = vunpack.c.h.b16 %v3040
    %v3610 = vunpack.c.l.b16 %v3041
    %v3611 = vunpack.c.h.b16 %v3041
    %v3612 = vunpack.c.l.b16 %v3042
    %v3613 = vunpack.c.h.b16 %v3042
    %v3614 = vunpack.c.l.b16 %v3043
    %v3615 = vunpack.c.h.b16 %v3043
    %v3616 = vunpack.c.l.b16 %v3044
    %v3617 = vunpack.c.h.b16 %v3044
    %v3618 = vunpack.c.l.b16 %v3045
    %v3619 = vunpack.c.h.b16 %v3045
    %v3620 = vunpack.c.l.b16 %v3046
    %v3621 = vunpack.c.h.b16 %v3046
    %v3622 = vunpack.c.l.b16 %v3047
    %v3623 = vunpack.c.h.b16 %v3047
    %v3624 = vunpack.c.l.b16 %v3048
    %v3625 = vunpack.c.h.b16 %v3048
    %v3626 = vunpack.c.l.b16 %v3049
    %v3627 = vunpack.c.h.b16 %v3049
    %v3628 = vunpack.c.l.b16 %v3050
    %v3629 = vunpack.c.h.b16 %v3050
    %v3630 = vunpack.c.l.b16 %v3051
    %v3631 = vunpack.c.h.b16 %v3051
    %v3632 = vunpack.c.l.b16 %v3052
    %v3633 = vunpack.c.h.b16 %v3052
    %v3634 = vunpack.c.l.b16 %v3053
    %v3635 = vunpack.c.h.b16 %v3053
    %v3636 = vunpack.c.l.b16 %v3054
    %v3637 = vunpack.c.h.b16 %v3054
    %v3638 = vunpack.c.l.b16 %v3055
    %v3639 = vunpack.c.h.b16 %v3055
    %v3640 = vunpack.c.l.b16 %v3056
    %v3641 = vunpack.c.h.b16 %v3056
    %v3642 = vunpack.c.l.b16 %v3057
    %v3643 = vunpack.c.h.b16 %v3057
    %v3644 = vunpack.c.l.b16 %v3058
    %v3645 = vunpack.c.h.b16 %v3058
    %v3646 = vunpack.c.l.b16 %v3059
    %v3647 = vunpack.c.h.b16 %v3059
    %v3648 = vunpack.c.l.b16 %v3060
    %v3649 = vunpack.c.h.b16 %v3060
    %v3650 = vunpack.c.l.b16 %v3061
    %v3651 = vunpack.c.h.b16 %v3061
    %v3652 = vunpack.c.l.b16 %v3062
    %v3653 = vunpack.c.h.b16 %v3062
    %v3654 = vunpack.c.l.b16 %v3063
    %v3655 = vunpack.c.h.b16 %v3063
    %v3656 = vunpack.c.l.b16 %v3064
    %v3657 = vunpack.c.h.b16 %v3064
    %v3658 = vunpack.c.l.b16 %v3065
    %v3659 = vunpack.c.h.b16 %v3065
    %v3660 = vunpack.c.l.b16 %v3066
    %v3661 = vunpack.c.h.b16 %v3066
    %v3662 = vunpack.c.l.b16 %v3067
    %v3663 = vunpack.c.h.b16 %v3067
    %v3664 = vunpack.c.l.b16 %v3068
    %v3665 = vunpack.c.h.b16 %v3068
    %v3666 = vunpack.c.l.b16 %v3069
    %v3667 = vunpack.c.h.b16 %v3069
    %v3668 = vunpack.c.l.b16 %v3070
    %v3669 = vunpack.c.h.b16 %v3070
    %v3670 = vunpack.c.l.b16 %v3071
    %v3671 = vunpack.c.h.b16 %v3071
    %v3672 = vunpack.c.l.b16 %v3072
    %v3673 = vunpack.c.h.b16 %v3072
    %v3674 = vunpack.c.l.b16 %v3073
    %v3675 = vunpack.c.h.b16 %v3073
    %v3676 = vunpack.c.l.b16 %v3074
    %v3677 = vunpack.c.h.b16 %v3074
    %v3678 = vunpack.c.l.b16 %v3075
    %v3679 = vunpack.c.h.b16 %v3075
    %v3680 = vunpack.c.l.b16 %v3076
    %v3681 = vunpack.c.h.b16 %v3076
    %v3682 = vunpack.c.l.b16 %v3077
    %v3683 = vunpack.c.h.b16 %v3077
    %v3684 = vunpack.c.l.b16 %v3078
    %v3685 = vunpack.c.h.b16 %v3078
    %v3686 = vunpack.c.l.b16 %v3079
    %v3687 = vunpack.c.h.b16 %v3079
    %v3688 = vunpack.c.l.b16 %v3080
    %v3689 = vunpack.c.h.b16 %v3080
    %v3690 = vunpack.c.l.b16 %v3081
    %v3691 = vunpack.c.h.b16 %v3081
    %v3692 = vunpack.c.l.b16 %v3082
    %v3693 = vunpack.c.h.b16 %v3082
    %v3694 = vunpack.c.l.b16 %v3083
    %v3695 = vunpack.c.h.b16 %v3083
    %v3696 = vunpack.c.l.b16 %v3084
    %v3697 = vunpack.c.h.b16 %v3084
    %v3698 = vunpack.c.l.b16 %v3085
    %v3699 = vunpack.c.h.b16 %v3085
    %v3700 = vunpack.c.l.b16 %v3086
    %v3701 = vunpack.c.h.b16 %v3086
    %v3702 = vunpack.c.l.b16 %v3087
    %v3703 = vunpack.c.h.b16 %v3087
    %v3704 = vunpack.c.l.b16 %v3088
    %v3705 = vunpack.c.h.b16 %v3088
    %v3706 = vunpack.c.l.b16 %v3089
    %v3707 = vunpack.c.h.b16 %v3089
    %v3708 = vunpack.c.l.b16 %v3090
    %v3709 = vunpack.c.h.b16 %v3090
    %v3710 = vunpack.c.l.b16 %v3091
    %v3711 = vunpack.c.h.b16 %v3091
    %v3712 = vunpack.c.l.b16 %v3092
    %v3713 = vunpack.c.h.b16 %v3092
    %v3714 = vunpack.c.l.b16 %v3093
    %v3715 = vunpack.c.h.b16 %v3093
    %v3716 = vunpack.c.l.b16 %v3094
    %v3717 = vunpack.c.h.b16 %v3094
    %v3718 = vunpack.c.l.b16 %v3095
    %v3719 = vunpack.c.h.b16 %v3095
    %v3720 = vunpack.c.l.b16 %v3096
    %v3721 = vunpack.c.h.b16 %v3096
    %v3722 = vunpack.c.l.b16 %v3097
    %v3723 = vunpack.c.h.b16 %v3097
    %v3724 = vunpack.c.l.b16 %v3098
    %v3725 = vunpack.c.h.b16 %v3098
    %v3726 = vunpack.c.l.b16 %v3099
    %v3727 = vunpack.c.h.b16 %v3099
    %v3728 = vunpack.c.l.b16 %v3100
    %v3729 = vunpack.c.h.b16 %v3100
    %v3730 = vunpack.c.l.b16 %v3101
    %v3731 = vunpack.c.h.b16 %v3101
    %v3732 = vunpack.c.l.b16 %v3102
    %v3733 = vunpack.c.h.b16 %v3102
    %v3734 = vunpack.c.l.b16 %v3103
    %v3735 = vunpack.c.h.b16 %v3103
    %v3736 = vunpack.c.l.b16 %v3104
    %v3737 = vunpack.c.h.b16 %v3104
    %v3738 = vunpack.c.l.b16 %v3105
    %v3739 = vunpack.c.h.b16 %v3105
    %v3740 = vunpack.c.l.b16 %v3106
    %v3741 = vunpack.c.h.b16 %v3106
    %v3742 = vunpack.c.l.b16 %v3107
    %v3743 = vunpack.c.h.b16 %v3107
    %v3744 = vunpack.c.l.b16 %v3108
    %v3745 = vunpack.c.h.b16 %v3108
    %v3746 = vunpack.c.l.b16 %v3109
    %v3747 = vunpack.c.h.b16 %v3109
    %v3748 = vunpack.c.l.b16 %v3110
    %v3749 = vunpack.c.h.b16 %v3110
    %v3750 = vunpack.c.l.b16 %v3111
    %v3751 = vunpack.c.h.b16 %v3111
    %v3752 = vunpack.c.l.b16 %v3112
    %v3753 = vunpack.c.h.b16 %v3112
    %v3754 = vunpack.c.l.b16 %v3113
    %v3755 = vunpack.c.h.b16 %v3113
    %v3756 = vunpack.c.l.b16 %v3114
    %v3757 = vunpack.c.h.b16 %v3114
    %v3758 = vunpack.c.l.b16 %v3115
    %v3759 = vunpack.c.h.b16 %v3115
    %v3760 = vunpack.c.l.b16 %v3116
    %v3761 = vunpack.c.h.b16 %v3116
    %v3762 = vunpack.c.l.b16 %v3117
    %v3763 = vunpack.c.h.b16 %v3117
    %v3764 = vunpack.c.l.b16 %v3118
    %v3765 = vunpack.c.h.b16 %v3118
    %v3766 = vunpack.c.l.b16 %v3119
    %v3767 = vunpack.c.h.b16 %v3119
    %v3768 = vunpack.c.l.b16 %v3120
    %v3769 = vunpack.c.h.b16 %v3120
    %v3770 = vunpack.c.l.b16 %v3121
    %v3771 = vunpack.c.h.b16 %v3121
    %v3772 = vunpack.c.l.b16 %v3122
    %v3773 = vunpack.c.h.b16 %v3122
    %v3774 = vunpack.c.l.b16 %v3123
    %v3775 = vunpack.c.h.b16 %v3123
    %v3776 = vunpack.c.l.b16 %v3124
    %v3777 = vunpack.c.h.b16 %v3124
    %v3778 = vunpack.c.l.b16 %v3125
    %v3779 = vunpack.c.h.b16 %v3125
    %v3780 = vunpack.c.l.b16 %v3126
    %v3781 = vunpack.c.h.b16 %v3126
    %v3782 = vunpack.c.l.b16 %v3127
    %v3783 = vunpack.c.h.b16 %v3127
    %v3784 = vunpack.c.l.b16 %v3128
    %v3785 = vunpack.c.h.b16 %v3128
    %v3786 = vunpack.c.l.b16 %v3129
    %v3787 = vunpack.c.h.b16 %v3129
    %v3788 = vunpack.c.l.b16 %v3130
    %v3789 = vunpack.c.h.b16 %v3130
    %v3790 = vunpack.c.l.b16 %v3131
    %v3791 = vunpack.c.h.b16 %v3131
    %v3792 = vunpack.c.l.b16 %v3132
    %v3793 = vunpack.c.h.b16 %v3132
    %v3794 = vunpack.c.l.b16 %v3133
    %v3795 = vunpack.c.h.b16 %v3133
    %v3796 = vunpack.c.l.b16 %v3134
    %v3797 = vunpack.c.h.b16 %v3134
    %v3798 = vunpack.c.l.b16 %v3135
    %v3799 = vunpack.c.h.b16 %v3135
    %v3800 = vunpack.c.l.b16 %v3136
    %v3801 = vunpack.c.h.b16 %v3136
    %v3802 = vunpack.c.l.b16 %v3137
    %v3803 = vunpack.c.h.b16 %v3137
    %v3804 = vunpack.c.l.b16 %v3138
    %v3805 = vunpack.c.h.b16 %v3138
    %v3806 = vunpack.c.l.b16 %v3139
    %v3807 = vunpack.c.h.b16 %v3139
    %v3808 = vunpack.c.l.b16 %v3140
    %v3809 = vunpack.c.h.b16 %v3140
    %v3810 = vunpack.c.l.b16 %v3141
    %v3811 = vunpack.c.h.b16 %v3141
    %v3812 = vunpack.c.l.b16 %v3142
    %v3813 = vunpack.c.h.b16 %v3142
    %v3814 = vunpack.c.l.b16 %v3143
    %v3815 = vunpack.c.h.b16 %v3143
    %v3816 = vunpack.c.l.b16 %v3144
    %v3817 = vunpack.c.h.b16 %v3144
    %v3818 = vunpack.c.l.b16 %v3145
    %v3819 = vunpack.c.h.b16 %v3145
    %v3820 = vunpack.c.l.b16 %v3146
    %v3821 = vunpack.c.h.b16 %v3146
    %v3822 = vunpack.c.l.b16 %v3147
    %v3823 = vunpack.c.h.b16 %v3147
    %v3824 = vunpack.c.l.b16 %v3148
    %v3825 = vunpack.c.h.b16 %v3148
    %v3826 = vunpack.c.l.b16 %v3149
    %v3827 = vunpack.c.h.b16 %v3149
    %v3828 = vunpack.c.l.b16 %v3150
    %v3829 = vunpack.c.h.b16 %v3150
    %v3830 = vunpack.c.l.b16 %v3151
    %v3831 = vunpack.c.h.b16 %v3151
    %v3832 = vunpack.c.l.b16 %v3152
    %v3833 = vunpack.c.h.b16 %v3152
    %v3834 = vunpack.c.l.b16 %v3153
    %v3835 = vunpack.c.h.b16 %v3153
    %v3836 = vunpack.c.l.b16 %v3154
    %v3837 = vunpack.c.h.b16 %v3154
    %v3838 = vunpack.c.l.b16 %v3155
    %v3839 = vunpack.c.h.b16 %v3155
    %v3840 = vunpack.c.l.b16 %v3156
    %v3841 = vunpack.c.h.b16 %v3156
    %v3842 = vunpack.c.l.b16 %v3157
    %v3843 = vunpack.c.h.b16 %v3157
    %v3844 = vunpack.c.l.b16 %v3158
    %v3845 = vunpack.c.h.b16 %v3158
    %v3846 = vunpack.c.l.b16 %v3159
    %v3847 = vunpack.c.h.b16 %v3159
    %v3848 = vunpack.c.l.b16 %v3160
    %v3849 = vunpack.c.h.b16 %v3160
    %v3850 = vunpack.c.l.b16 %v3161
    %v3851 = vunpack.c.h.b16 %v3161
    %v3852 = vunpack.c.l.b16 %v3162
    %v3853 = vunpack.c.h.b16 %v3162
    %v3854 = vunpack.c.l.b16 %v3163
    %v3855 = vunpack.c.h.b16 %v3163
    %v3856 = vunpack.c.l.b16 %v3164
    %v3857 = vunpack.c.h.b16 %v3164
    %v3858 = vunpack.c.l.b16 %v3165
    %v3859 = vunpack.c.h.b16 %v3165
    %v3860 = vunpack.c.l.b16 %v3166
    %v3861 = vunpack.c.h.b16 %v3166
    %v3862 = vunpack.c.l.b16 %v3167
    %v3863 = vunpack.c.h.b16 %v3167
    %v3864 = vunpack.c.l.b16 %v3168
    %v3865 = vunpack.c.h.b16 %v3168
    %v3866 = vunpack.c.l.b16 %v3169
    %v3867 = vunpack.c.h.b16 %v3169
    %v3868 = vunpack.c.l.b16 %v3170
    %v3869 = vunpack.c.h.b16 %v3170
    %v3870 = vunpack.c.l.b16 %v3171
    %v3871 = vunpack.c.h.b16 %v3171
    %v3872 = vunpack.c.l.b16 %v3172
    %v3873 = vunpack.c.h.b16 %v3172
    %v3874 = vunpack.c.l.b16 %v3173
    %v3875 = vunpack.c.h.b16 %v3173
    %v3876 = vunpack.c.l.b16 %v3174
    %v3877 = vunpack.c.h.b16 %v3174
    %v3878 = vunpack.c.l.b16 %v3175
    %v3879 = vunpack.c.h.b16 %v3175
    %v3880 = vunpack.c.l.b16 %v3176
    %v3881 = vunpack.c.h.b16 %v3176
    %v3882 = vunpack.c.l.b16 %v3177
    %v3883 = vunpack.c.h.b16 %v3177
    %v3884 = vunpack.c.l.b16 %v3178
    %v3885 = vunpack.c.h.b16 %v3178
    %v3886 = vunpack.c.l.b16 %v3179
    %v3887 = vunpack.c.h.b16 %v3179
    %v3888 = vunpack.c.l.b16 %v3180
    %v3889 = vunpack.c.h.b16 %v3180
    %v3890 = vunpack.c.l.b16 %v3181
    %v3891 = vunpack.c.h.b16 %v3181
    %v3892 = vunpack.c.l.b16 %v3182
    %v3893 = vunpack.c.h.b16 %v3182
    %v3894 = vunpack.c.l.b16 %v3183
    %v3895 = vunpack.c.h.b16 %v3183
    %v3896 = vunpack.c.l.b16 %v3184
    %v3897 = vunpack.c.h.b16 %v3184
    %v3898 = vunpack.c.l.b16 %v3185
    %v3899 = vunpack.c.h.b16 %v3185
    %v3900 = vunpack.c.l.b16 %v3186
    %v3901 = vunpack.c.h.b16 %v3186
    %v3902 = vunpack.c.l.b16 %v3187
    %v3903 = vunpack.c.h.b16 %v3187
    %v3904 = vunpack.c.l.b16 %v3188
    %v3905 = vunpack.c.h.b16 %v3188
    %v3906 = vunpack.c.l.b16 %v3189
    %v3907 = vunpack.c.h.b16 %v3189
    %v3908 = vunpack.c.l.b16 %v3190
    %v3909 = vunpack.c.h.b16 %v3190
    %v3910 = vunpack.c.l.b16 %v3191
    %v3911 = vunpack.c.h.b16 %v3191
    %v3912 = vunpack.c.l.b16 %v3192
    %v3913 = vunpack.c.h.b16 %v3192
    %v3914 = vunpack.c.l.b16 %v3193
    %v3915 = vunpack.c.h.b16 %v3193
    %v3916 = vunpack.c.l.b16 %v3194
    %v3917 = vunpack.c.h.b16 %v3194
    %v3918 = vunpack.c.l.b16 %v3195
    %v3919 = vunpack.c.h.b16 %v3195
    %v3920 = vunpack.c.l.b16 %v3196
    %v3921 = vunpack.c.h.b16 %v3196
    %v3922 = vunpack.c.l.b16 %v3197
    %v3923 = vunpack.c.h.b16 %v3197
    %v3924 = vunpack.c.l.b16 %v3198
    %v3925 = vunpack.c.h.b16 %v3198
    %v3926 = vunpack.c.l.b16 %v3199
    %v3927 = vunpack.c.h.b16 %v3199
    %v3928 = vunpack.c.l.b16 %v3200
    %v3929 = vunpack.c.h.b16 %v3200
    %v3930 = vunpack.c.l.b16 %v3201
    %v3931 = vunpack.c.h.b16 %v3201
    %v3932 = vunpack.c.l.b16 %v3202
    %v3933 = vunpack.c.h.b16 %v3202
    %v3934 = vunpack.c.l.b16 %v3203
    %v3935 = vunpack.c.h.b16 %v3203
    %v3936 = vunpack.c.l.b16 %v3204
    %v3937 = vunpack.c.h.b16 %v3204
    %v3938 = vunpack.c.l.b16 %v3205
    %v3939 = vunpack.c.h.b16 %v3205
    %v3940 = vunpack.c.l.b16 %v3206
    %v3941 = vunpack.c.h.b16 %v3206
    %v3942 = vunpack.c.l.b16 %v3207
    %v3943 = vunpack.c.h.b16 %v3207
    %v3944 = vunpack.c.l.b16 %v3208
    %v3945 = vunpack.c.h.b16 %v3208
    %v3946 = vunpack.c.l.b16 %v3209
    %v3947 = vunpack.c.h.b16 %v3209
    %v3948 = vunpack.c.l.b16 %v3210
    %v3949 = vunpack.c.h.b16 %v3210
    %v3950 = vunpack.c.l.b16 %v3211
    %v3951 = vunpack.c.h.b16 %v3211
    %v3952 = vunpack.c.l.b16 %v3212
    %v3953 = vunpack.c.h.b16 %v3212
    %v3954 = vunpack.c.l.b16 %v3213
    %v3955 = vunpack.c.h.b16 %v3213
    %v3956 = vunpack.c.l.b16 %v3214
    %v3957 = vunpack.c.h.b16 %v3214
    %v3958 = vunpack.c.l.b16 %v3215
    %v3959 = vunpack.c.h.b16 %v3215
    %v3960 = vunpack.c.l.b16 %v3216
    %v3961 = vunpack.c.h.b16 %v3216
    %v3962 = vunpack.c.l.b16 %v3217
    %v3963 = vunpack.c.h.b16 %v3217
    %v3964 = vunpack.c.l.b16 %v3218
    %v3965 = vunpack.c.h.b16 %v3218
    %v3966 = vunpack.c.l.b16 %v3219
    %v3967 = vunpack.c.h.b16 %v3219
    %v3968 = vunpack.c.l.b16 %v3220
    %v3969 = vunpack.c.h.b16 %v3220
    %v3970 = vunpack.c.l.b16 %v3221
    %v3971 = vunpack.c.h.b16 %v3221
    %v3972 = vunpack.c.l.b16 %v3222
    %v3973 = vunpack.c.h.b16 %v3222
    %v3974 = vunpack.c.l.b16 %v3223
    %v3975 = vunpack.c.h.b16 %v3223
    %v3976 = vunpack.c.l.b16 %v3224
    %v3977 = vunpack.c.h.b16 %v3224
    %v3978 = vunpack.c.l.b16 %v3225
    %v3979 = vunpack.c.h.b16 %v3225
    %v3980 = vunpack.c.l.b16 %v3226
    %v3981 = vunpack.c.h.b16 %v3226
    %v3982 = vunpack.c.l.b16 %v3227
    %v3983 = vunpack.c.h.b16 %v3227
    %v3984 = vunpack.c.l.b16 %v3228
    %v3985 = vunpack.c.h.b16 %v3228
    %v3986 = vunpack.c.l.b16 %v3229
    %v3987 = vunpack.c.h.b16 %v3229
    %v3988 = vunpack.c.l.b16 %v3230
    %v3989 = vunpack.c.h.b16 %v3230
    %v3990 = vunpack.c.l.b16 %v3231
    %v3991 = vunpack.c.h.b16 %v3231
    %v3992 = vunpack.c.l.b16 %v3232
    %v3993 = vunpack.c.h.b16 %v3232
    %v3994 = vunpack.c.l.b16 %v3233
    %v3995 = vunpack.c.h.b16 %v3233
    %v3996 = vunpack.c.l.b16 %v3234
    %v3997 = vunpack.c.h.b16 %v3234
    %v3998 = vunpack.c.l.b16 %v3235
    %v3999 = vunpack.c.h.b16 %v3235
    %v4000 = vunpack.c.l.b16 %v3236
    %v4001 = vunpack.c.h.b16 %v3236
    %v4002 = vunpack.c.l.b16 %v3237
    %v4003 = vunpack.c.h.b16 %v3237
    %v4004 = vunpack.c.l.b16 %v3238
    %v4005 = vunpack.c.h.b16 %v3238
    %v4006 = vunpack.c.l.b16 %v3239
    %v4007 = vunpack.c.h.b16 %v3239
    %v4008 = vunpack.c.l.b16 %v3240
    %v4009 = vunpack.c.h.b16 %v3240
    %v4010 = vunpack.c.l.b16 %v3241
    %v4011 = vunpack.c.h.b16 %v3241
    %v4012 = vunpack.c.l.b16 %v3242
    %v4013 = vunpack.c.h.b16 %v3242
    %v4014 = vunpack.c.l.b16 %v3243
    %v4015 = vunpack.c.h.b16 %v3243
    %v4016 = vunpack.c.l.b16 %v3244
    %v4017 = vunpack.c.h.b16 %v3244
    %v4018 = vunpack.c.l.b16 %v3245
    %v4019 = vunpack.c.h.b16 %v3245
    %v4020 = vunpack.c.l.b16 %v3246
    %v4021 = vunpack.c.h.b16 %v3246
    %v4022 = vunpack.c.l.b16 %v3247
    %v4023 = vunpack.c.h.b16 %v3247
    %v4024 = vunpack.c.l.b16 %v3248
    %v4025 = vunpack.c.h.b16 %v3248
    %v4026 = vunpack.c.l.b16 %v3249
    %v4027 = vunpack.c.h.b16 %v3249
    %v4028 = vunpack.c.l.b16 %v3250
    %v4029 = vunpack.c.h.b16 %v3250
    %v4030 = vunpack.c.l.b16 %v3251
    %v4031 = vunpack.c.h.b16 %v3251
    %v4032 = vunpack.c.l.b16 %v3252
    %v4033 = vunpack.c.h.b16 %v3252
    %v4034 = vunpack.c.l.b16 %v3253
    %v4035 = vunpack.c.h.b16 %v3253
    %v4036 = vunpack.c.l.b16 %v3254
    %v4037 = vunpack.c.h.b16 %v3254
    %v4038 = vunpack.c.l.b16 %v3255
    %v4039 = vunpack.c.h.b16 %v3255
    %v4040 = vunpack.c.l.b16 %v3256
    %v4041 = vunpack.c.h.b16 %v3256
    %v4042 = vunpack.c.l.b16 %v3257
    %v4043 = vunpack.c.h.b16 %v3257
    %v4044 = vunpack.c.l.b16 %v3258
    %v4045 = vunpack.c.h.b16 %v3258
    %v4046 = vunpack.c.l.b16 %v3259
    %v4047 = vunpack.c.h.b16 %v3259
    %v4048 = vunpack.c.l.b16 %v3260
    %v4049 = vunpack.c.h.b16 %v3260
    %v4050 = vunpack.c.l.b16 %v3261
    %v4051 = vunpack.c.h.b16 %v3261
    %v4052 = vpack.c.b16 %v3544, %v3540
    %v4053 = vpack.c.b16 %v3545, %v3541
    %v4054 = vpack.c.b16 %v3546, %v3542
    %v4055 = vpack.c.b16 %v3547, %v3543
    %v4056 = vpack.c.b16 %v3552, %v3548
    %v4057 = vpack.c.b16 %v3553, %v3549
    %v4058 = vpack.c.b16 %v3554, %v3550
    %v4059 = vpack.c.b16 %v3555, %v3551
    %v4060 = vpack.c.b16 %v3560, %v3556
    %v4061 = vpack.c.b16 %v3561, %v3557
    %v4062 = vpack.c.b16 %v3562, %v3558
    %v4063 = vpack.c.b16 %v3563, %v3559
    %v4064 = vpack.c.b16 %v3568, %v3564
    %v4065 = vpack.c.b16 %v3569, %v3565
    %v4066 = vpack.c.b16 %v3570, %v3566
    %v4067 = vpack.c.b16 %v3571, %v3567
    %v4068 = vpack.c.b16 %v3576, %v3572
    %v4069 = vpack.c.b16 %v3577, %v3573
    %v4070 = vpack.c.b16 %v3578, %v3574
    %v4071 = vpack.c.b16 %v3579, %v3575
    %v4072 = vpack.c.b16 %v3584, %v3580
    %v4073 = vpack.c.b16 %v3585, %v3581
    %v4074 = vpack.c.b16 %v3586, %v3582
    %v4075 = vpack.c.b16 %v3587, %v3583
    %v4076 = vpack.c.b16 %v3592, %v3588
    %v4077 = vpack.c.b16 %v3593, %v3589
    %v4078 = vpack.c.b16 %v3594, %v3590
    %v4079 = vpack.c.b16 %v3595, %v3591
    %v4080 = vpack.c.b16 %v3600, %v3596
    %v4081 = vpack.c.b16 %v3601, %v3597
    %v4082 = vpack.c.b16 %v3602, %v3598
    %v4083 = vpack.c.b16 %v3603, %v3599
    %v4084 = vpack.c.b16 %v3608, %v3604
    %v4085 = vpack.c.b16 %v3609, %v3605
    %v4086 = vpack.c.b16 %v3610, %v3606
    %v4087 = vpack.c.b16 %v3611, %v3607
    %v4088 = vpack.c.b16 %v3616, %v3612
    %v4089 = vpack.c.b16 %v3617, %v3613
    %v4090 = vpack.c.b16 %v3618, %v3614
    %v4091 = vpack.c.b16 %v3619, %v3615
    %v4092 = vpack.c.b16 %v3624, %v3620
    %v4093 = vpack.c.b16 %v3625, %v3621
    %v4094 = vpack.c.b16 %v3626, %v3622
    %v4095 = vpack.c.b16 %v3627, %v3623
    %v4096 = vpack.c.b16 %v3632, %v3628
    %v4097 = vpack.c.b16 %v3633, %v3629
    %v4098 = vpack.c.b16 %v3634, %v3630
    %v4099 = vpack.c.b16 %v3635, %v3631
    %v4100 = vpack.c.b16 %v3640, %v3636
    %v4101 = vpack.c.b16 %v3641, %v3637
    %v4102 = vpack.c.b16 %v3642, %v3638
    %v4103 = vpack.c.b16 %v3643, %v3639
    %v4104 = vpack.c.b16 %v3648, %v3644
    %v4105 = vpack.c.b16 %v3649, %v3645
    %v4106 = vpack.c.b16 %v3650, %v3646
    %v4107 = vpack.c.b16 %v3651, %v3647
    %v4108 = vpack.c.b16 %v3656, %v3652
    %v4109 = vpack.c.b16 %v3657, %v3653
    %v4110 = vpack.c.b16 %v3658, %v3654
    %v4111 = vpack.c.b16 %v3659, %v3655
    %v4112 = vpack.c.b16 %v3664, %v3660
    %v4113 = vpack.c.b16 %v3665, %v3661
    %v4114 = vpack.c.b16 %v3666, %v3662
    %v4115 = vpack.c.b16 %v3667, %v3663
    %v4116 = vpack.c.b16 %v3672, %v3668
    %v4117 = vpack.c.b16 %v3673, %v3669
    %v4118 = vpack.c.b16 %v3674, %v3670
    %v4119 = vpack.c.b16 %v3675, %v3671
    %v4120 = vpack.c.b16 %v3680, %v3676
    %v4121 = vpack.c.b16 %v3681, %v3677
    %v4122 = vpack.c.b16 %v3682, %v3678
    %v4123 = vpack.c.b16 %v3683, %v3679
    %v4124 = vpack.c.b16 %v3688, %v3684
    %v4125 = vpack.c.b16 %v3689, %v3685
    %v4126 = vpack.c.b16 %v3690, %v3686
    %v4127 = vpack.c.b16 %v3691, %v3687
    %v4128 = vpack.c.b16 %v3696, %v3692
    %v4129 = vpack.c.b16 %v3697, %v3693
    %v4130 = vpack.c.b16 %v3698, %v3694
    %v4131 = vpack.c.b16 %v3699, %v3695
    %v4132 = vpack.c.b16 %v3704, %v3700
    %v4133 = vpack.c.b16 %v3705, %v3701
    %v4134 = vpack.c.b16 %v3706, %v3702
    %v4135 = vpack.c.b16 %v3707, %v3703
    %v4136 = vpack.c.b16 %v3712, %v3708
    %v4137 = vpack.c.b16 %v3713, %v3709
    %v4138 = vpack.c.b16 %v3714, %v3710
    %v4139 = vpack.c.b16 %v3715, %v3711
    %v4140 = vpack.c.b16 %v3720, %v3716
    %v4141 = vpack.c.b16 %v3721, %v3717
    %v4142 = vpack.c.b16 %v3722, %v3718
    %v4143 = vpack.c.b16 %v3723, %v3719
    %v4144 = vpack.c.b16 %v3728, %v3724
    %v4145 = vpack.c.b16 %v3729, %v3725
    %v4146 = vpack.c.b16 %v3730, %v3726
    %v4147 = vpack.c.b16 %v3731, %v3727
    %v4148 = vpack.c.b16 %v3736, %v3732
    %v4149 = vpack.c.b16 %v3737, %v3733
    %v4150 = vpack.c.b16 %v3738, %v3734
    %v4151 = vpack.c.b16 %v3739, %v3735
    %v4152 = vpack.c.b16 %v3744, %v3740
    %v4153 = vpack.c.b16 %v3745, %v3741
    %v4154 = vpack.c.b16 %v3746, %v3742
    %v4155 = vpack.c.b16 %v3747, %v3743
    %v4156 = vpack.c.b16 %v3752, %v3748
    %v4157 = vpack.c.b16 %v3753, %v3749
    %v4158 = vpack.c.b16 %v3754, %v3750
    %v4159 = vpack.c.b16 %v3755, %v3751
    %v4160 = vpack.c.b16 %v3760, %v3756
    %v4161 = vpack.c.b16 %v3761, %v3757
    %v4162 = vpack.c.b16 %v3762, %v3758
    %v4163 = vpack.c.b16 %v3763, %v3759
    %v4164 = vpack.c.b16 %v3768, %v3764
    %v4165 = vpack.c.b16 %v3769, %v3765
    %v4166 = vpack.c.b16 %v3770, %v3766
    %v4167 = vpack.c.b16 %v3771, %v3767
    %v4168 = vpack.c.b16 %v3776, %v3772
    %v4169 = vpack.c.b16 %v3777, %v3773
    %v4170 = vpack.c.b16 %v3778, %v3774
    %v4171 = vpack.c.b16 %v3779, %v3775
    %v4172 = vpack.c.b16 %v3784, %v3780
    %v4173 = vpack.c.b16 %v3785, %v3781
    %v4174 = vpack.c.b16 %v3786, %v3782
    %v4175 = vpack.c.b16 %v3787, %v3783
    %v4176 = vpack.c.b16 %v3792, %v3788
    %v4177 = vpack.c.b16 %v3793, %v3789
    %v4178 = vpack.c.b16 %v3794, %v3790
    %v4179 = vpack.c.b16 %v3795, %v3791
    %v4180 = vpack.c.b16 %v3800, %v3796
    %v4181 = vpack.c.b16 %v3801, %v3797
    %v4182 = vpack.c.b16 %v3802, %v3798
    %v4183 = vpack.c.b16 %v3803, %v3799
    %v4184 = vpack.c.b16 %v3808, %v3804
    %v4185 = vpack.c.b16 %v3809, %v3805
    %v4186 = vpack.c.b16 %v3810, %v3806
    %v4187 = vpack.c.b16 %v3811, %v3807
    %v4188 = vpack.c.b16 %v3816, %v3812
    %v4189 = vpack.c.b16 %v3817, %v3813
    %v4190 = vpack.c.b16 %v3818, %v3814
    %v4191 = vpack.c.b16 %v3819, %v3815
    %v4192 = vpack.c.b16 %v3824, %v3820
    %v4193 = vpack.c.b16 %v3825, %v3821
    %v4194 = vpack.c.b16 %v3826, %v3822
    %v4195 = vpack.c.b16 %v3827, %v3823
    %v4196 = vpack.c.b16 %v3832, %v3828
    %v4197 = vpack.c.b16 %v3833, %v3829
    %v4198 = vpack.c.b16 %v3834, %v3830
    %v4199 = vpack.c.b16 %v3835, %v3831
    %v4200 = vpack.c.b16 %v3840, %v3836
    %v4201 = vpack.c.b16 %v3841, %v3837
    %v4202 = vpack.c.b16 %v3842, %v3838
    %v4203 = vpack.c.b16 %v3843, %v3839
    %v4204 = vpack.c.b16 %v3848, %v3844
    %v4205 = vpack.c.b16 %v3849, %v3845
    %v4206 = vpack.c.b16 %v3850, %v3846
    %v4207 = vpack.c.b16 %v3851, %v3847
    %v4208 = vpack.c.b16 %v3856, %v3852
    %v4209 = vpack.c.b16 %v3857, %v3853
    %v4210 = vpack.c.b16 %v3858, %v3854
    %v4211 = vpack.c.b16 %v3859, %v3855
    %v4212 = vpack.c.b16 %v3864, %v3860
    %v4213 = vpack.c.b16 %v3865, %v3861
    %v4214 = vpack.c.b16 %v3866, %v3862
    %v4215 = vpack.c.b16 %v3867, %v3863
    %v4216 = vpack.c.b16 %v3872, %v3868
    %v4217 = vpack.c.b16 %v3873, %v3869
    %v4218 = vpack.c.b16 %v3874, %v3870
    %v4219 = vpack.c.b16 %v3875, %v3871
    %v4220 = vpack.c.b16 %v3880, %v3876
    %v4221 = vpack.c.b16 %v3881, %v3877
    %v4222 = vpack.c.b16 %v3882, %v3878
    %v4223 = vpack.c.b16 %v3883, %v3879
    %v4224 = vpack.c.b16 %v3888, %v3884
    %v4225 = vpack.c.b16 %v3889, %v3885
    %v4226 = vpack.c.b16 %v3890, %v3886
    %v4227 = vpack.c.b16 %v3891, %v3887
    %v4228 = vpack.c.b16 %v3896, %v3892
    %v4229 = vpack.c.b16 %v3897, %v3893
    %v4230 = vpack.c.b16 %v3898, %v3894
    %v4231 = vpack.c.b16 %v3899, %v3895
    %v4232 = vpack.c.b16 %v3904, %v3900
    %v4233 = vpack.c.b16 %v3905, %v3901
    %v4234 = vpack.c.b16 %v3906, %v3902
    %v4235 = vpack.c.b16 %v3907, %v3903
    %v4236 = vpack.c.b16 %v3912, %v3908
    %v4237 = vpack.c.b16 %v3913, %v3909
    %v4238 = vpack.c.b16 %v3914, %v3910
    %v4239 = vpack.c.b16 %v3915, %v3911
    %v4240 = vpack.c.b16 %v3920, %v3916
    %v4241 = vpack.c.b16 %v3921, %v3917
    %v4242 = vpack.c.b16 %v3922, %v3918
    %v4243 = vpack.c.b16 %v3923, %v3919
    %v4244 = vpack.c.b16 %v3928, %v3924
    %v4245 = vpack.c.b16 %v3929, %v3925
    %v4246 = vpack.c.b16 %v3930, %v3926
    %v4247 = vpack.c.b16 %v3931, %v3927
    %v4248 = vpack.c.b16 %v3936, %v3932
    %v4249 = vpack.c.b16 %v3937, %v3933
    %v4250 = vpack.c.b16 %v3938, %v3934
    %v4251 = vpack.c.b16 %v3939, %v3935
    %v4252 = vpack.c.b16 %v3944, %v3940
    %v4253 = vpack.c.b16 %v3945, %v3941
    %v4254 = vpack.c.b16 %v3946, %v3942
    %v4255 = vpack.c.b16 %v3947, %v3943
    %v4256 = vpack.c.b16 %v3952, %v3948
    %v4257 = vpack.c.b16 %v3953, %v3949
    %v4258 = vpack.c.b16 %v3954, %v3950
    %v4259 = vpack.c.b16 %v3955, %v3951
    %v4260 = vpack.c.b16 %v3960, %v3956
    %v4261 = vpack.c.b16 %v3961, %v3957
    %v4262 = vpack.c.b16 %v3962, %v3958
    %v4263 = vpack.c.b16 %v3963, %v3959
    %v4264 = vpack.c.b16 %v3968, %v3964
    %v4265 = vpack.c.b16 %v3969, %v3965
    %v4266 = vpack.c.b16 %v3970, %v3966
    %v4267 = vpack.c.b16 %v3971, %v3967
    %v4268 = vpack.c.b16 %v3976, %v3972
    %v4269 = vpack.c.b16 %v3977, %v3973
    %v4270 = vpack.c.b16 %v3978, %v3974
    %v4271 = vpack.c.b16 %v3979, %v3975
    %v4272 = vpack.c.b16 %v3984, %v3980
    %v4273 = vpack.c.b16 %v3985, %v3981
    %v4274 = vpack.c.b16 %v3986, %v3982
    %v4275 = vpack.c.b16 %v3987, %v3983
    %v4276 = vpack.c.b16 %v3992, %v3988
    %v4277 = vpack.c.b16 %v3993, %v3989
    %v4278 = vpack.c.b16 %v3994, %v3990
    %v4279 = vpack.c.b16 %v3995, %v3991
    %v4280 = vpack.c.b16 %v4000, %v3996
    %v4281 = vpack.c.b16 %v4001, %v3997
    %v4282 = vpack.c.b16 %v4002, %v3998
    %v4283 = vpack.c.b16 %v4003, %v3999
    %v4284 = vpack.c.b16 %v4008, %v4004
    %v4285 = vpack.c.b16 %v4009, %v4005
    %v4286 = vpack.c.b16 %v4010, %v4006
    %v4287 = vpack.c.b16 %v4011, %v4007
    %v4288 = vpack.c.b16 %v4016, %v4012
    %v4289 = vpack.c.b16 %v4017, %v4013
    %v4290 = vpack.c.b16 %v4018, %v4014
    %v4291 = vpack.c.b16 %v4019, %v4015
    %v4292 = vpack.c.b16 %v4024, %v4020
    %v4293 = vpack.c.b16 %v4025, %v4021
    %v4294 = vpack.c.b16 %v4026, %v4022
    %v4295 = vpack.c.b16 %v4027, %v4023
    %v4296 = vpack.c.b16 %v4032, %v4028
    %v4297 = vpack.c.b16 %v4033, %v4029
    %v4298 = vpack.c.b16 %v4034, %v4030
    %v4299 = vpack.c.b16 %v4035, %v4031
    %v4300 = vpack.c.b16 %v4040, %v4036
    %v4301 = vpack.c.b16 %v4041, %v4037
    %v4302 = vpack.c.b16 %v4042, %v4038
    %v4303 = vpack.c.b16 %v4043, %v4039
    %v4304 = vpack.c.b16 %v4048, %v4044
    %v4305 = vpack.c.b16 %v4049, %v4045
    %v4306 = vpack.c.b16 %v4050, %v4046
    %v4307 = vpack.c.b16 %v4051, %v4047
    %4564 = vmatprep.subr.bf16.mxu0 %v4053
    %4565 = vmatpush1.bf16.msra.mxu0 %v4052
    %4566 = vmatprep.subr.bf16.mxu0 %v4057
    %4567 = vmatpush1.bf16.msra.mxu0 %v4056
    %4568 = vmatprep.subr.bf16.mxu0 %v4061
    %4569 = vmatpush1.bf16.msra.mxu0 %v4060
    %4570 = vmatprep.subr.bf16.mxu0 %v4065
    %4571 = vmatpush1.bf16.msra.mxu0 %v4064
    %4572 = vmatprep.subr.bf16.mxu0 %v4069
    %4573 = vmatpush1.bf16.msra.mxu0 %v4068
    %4574 = vmatprep.subr.bf16.mxu0 %v4073
    %4575 = vmatpush1.bf16.msra.mxu0 %v4072
    %4576 = vmatprep.subr.bf16.mxu0 %v4077
    %4577 = vmatpush1.bf16.msra.mxu0 %v4076
    %4578 = vmatprep.subr.bf16.mxu0 %v4081
    %4579 = vmatpush1.bf16.msra.mxu0 %v4080
    %4580 = vmatprep.subr.bf16.mxu0 %v4085
    %4581 = vmatpush1.bf16.msra.mxu0 %v4084
    %4582 = vmatprep.subr.bf16.mxu0 %v4089
    %4583 = vmatpush1.bf16.msra.mxu0 %v4088
    %4584 = vmatprep.subr.bf16.mxu0 %v4093
    %4585 = vmatpush1.bf16.msra.mxu0 %v4092
    %4586 = vmatprep.subr.bf16.mxu0 %v4097
    %4587 = vmatpush1.bf16.msra.mxu0 %v4096
    %4588 = vmatprep.subr.bf16.mxu0 %v4101
    %4589 = vmatpush1.bf16.msra.mxu0 %v4100
    %4590 = vmatprep.subr.bf16.mxu0 %v4105
    %4591 = vmatpush1.bf16.msra.mxu0 %v4104
    %4592 = vmatprep.subr.bf16.mxu0 %v4109
    %4593 = vmatpush1.bf16.msra.mxu0 %v4108
    %4594 = vmatprep.subr.bf16.mxu0 %v4113
    %4595 = vmatpush1.bf16.msra.mxu0 %v4112
    %4596 = vmatprep.mubr.bf16.mxu0 %v2999
    %4597 = vmatmul.mubr.bf16.gmra.mrb[0].mxu0 %v2998
    %v4598 = vpop.f32.mrb[0].mxu0
    %v4599 = vadd.f32 %v3267, %v4598
    %v4600 = vpop.f32.mrb[0].mxu0
    %v4601 = vadd.f32 %v3271, %v4600
    %v4602 = vpop.f32.mrb[0].mxu0
    %v4603 = vpop.f32.mrb[0].mxu0
    %4604 = vdwg.mxu0
    %4605 = vmatprep.subr.bf16.mxu0 %v4117
    %4606 = vmatpush1.bf16.msra.mxu0 %v4116
    %4607 = vmatprep.subr.bf16.mxu0 %v4121
    %4608 = vmatpush1.bf16.msra.mxu0 %v4120
    %4609 = vmatprep.subr.bf16.mxu0 %v4125
    %4610 = vmatpush1.bf16.msra.mxu0 %v4124
    %4611 = vmatprep.subr.bf16.mxu0 %v4129
    %4612 = vmatpush1.bf16.msra.mxu0 %v4128
    %4613 = vmatprep.subr.bf16.mxu0 %v4133
    %4614 = vmatpush1.bf16.msra.mxu0 %v4132
    %4615 = vmatprep.subr.bf16.mxu0 %v4137
    %4616 = vmatpush1.bf16.msra.mxu0 %v4136
    %4617 = vmatprep.subr.bf16.mxu0 %v4141
    %4618 = vmatpush1.bf16.msra.mxu0 %v4140
    %4619 = vmatprep.subr.bf16.mxu0 %v4145
    %4620 = vmatpush1.bf16.msra.mxu0 %v4144
    %4621 = vmatprep.subr.bf16.mxu0 %v4149
    %4622 = vmatpush1.bf16.msra.mxu0 %v4148
    %4623 = vmatprep.subr.bf16.mxu0 %v4153
    %4624 = vmatpush1.bf16.msra.mxu0 %v4152
    %4625 = vmatprep.subr.bf16.mxu0 %v4157
    %4626 = vmatpush1.bf16.msra.mxu0 %v4156
    %4627 = vmatprep.subr.bf16.mxu0 %v4161
    %4628 = vmatpush1.bf16.msra.mxu0 %v4160
    %4629 = vmatprep.subr.bf16.mxu0 %v4165
    %4630 = vmatpush1.bf16.msra.mxu0 %v4164
    %4631 = vmatprep.subr.bf16.mxu0 %v4169
    %4632 = vmatpush1.bf16.msra.mxu0 %v4168
    %4633 = vmatprep.subr.bf16.mxu0 %v4173
    %4634 = vmatpush1.bf16.msra.mxu0 %v4172
    %4635 = vmatprep.subr.bf16.mxu0 %v4177
    %4636 = vmatpush1.bf16.msra.mxu0 %v4176
    %4637 = vmatprep.mubr.bf16.mxu0 %v3001
    %4638 = vmatmul.mubr.bf16.gmra.mrb[0].mxu0 %v3000
    %v4639 = vpop.f32.mrb[0].mxu0
    %v4640 = vadd.f32 %v4599, %v4639
    %v4641 = vpop.f32.mrb[0].mxu0
    %v4642 = vadd.f32 %v4601, %v4641
    %v4643 = vpop.f32.mrb[0].mxu0
    %v4644 = vpop.f32.mrb[0].mxu0
    %4645 = vdwg.mxu0
    %4646 = vmatprep.subr.bf16.mxu0 %v4181
    %4647 = vmatpush1.bf16.msra.mxu0 %v4180
    %4648 = vmatprep.subr.bf16.mxu0 %v4185
    %4649 = vmatpush1.bf16.msra.mxu0 %v4184
    %4650 = vmatprep.subr.bf16.mxu0 %v4189
    %4651 = vmatpush1.bf16.msra.mxu0 %v4188
    %4652 = vmatprep.subr.bf16.mxu0 %v4193
    %4653 = vmatpush1.bf16.msra.mxu0 %v4192
    %4654 = vmatprep.subr.bf16.mxu0 %v4197
    %4655 = vmatpush1.bf16.msra.mxu0 %v4196
    %4656 = vmatprep.subr.bf16.mxu0 %v4201
    %4657 = vmatpush1.bf16.msra.mxu0 %v4200
    %4658 = vmatprep.subr.bf16.mxu0 %v4205
    %4659 = vmatpush1.bf16.msra.mxu0 %v4204
    %4660 = vmatprep.subr.bf16.mxu0 %v4209
    %4661 = vmatpush1.bf16.msra.mxu0 %v4208
    %4662 = vmatprep.subr.bf16.mxu0 %v4213
    %4663 = vmatpush1.bf16.msra.mxu0 %v4212
    %4664 = vmatprep.subr.bf16.mxu0 %v4217
    %4665 = vmatpush1.bf16.msra.mxu0 %v4216
    %4666 = vmatprep.subr.bf16.mxu0 %v4221
    %4667 = vmatpush1.bf16.msra.mxu0 %v4220
    %4668 = vmatprep.subr.bf16.mxu0 %v4225
    %4669 = vmatpush1.bf16.msra.mxu0 %v4224
    %4670 = vmatprep.subr.bf16.mxu0 %v4229
    %4671 = vmatpush1.bf16.msra.mxu0 %v4228
    %4672 = vmatprep.subr.bf16.mxu0 %v4233
    %4673 = vmatpush1.bf16.msra.mxu0 %v4232
    %4674 = vmatprep.subr.bf16.mxu0 %v4237
    %4675 = vmatpush1.bf16.msra.mxu0 %v4236
    %4676 = vmatprep.subr.bf16.mxu0 %v4241
    %4677 = vmatpush1.bf16.msra.mxu0 %v4240
    %4678 = vmatprep.mubr.bf16.mxu0 %v3003
    %4679 = vmatmul.mubr.bf16.gmra.mrb[0].mxu0 %v3002
    %v4680 = vpop.f32.mrb[0].mxu0
    %v4681 = vadd.f32 %v4640, %v4680
    %v4682 = vpop.f32.mrb[0].mxu0
    %v4683 = vadd.f32 %v4642, %v4682
    %v4684 = vpop.f32.mrb[0].mxu0
    %v4685 = vpop.f32.mrb[0].mxu0
    %4686 = vdwg.mxu0
    %4687 = vmatprep.subr.bf16.mxu0 %v4245
    %4688 = vmatpush1.bf16.msra.mxu0 %v4244
    %4689 = vmatprep.subr.bf16.mxu0 %v4249
    %4690 = vmatpush1.bf16.msra.mxu0 %v4248
    %4691 = vmatprep.subr.bf16.mxu0 %v4253
    %4692 = vmatpush1.bf16.msra.mxu0 %v4252
    %4693 = vmatprep.subr.bf16.mxu0 %v4257
    %4694 = vmatpush1.bf16.msra.mxu0 %v4256
    %4695 = vmatprep.subr.bf16.mxu0 %v4261
    %4696 = vmatpush1.bf16.msra.mxu0 %v4260
    %4697 = vmatprep.subr.bf16.mxu0 %v4265
    %4698 = vmatpush1.bf16.msra.mxu0 %v4264
    %4699 = vmatprep.subr.bf16.mxu0 %v4269
    %4700 = vmatpush1.bf16.msra.mxu0 %v4268
    %4701 = vmatprep.subr.bf16.mxu0 %v4273
    %4702 = vmatpush1.bf16.msra.mxu0 %v4272
    %4703 = vmatprep.subr.bf16.mxu0 %v4277
    %4704 = vmatpush1.bf16.msra.mxu0 %v4276
    %4705 = vmatprep.subr.bf16.mxu0 %v4281
    %4706 = vmatpush1.bf16.msra.mxu0 %v4280
    %4707 = vmatprep.subr.bf16.mxu0 %v4285
    %4708 = vmatpush1.bf16.msra.mxu0 %v4284
    %4709 = vmatprep.subr.bf16.mxu0 %v4289
    %4710 = vmatpush1.bf16.msra.mxu0 %v4288
    %4711 = vmatprep.subr.bf16.mxu0 %v4293
    %4712 = vmatpush1.bf16.msra.mxu0 %v4292
    %4713 = vmatprep.subr.bf16.mxu0 %v4297
    %4714 = vmatpush1.bf16.msra.mxu0 %v4296
    %4715 = vmatprep.subr.bf16.mxu0 %v4301
    %4716 = vmatpush1.bf16.msra.mxu0 %v4300
    %4717 = vmatprep.subr.bf16.mxu0 %v4305
    %4718 = vmatpush1.bf16.msra.mxu0 %v4304
    %4719 = vmatprep.mubr.bf16.mxu0 %v3005
    %4720 = vmatmul.mubr.bf16.gmra.mrb[0].mxu0 %v3004
    %v4721 = vpop.f32.mrb[0].mxu0
    %v4722 = vadd.f32 %v4681, %v4721
    %v4723 = vpop.f32.mrb[0].mxu0
    %v4724 = vadd.f32 %v4683, %v4723
    %v4725 = vpop.f32.mrb[0].mxu0
    %v4726 = vpop.f32.mrb[0].mxu0
    %4727 = vdwg.mxu0
    %4728 = vmatprep.subr.bf16.mxu0 %v4055
    %4729 = vmatpush1.bf16.msra.mxu0 %v4054
    %4730 = vmatprep.subr.bf16.mxu0 %v4059
    %4731 = vmatpush1.bf16.msra.mxu0 %v4058
    %4732 = vmatprep.subr.bf16.mxu0 %v4063
    %4733 = vmatpush1.bf16.msra.mxu0 %v4062
    %4734 = vmatprep.subr.bf16.mxu0 %v4067
    %4735 = vmatpush1.bf16.msra.mxu0 %v4066
    %4736 = vmatprep.subr.bf16.mxu0 %v4071
    %4737 = vmatpush1.bf16.msra.mxu0 %v4070
    %4738 = vmatprep.subr.bf16.mxu0 %v4075
    %4739 = vmatpush1.bf16.msra.mxu0 %v4074
    %4740 = vmatprep.subr.bf16.mxu0 %v4079
    %4741 = vmatpush1.bf16.msra.mxu0 %v4078
    %4742 = vmatprep.subr.bf16.mxu0 %v4083
    %4743 = vmatpush1.bf16.msra.mxu0 %v4082
    %4744 = vmatprep.subr.bf16.mxu0 %v4087
    %4745 = vmatpush1.bf16.msra.mxu0 %v4086
    %4746 = vmatprep.subr.bf16.mxu0 %v4091
    %4747 = vmatpush1.bf16.msra.mxu0 %v4090
    %4748 = vmatprep.subr.bf16.mxu0 %v4095
    %4749 = vmatpush1.bf16.msra.mxu0 %v4094
    %4750 = vmatprep.subr.bf16.mxu0 %v4099
    %4751 = vmatpush1.bf16.msra.mxu0 %v4098
    %4752 = vmatprep.subr.bf16.mxu0 %v4103
    %4753 = vmatpush1.bf16.msra.mxu0 %v4102
    %4754 = vmatprep.subr.bf16.mxu0 %v4107
    %4755 = vmatpush1.bf16.msra.mxu0 %v4106
    %4756 = vmatprep.subr.bf16.mxu0 %v4111
    %4757 = vmatpush1.bf16.msra.mxu0 %v4110
    %4758 = vmatprep.subr.bf16.mxu0 %v4115
    %4759 = vmatpush1.bf16.msra.mxu0 %v4114
    %4760 = vmatprep.mubr.bf16.mxu0 %v2999
    %4761 = vmatmul.mubr.bf16.gmra.mrb[0].mxu0 %v2998
    %v4762 = vpop.f32.mrb[0].mxu0
    %v4763 = vadd.f32 %v3275, %v4762
    %v4764 = vpop.f32.mrb[0].mxu0
    %v4765 = vadd.f32 %v3279, %v4764
    %v4766 = vpop.f32.mrb[0].mxu0
    %v4767 = vpop.f32.mrb[0].mxu0
    %4768 = vdwg.mxu0
    %4769 = vmatprep.subr.bf16.mxu0 %v4119
    %4770 = vmatpush1.bf16.msra.mxu0 %v4118
    %4771 = vmatprep.subr.bf16.mxu0 %v4123
    %4772 = vmatpush1.bf16.msra.mxu0 %v4122
    %4773 = vmatprep.subr.bf16.mxu0 %v4127
    %4774 = vmatpush1.bf16.msra.mxu0 %v4126
    %4775 = vmatprep.subr.bf16.mxu0 %v4131
    %4776 = vmatpush1.bf16.msra.mxu0 %v4130
    %4777 = vmatprep.subr.bf16.mxu0 %v4135
    %4778 = vmatpush1.bf16.msra.mxu0 %v4134
    %4779 = vmatprep.subr.bf16.mxu0 %v4139
    %4780 = vmatpush1.bf16.msra.mxu0 %v4138
    %4781 = vmatprep.subr.bf16.mxu0 %v4143
    %4782 = vmatpush1.bf16.msra.mxu0 %v4142
    %4783 = vmatprep.subr.bf16.mxu0 %v4147
    %4784 = vmatpush1.bf16.msra.mxu0 %v4146
    %4785 = vmatprep.subr.bf16.mxu0 %v4151
    %4786 = vmatpush1.bf16.msra.mxu0 %v4150
    %4787 = vmatprep.subr.bf16.mxu0 %v4155
    %4788 = vmatpush1.bf16.msra.mxu0 %v4154
    %4789 = vmatprep.subr.bf16.mxu0 %v4159
    %4790 = vmatpush1.bf16.msra.mxu0 %v4158
    %4791 = vmatprep.subr.bf16.mxu0 %v4163
    %4792 = vmatpush1.bf16.msra.mxu0 %v4162
    %4793 = vmatprep.subr.bf16.mxu0 %v4167
    %4794 = vmatpush1.bf16.msra.mxu0 %v4166
    %4795 = vmatprep.subr.bf16.mxu0 %v4171
    %4796 = vmatpush1.bf16.msra.mxu0 %v4170
    %4797 = vmatprep.subr.bf16.mxu0 %v4175
    %4798 = vmatpush1.bf16.msra.mxu0 %v4174
    %4799 = vmatprep.subr.bf16.mxu0 %v4179
    %4800 = vmatpush1.bf16.msra.mxu0 %v4178
    %4801 = vmatprep.mubr.bf16.mxu0 %v3001
    %4802 = vmatmul.mubr.bf16.gmra.mrb[0].mxu0 %v3000
    %v4803 = vpop.f32.mrb[0].mxu0
    %v4804 = vadd.f32 %v4763, %v4803
    %v4805 = vpop.f32.mrb[0].mxu0
    %v4806 = vadd.f32 %v4765, %v4805
    %v4807 = vpop.f32.mrb[0].mxu0
    %v4808 = vpop.f32.mrb[0].mxu0
    %4809 = vdwg.mxu0
    %4810 = vmatprep.subr.bf16.mxu0 %v4183
    %4811 = vmatpush1.bf16.msra.mxu0 %v4182
    %4812 = vmatprep.subr.bf16.mxu0 %v4187
    %4813 = vmatpush1.bf16.msra.mxu0 %v4186
    %4814 = vmatprep.subr.bf16.mxu0 %v4191
    %4815 = vmatpush1.bf16.msra.mxu0 %v4190
    %4816 = vmatprep.subr.bf16.mxu0 %v4195
    %4817 = vmatpush1.bf16.msra.mxu0 %v4194
    %4818 = vmatprep.subr.bf16.mxu0 %v4199
    %4819 = vmatpush1.bf16.msra.mxu0 %v4198
    %4820 = vmatprep.subr.bf16.mxu0 %v4203
    %4821 = vmatpush1.bf16.msra.mxu0 %v4202
    %4822 = vmatprep.subr.bf16.mxu0 %v4207
    %4823 = vmatpush1.bf16.msra.mxu0 %v4206
    %4824 = vmatprep.subr.bf16.mxu0 %v4211
    %4825 = vmatpush1.bf16.msra.mxu0 %v4210
    %4826 = vmatprep.subr.bf16.mxu0 %v4215
    %4827 = vmatpush1.bf16.msra.mxu0 %v4214
    %4828 = vmatprep.subr.bf16.mxu0 %v4219
    %4829 = vmatpush1.bf16.msra.mxu0 %v4218
    %4830 = vmatprep.subr.bf16.mxu0 %v4223
    %4831 = vmatpush1.bf16.msra.mxu0 %v4222
    %4832 = vmatprep.subr.bf16.mxu0 %v4227
    %4833 = vmatpush1.bf16.msra.mxu0 %v4226
    %4834 = vmatprep.subr.bf16.mxu0 %v4231
    %4835 = vmatpush1.bf16.msra.mxu0 %v4230
    %4836 = vmatprep.subr.bf16.mxu0 %v4235
    %4837 = vmatpush1.bf16.msra.mxu0 %v4234
    %4838 = vmatprep.subr.bf16.mxu0 %v4239
    %4839 = vmatpush1.bf16.msra.mxu0 %v4238
    %4840 = vmatprep.subr.bf16.mxu0 %v4243
    %4841 = vmatpush1.bf16.msra.mxu0 %v4242
    %4842 = vmatprep.mubr.bf16.mxu0 %v3003
    %4843 = vmatmul.mubr.bf16.gmra.mrb[0].mxu0 %v3002
    %v4844 = vpop.f32.mrb[0].mxu0
    %v4845 = vadd.f32 %v4804, %v4844
    %v4846 = vpop.f32.mrb[0].mxu0
    %v4847 = vadd.f32 %v4806, %v4846
    %v4848 = vpop.f32.mrb[0].mxu0
    %v4849 = vpop.f32.mrb[0].mxu0
    %4850 = vdwg.mxu0
    %4851 = vmatprep.subr.bf16.mxu0 %v4247
    %4852 = vmatpush1.bf16.msra.mxu0 %v4246
    %4853 = vmatprep.subr.bf16.mxu0 %v4251
    %4854 = vmatpush1.bf16.msra.mxu0 %v4250
    %4855 = vmatprep.subr.bf16.mxu0 %v4255
    %4856 = vmatpush1.bf16.msra.mxu0 %v4254
    %4857 = vmatprep.subr.bf16.mxu0 %v4259
    %4858 = vmatpush1.bf16.msra.mxu0 %v4258
    %4859 = vmatprep.subr.bf16.mxu0 %v4263
    %4860 = vmatpush1.bf16.msra.mxu0 %v4262
    %4861 = vmatprep.subr.bf16.mxu0 %v4267
    %4862 = vmatpush1.bf16.msra.mxu0 %v4266
    %4863 = vmatprep.subr.bf16.mxu0 %v4271
    %4864 = vmatpush1.bf16.msra.mxu0 %v4270
    %4865 = vmatprep.subr.bf16.mxu0 %v4275
    %4866 = vmatpush1.bf16.msra.mxu0 %v4274
    %4867 = vmatprep.subr.bf16.mxu0 %v4279
    %4868 = vmatpush1.bf16.msra.mxu0 %v4278
    %4869 = vmatprep.subr.bf16.mxu0 %v4283
    %4870 = vmatpush1.bf16.msra.mxu0 %v4282
    %4871 = vmatprep.subr.bf16.mxu0 %v4287
    %4872 = vmatpush1.bf16.msra.mxu0 %v4286
    %4873 = vmatprep.subr.bf16.mxu0 %v4291
    %4874 = vmatpush1.bf16.msra.mxu0 %v4290
    %4875 = vmatprep.subr.bf16.mxu0 %v4295
    %4876 = vmatpush1.bf16.msra.mxu0 %v4294
    %4877 = vmatprep.subr.bf16.mxu0 %v4299
    %4878 = vmatpush1.bf16.msra.mxu0 %v4298
    %4879 = vmatprep.subr.bf16.mxu0 %v4303
    %4880 = vmatpush1.bf16.msra.mxu0 %v4302
    %4881 = vmatprep.subr.bf16.mxu0 %v4307
    %4882 = vmatpush1.bf16.msra.mxu0 %v4306
    %4883 = vmatprep.mubr.bf16.mxu0 %v3005
    %4884 = vmatmul.mubr.bf16.gmra.mrb[0].mxu0 %v3004
    %v4885 = vpop.f32.mrb[0].mxu0
    %v4886 = vadd.f32 %v4845, %v4885
    %v4887 = vpop.f32.mrb[0].mxu0
    %v4888 = vadd.f32 %v4847, %v4887
    %v4889 = vpop.f32.mrb[0].mxu0
    %v4890 = vpop.f32.mrb[0].mxu0
    %4891 = vdwg.mxu0
    %vm4892 = vcmp.gt.f32.partialorder %v4722, 0.0
    %vm4893 = vcmp.gt.f32.partialorder %v4724, 0.0
    %vm4894 = vcmp.gt.f32.partialorder %v4886, 0.0
    %vm4895 = vcmp.gt.f32.partialorder %v4888, 0.0
    %v4896 = vmul.f32 %v4722, 0.01
    %v4897 = vmul.f32 %v4724, 0.01
    %v4898 = vmul.f32 %v4886, 0.01
    %v4899 = vmul.f32 %v4888, 0.01
    %v4900 = vsel %vm4892, %v4722, %v4896
    %v4901 = vsel %vm4893, %v4724, %v4897
    %v4902 = vsel %vm4894, %v4886, %v4898
    %v4903 = vsel %vm4895, %v4888, %v4899
    %v4904 = vld [vmem:[#allocation11] sm:$0xf]
    %v4906 = vlaneseq
    %v4907 = vshrl.u32 %v4906, 7
    %v4908 = vsub.s32 0, %v4907
    %v4909 = vrot.slane %v4904, %v4908
    %v4910 = vlaneseq
    %v4911 = vshrl.u32 %v4910, 7
    %v4912 = vsub.s32 1, %v4911
    %v4913 = vrot.slane %v4904, %v4912
    %v4914 = vlaneseq
    %v4915 = vshrl.u32 %v4914, 7
    %v4916 = vsub.s32 2, %v4915
    %v4917 = vrot.slane %v4904, %v4916
    %v4918 = vlaneseq
    %v4919 = vshrl.u32 %v4918, 7
    %v4920 = vsub.s32 3, %v4919
    %v4921 = vrot.slane %v4904, %v4920
    %v4926 = vmul.f32 %v4900, %v4909
    %v4927 = vmul.f32 %v4901, %v4913
    %v4928 = vmul.f32 %v4902, %v4917
    %v4929 = vmul.f32 %v4903, %v4921
    %v4930 = vadd.f32 %v4926, %v4927
    %v4931 = vadd.f32 %v4930, %v4928
    %v4932 = vadd.f32 %v4931, %v4929
    %4933 = vadd.xlane.f32.xlu0 %v4932
    %v4934 = vpop.xlane.xlu0 %4933
    %v4935 = vld [vmem:[#allocation13] sm:$0x1]
    %v4937 = vlaneseq
    %v4938 = vshrl.u32 %v4937, 7
    %v4939 = vsub.s32 0, %v4938
    %v4940 = vrot.slane %v4935, %v4939
    %v4942 = vadd.f32 %v4934, %v4940
    %v4943 = vxor.u32 %v4942, 2147483648
    %v4944 = vmul.f32 %v4943, 1.442695
    %v4945 = vpow.pop %v4944
    %v4946 = vadd.f32 %v4945, 1.0
    %v4947 = vrcp.pop %v4946
    %v4948 = vmul.f32 1.0, %v4947
    %4949 = vst [vmem:[#allocation14] sm:$0xff] %v4948
    // Predicated region
    $region58: #{tpu_custom_call.1} parent=1 // pred_check
      _
    $region59: #{tpu_custom_call.1} parent=1 // pred_check_branch
      %4951 = sbr.rel (0) target = $region61
    $region60: #{tpu_custom_call.1} parent=1 // pred_region
      %s4953 = ssub.s32 128, 128
      %4954 = vsyncadd [#allocation4], %s4953
      %s4956 = sshll.u32 [#allocation14], 4
      %s4957 = int_to_ptr.vmem [resolvable:$true] %s4956
      %4959 = dma.vmem_to_hbm [thread:$0]  %s4957, 128, %s7, [#allocation4]
    $region61: #{tpu_custom_call.1} parent=1 // pred_fallthru
      _
    // Predicated region
    $region62: #{tpu_custom_call.1} parent=1 // pred_check
      _
    $region63: #{tpu_custom_call.1} parent=1 // pred_check_branch
      %4961 = sbr.rel (0) target = $region65
    $region64: #{tpu_custom_call.1} parent=1 // pred_region
      %4962 = dma.done [#allocation4], 128
    $region65: #{tpu_custom_call.1} parent=1 // pred_fallthru
      _
    %4963 = vsyncpa [#allocation3], 1
    %4964 = vsyncpa [#allocation6], 1
    %4965 = vsyncpa [#allocation9], 1
    %4966 = vsyncpa [#allocation12], 1
    %4967 = vsyncpa [#allocation4], 1

</llo_original>
